<compile_context>
chip_gen: v5e
topology: v5e:2x2
jax: 0.10.0
libtpu: 0.0.40
codegen_flags: <defaults>
</compile_context>

<pallas_src>
import functools
import numpy as np

import jax
import jax.numpy as jnp
from jax.experimental import pallas as pl
from jax.experimental.pallas import tpu as pltpu

EPS = 1e-5


# ------------------------------------------------------------------ kernel helpers

def _accumulate_stats(st_ref, acc_f32, is_first):
    """Accumulate per-channel [sum; sum of squares] into a (2, C) output that is
    resident in VMEM across the (arbitrary) grid axis."""
    stats = jnp.concatenate(
        [jnp.sum(acc_f32, axis=0, keepdims=True),
         jnp.sum(acc_f32 * acc_f32, axis=0, keepdims=True)], axis=0)

    @pl.when(is_first)
    def _():
        st_ref[...] = stats

    @pl.when(jnp.logical_not(is_first))
    def _():
        st_ref[...] = st_ref[...] + stats


# ------------------------------------------------------------------ Pallas kernels

def _make_conv1_kernel(stride, Ho, Wo, with_shortcut):
    """conv1: 3x3, stride s, pad 1 — 9 in-kernel tap matmuls over a phase-decomposed
    padded input (unit-stride reads).  Also emits BN batch-stat accumulators and,
    when stride != 1, the 1x1 stride-s shortcut conv (reusing the centre-tap patch)."""
    s = stride

    def kernel(*refs):
        if with_shortcut:
            ph_ref, w1_ref, ws_ref, y1_ref, sc_ref, st1_ref, sts_ref = refs
        else:
            ph_ref, w1_ref, y1_ref, st1_ref = refs

        cin = w1_ref.shape[2]
        cout = w1_ref.shape[3]
        first = pl.program_id(0) == 0

        acc = jnp.zeros((Ho * Wo, cout), jnp.float32)
        sc_acc = None
        for kh in range(3):
            for kw in range(3):
                p, q = kh % s, kw % s
                oh, ow = kh // s, kw // s
                # unit-stride window into phase (p, q) of the padded image
                patch = ph_ref[p * s + q, oh:oh + Ho, ow:ow + Wo, :]     # (Ho,Wo,Cin) bf16
                patch2d = patch.reshape(Ho * Wo, cin)
                acc = acc + jnp.dot(patch2d, w1_ref[kh, kw],
                                    preferred_element_type=jnp.float32)
                if with_shortcut and kh == 1 and kw == 1:
                    # 1x1 stride-s shortcut conv == matmul on the centre tap patch
                    sc_acc = jnp.dot(patch2d, ws_ref[...],
                                     preferred_element_type=jnp.float32)

        y1_ref[...] = acc.astype(y1_ref.dtype)
        _accumulate_stats(st1_ref, acc, first)

        if with_shortcut:
            sc_ref[...] = sc_acc.astype(sc_ref.dtype)
            _accumulate_stats(sts_ref, sc_acc, first)

    return kernel


def _make_conv2_kernel(Ho, Wo, cout):
    """bn1(+relu) applied on the fly (scale/bias folded in the wrapper), then
    conv2: 3x3, stride 1, pad 1 as 9 tap matmuls on a zero-padded VMEM scratch.
    Also emits BN2 stat accumulators and the per-image spatial mean (SE squeeze)."""

    def kernel(y1_ref, a1_ref, b1_ref, w2_ref, y2_ref, pooled_ref, st2_ref, pad_ref):
        first = pl.program_id(0) == 0

        # zero the halo once; the border is never written afterwards
        @pl.when(first)
        def _():
            pad_ref[...] = jnp.zeros(pad_ref.shape, pad_ref.dtype)

        # bn1 + relu (training stats folded into a1/b1)
        a = y1_ref[...].astype(jnp.float32) * a1_ref[...] + b1_ref[...]
        a = jnp.maximum(a, 0.0)
        pad_ref[1:Ho + 1, 1:Wo + 1, :] = a.astype(pad_ref.dtype).reshape(Ho, Wo, cout)

        acc = jnp.zeros((Ho * Wo, cout), jnp.float32)
        for kh in range(3):
            for kw in range(3):
                patch = pad_ref[kh:kh + Ho, kw:kw + Wo, :].reshape(Ho * Wo, cout)
                acc = acc + jnp.dot(patch, w2_ref[kh, kw],
                                    preferred_element_type=jnp.float32)

        y2_ref[...] = acc.astype(y2_ref.dtype)
        pooled_ref[...] = jnp.mean(acc, axis=0, keepdims=True)   # SE squeeze (raw)
        _accumulate_stats(st2_ref, acc, first)

    return kernel


def _se_kernel(pooled_ref, a2_ref, b2_ref, wc_ref, bc_ref, we_ref, be_ref, coeff_ref):
    """SE: normalize the pooled raw conv2 output (pooling commutes with the affine
    BN fold), then compress -> relu -> excite -> sigmoid.  Everything is tiny."""
    pooled = pooled_ref[:, 0, :] * a2_ref[...] + b2_ref[...]            # (N, C)
    h = jnp.dot(pooled, wc_ref[...], preferred_element_type=jnp.float32) + bc_ref[...]
    h = jnp.maximum(h, 0.0)
    logits = jnp.dot(h, we_ref[...], preferred_element_type=jnp.float32) + be_ref[...]
    coeff_ref[...] = 1.0 / (1.0 + jnp.exp(-logits))


def _epilogue_kernel(y2_ref, a2_ref, b2_ref, coeff_ref, sc_ref, as_ref, bs_ref, o_ref):
    """Fused epilogue: bn2 -> SE scale -> (+ shortcut, optionally BN'd) -> relu."""
    y = y2_ref[...].astype(jnp.float32) * a2_ref[...] + b2_ref[...]
    y = y * coeff_ref[...]
    sc = sc_ref[...].astype(jnp.float32) * as_ref[...] + bs_ref[...]
    o_ref[...] = jnp.maximum(y + sc, 0.0)


# ------------------------------------------------------------------ wrapper

def _w1x1(w):   # PyTorch (O, I, 1, 1) -> (I, O)
    return jnp.transpose(w[:, :, 0, 0], (1, 0))


def _w3x3(w):   # PyTorch (O, I, 3, 3) -> (3, 3, I, O)
    return jnp.transpose(w, (2, 3, 1, 0))


def _bn_fold(stats, gamma, beta, m):
    """(sum, sumsq) -> folded scale/bias for training-mode BN (biased variance)."""
    mean = stats[0] / m
    var = stats[1] / m - mean * mean
    scale = gamma * jax.lax.rsqrt(var + EPS)
    bias = beta - mean * scale
    return scale.reshape(1, -1).astype(jnp.float32), bias.reshape(1, -1).astype(jnp.float32)


@functools.partial(jax.jit, static_argnames=("stride", "is_se"))
def basic_block_forward(x_nchw, p, *, stride, is_se):
    N, Cin, H, W = x_nchw.shape
    Cout = p["w1"].shape[0]
    assert Cin == Cout, "module's conv2/identity shortcut require in_channel == out_channel"
    s = stride
    Ho = (H + 2 - 3) // s + 1
    Wo = (W + 2 - 3) // s + 1
    M = N * Ho * Wo

    # ---- input prep: NHWC, pad 1, phase-decompose so in-kernel taps are unit-stride
    x = jnp.transpose(x_nchw, (0, 2, 3, 1))                       # NHWC f32
    xpad = jnp.pad(x, ((0, 0), (1, 1), (1, 1), (0, 0)))
    Hph = Ho + (2 if s == 1 else 1)
    Wph = Wo + (2 if s == 1 else 1)
    xpad = jnp.pad(xpad, ((0, 0), (0, s * Hph - (H + 2)), (0, s * Wph - (W + 2)), (0, 0)))
    phases = xpad.reshape(N, Hph, s, Wph, s, Cin).transpose(0, 2, 4, 1, 3, 5)
    phases = phases.reshape(N, s * s, Hph, Wph, Cin).astype(jnp.bfloat16)

    # ---- weights (bf16 for the MXU)
    w1 = _w3x3(p["w1"]).astype(jnp.bfloat16)
    w2 = _w3x3(p["w2"]).astype(jnp.bfloat16)
    arb = pltpu.CompilerParams(dimension_semantics=("arbitrary",))
    par = pltpu.CompilerParams(dimension_semantics=("parallel",))

    # ---- pass 1: conv1 (+ fused shortcut conv) + BN batch-statistics accumulation
    with_shortcut = (s != 1)
    P = s * s
    in_specs = [
        pl.BlockSpec((None, P, Hph, Wph, Cin), lambda i: (i, 0, 0, 0, 0)),
        pl.BlockSpec((3, 3, Cin, Cout), lambda i: (0, 0, 0, 0)),
    ]
    inputs = [phases, w1]
    out_shape = [jax.ShapeDtypeStruct((N, Ho * Wo, Cout), jnp.bfloat16),
                 jax.ShapeDtypeStruct((2, Cout), jnp.float32)]
    out_specs = [pl.BlockSpec((None, Ho * Wo, Cout), lambda i: (i, 0, 0)),
                 pl.BlockSpec((2, Cout), lambda i: (0, 0))]
    if with_shortcut:
        in_specs.append(pl.BlockSpec((Cin, Cout), lambda i: (0, 0)))
        inputs.append(_w1x1(p["ws"]).astype(jnp.bfloat16))
        out_shape = [out_shape[0],
                     jax.ShapeDtypeStruct((N, Ho * Wo, Cout), jnp.bfloat16),
                     out_shape[1],
                     jax.ShapeDtypeStruct((2, Cout), jnp.float32)]
        out_specs = [out_specs[0],
                     pl.BlockSpec((None, Ho * Wo, Cout), lambda i: (i, 0, 0)),
                     out_specs[1],
                     pl.BlockSpec((2, Cout), lambda i: (0, 0))]

    res1 = pl.pallas_call(
        _make_conv1_kernel(s, Ho, Wo, with_shortcut),
        grid=(N,),
        in_specs=in_specs,
        out_specs=out_specs,
        out_shape=out_shape,
        compiler_params=arb,
    )(*inputs)
    if with_shortcut:
        y1, sc_raw, st1, sts = res1
    else:
        y1, st1 = res1
        sc_raw = sts = None

    a1, b1 = _bn_fold(st1, p["g"], p["b"], M)

    # ---- pass 2: bn1+relu -> conv2 + BN2 statistics + SE squeeze (spatial mean)
    y2, pooled, st2 = pl.pallas_call(
        _make_conv2_kernel(Ho, Wo, Cout),
        grid=(N,),
        in_specs=[pl.BlockSpec((None, Ho * Wo, Cout), lambda i: (i, 0, 0)),
                  pl.BlockSpec((1, Cout), lambda i: (0, 0)),
                  pl.BlockSpec((1, Cout), lambda i: (0, 0)),
                  pl.BlockSpec((3, 3, Cout, Cout), lambda i: (0, 0, 0, 0))],
        out_specs=[pl.BlockSpec((None, Ho * Wo, Cout), lambda i: (i, 0, 0)),
                   pl.BlockSpec((None, 1, Cout), lambda i: (i, 0, 0)),
                   pl.BlockSpec((2, Cout), lambda i: (0, 0))],
        out_shape=[jax.ShapeDtypeStruct((N, Ho * Wo, Cout), jnp.bfloat16),
                   jax.ShapeDtypeStruct((N, 1, Cout), jnp.float32),
                   jax.ShapeDtypeStruct((2, Cout), jnp.float32)],
        scratch_shapes=[pltpu.VMEM((Ho + 2, Wo + 2, Cout), jnp.bfloat16)],
        compiler_params=arb,
    )(y1, a1, b1, w2)

    a2, b2 = _bn_fold(st2, p["g"], p["b"], M)

    # ---- SE coefficients (tiny; single-block kernel)
    if is_se:
        cr = p["wc"].shape[0]
        vmem = pl.BlockSpec(memory_space=pltpu.MemorySpace.VMEM)
        coeff = pl.pallas_call(
            _se_kernel,
            out_shape=jax.ShapeDtypeStruct((N, Cout), jnp.float32),
            in_specs=[vmem] * 7,
            out_specs=vmem,
        )(pooled, a2, b2,
          _w1x1(p["wc"]).astype(jnp.float32), p["bc"].reshape(1, cr).astype(jnp.float32),
          _w1x1(p["we"]).astype(jnp.float32), p["be"].reshape(1, Cout).astype(jnp.float32))
        coeff3 = coeff.reshape(N, 1, Cout)
    else:
        coeff3 = jnp.ones((N, 1, Cout), jnp.float32)

    # ---- shortcut operands for the fused epilogue
    if with_shortcut:
        as_, bs_ = _bn_fold(sts, p["gs"], p["bs"], M)
        sc_in = sc_raw
    else:
        sc_in = x.reshape(N, H * W, Cin)                     # identity shortcut (f32)
        as_ = jnp.ones((1, Cout), jnp.float32)
        bs_ = jnp.zeros((1, Cout), jnp.float32)

    # ---- pass 3: fused epilogue (bn2 * SE + shortcut-bn, relu) — parallel grid axis
    out = pl.pallas_call(
        _epilogue_kernel,
        grid=(N,),
        in_specs=[pl.BlockSpec((None, Ho * Wo, Cout), lambda i: (i, 0, 0)),
                  pl.BlockSpec((1, Cout), lambda i: (0, 0)),
                  pl.BlockSpec((1, Cout), lambda i: (0, 0)),
                  pl.BlockSpec((None, 1, Cout), lambda i: (i, 0, 0)),
                  pl.BlockSpec((None, Ho * Wo, Cout), lambda i: (i, 0, 0)),
                  pl.BlockSpec((1, Cout), lambda i: (0, 0)),
                  pl.BlockSpec((1, Cout), lambda i: (0, 0))],
        out_specs=pl.BlockSpec((None, Ho * Wo, Cout), lambda i: (i, 0, 0)),
        out_shape=jax.ShapeDtypeStruct((N, Ho * Wo, Cout), jnp.float32),
        compiler_params=par,
    )(y2, a2, b2, coeff3, sc_in, as_, bs_)

    return jnp.transpose(out.reshape(N, Ho, Wo, Cout), (0, 3, 1, 2))   # back to NCHW


# ------------------------------------------------------------------ reference (pure JAX, f32)

def _conv_ref(x, w, stride, pad):
    return jax.lax.conv_general_dilated(
        x, w, (stride, stride), ((pad, pad), (pad, pad)),
        dimension_numbers=("NCHW", "OIHW", "NCHW"),
        precision=jax.lax.Precision.HIGHEST)


def _bn_train_ref(x, gamma, beta):
    mean = jnp.mean(x, axis=(0, 2, 3), keepdims=True)
    var = jnp.mean((x - mean) ** 2, axis=(0, 2, 3), keepdims=True)
    return ((x - mean) * jax.lax.rsqrt(var + EPS)
            * gamma.reshape(1, -1, 1, 1) + beta.reshape(1, -1, 1, 1))


def basic_block_reference(x, p, stride, is_se):
    out = jax.nn.relu(_bn_train_ref(_conv_ref(x, p["w1"], stride, 1), p["g"], p["b"]))
    out = _bn_train_ref(_conv_ref(out, p["w2"], 1, 1), p["g"], p["b"])
    if is_se:
        pooled = jnp.mean(out, axis=(2, 3), keepdims=True)
        h = jax.nn.relu(_conv_ref(pooled, p["wc"], 1, 0) + p["bc"].reshape(1, -1, 1, 1))
        coeff = jax.nn.sigmoid(_conv_ref(h, p["we"], 1, 0) + p["be"].reshape(1, -1, 1, 1))
        out = out * coeff
    if stride != 1:
        sc = _bn_train_ref(_conv_ref(x, p["ws"], stride, 0), p["gs"], p["bs"])
    else:
        sc = x
    return jax.nn.relu(out + sc)


# ------------------------------------------------------------------ params / test

def init_params(key, c):
    cr = max(c // 16, 1)      # SE ratio = 16
    ks = jax.random.split(key, 12)
    n = jax.random.normal
    return {
        "w1": 0.1 * n(ks[0], (c, c, 3, 3), jnp.float32),
        "w2": 0.1 * n(ks[1], (c, c, 3, 3), jnp.float32),
        "g": 1.0 + 0.1 * n(ks[2], (c,), jnp.float32),
        "b": 0.1 * n(ks[3], (c,), jnp.float32),
        "ws": 0.1 * n(ks[4], (c, c, 1, 1), jnp.float32),
        "gs": 1.0 + 0.1 * n(ks[5], (c,), jnp.float32),
        "bs": 0.1 * n(ks[6], (c,), jnp.float32),
        "wc": 0.1 * n(ks[7], (cr, c, 1, 1), jnp.float32),
        "bc": 0.1 * n(ks[8], (cr,), jnp.float32),
        "we": 0.1 * n(ks[9], (c, cr, 1, 1), jnp.float32),
        "be": 0.1 * n(ks[10], (c,), jnp.float32),
    }


if __name__ == "__main__":
    key = jax.random.PRNGKey(0)
    data_key, param_key = jax.random.split(key)

    N, C, H, W = 2, 32, 16, 16        # in_channel == out_channel (required by the module)
    x = jax.random.normal(data_key, (N, C, H, W), jnp.float32)
    params = init_params(param_key, C)

    for stride, is_se in [(2, True), (2, False), (1, True)]:
        out = jax.block_until_ready(
            basic_block_forward(x, params, stride=stride, is_se=is_se))
        ref = basic_block_reference(x, params, stride, is_se)
        Ho = (H + 2 - 3) // stride + 1
        assert out.shape == (N, C, Ho, Ho), out.shape
        np.testing.assert_allclose(np.asarray(out), np.asarray(ref),
                                   rtol=3e-2, atol=3e-2)

    print("KERNEL_OK")
</pallas_src>

<mosaic_0001>
module attributes {stable_mosaic.version = 11 : i64} {
  func.func @kernel(%arg0: i32, %arg1: memref<1x64x32xbf16, #tpu.memory_space<vmem>>, %arg2: memref<1x32xf32, #tpu.memory_space<vmem>>, %arg3: memref<1x32xf32, #tpu.memory_space<vmem>>, %arg4: memref<3x3x32x32xbf16, #tpu.memory_space<vmem>>, %arg5: memref<1x64x32xbf16, #tpu.memory_space<vmem>>, %arg6: memref<1x1x32xf32, #tpu.memory_space<vmem>>, %arg7: memref<2x32xf32, #tpu.memory_space<vmem>>, %arg8: memref<10x10x32xbf16, #tpu.memory_space<vmem>>) attributes {dimension_semantics = [#tpu.dimension_semantics<arbitrary>], iteration_bounds = array<i64: 2>, scalar_prefetch = 0 : i64, scratch_operands = 1 : i64, tpu.core_type = #tpu.core_type<tc>, window_params = [{transform_indices = @transform_0, window_bounds = array<i64: 1, 64, 32>}, {pipeline_mode = #tpu.pipeline_mode<synchronous>, transform_indices = @transform_1, window_bounds = array<i64: 1, 32>}, {pipeline_mode = #tpu.pipeline_mode<synchronous>, transform_indices = @transform_2, window_bounds = array<i64: 1, 32>}, {pipeline_mode = #tpu.pipeline_mode<synchronous>, transform_indices = @transform_3, window_bounds = array<i64: 3, 3, 32, 32>}, {transform_indices = @transform_4, window_bounds = array<i64: 1, 64, 32>}, {transform_indices = @transform_5, window_bounds = array<i64: 1, 1, 32>}, {pipeline_mode = #tpu.pipeline_mode<synchronous>, transform_indices = @transform_6, window_bounds = array<i64: 2, 32>}]} {
    %c0_i32 = arith.constant 0 : i32
    %0 = arith.cmpi eq, %arg0, %c0_i32 : i32
    %1 = arith.extui %0 : i1 to i32
    %c0_i32_0 = arith.constant 0 : i32
    %2 = arith.cmpi ne, %1, %c0_i32_0 : i32
    scf.if %2 {
      %cst_93 = arith.constant 0.000000e+00 : bf16
      %94 = vector.broadcast %cst_93 : bf16 to vector<10x10x32xbf16>
      %c0_94 = arith.constant 0 : index
      %c0_95 = arith.constant 0 : index
      %c0_96 = arith.constant 0 : index
      %95 = vector.load %arg8[%c0_94, %c0_95, %c0_96] : memref<10x10x32xbf16, #tpu.memory_space<vmem>>, vector<10x10x32xbf16>
      tpu.vector_store %arg8[%c0_94, %c0_95, %c0_96], %94 {strides = array<i32>} : memref<10x10x32xbf16, #tpu.memory_space<vmem>>, vector<10x10x32xbf16>,
    } else {
    }
    %c0 = arith.constant 0 : index
    %c0_1 = arith.constant 0 : index
    %c0_2 = arith.constant 0 : index
    %3 = vector.load %arg1[%c0, %c0_1, %c0_2] : memref<1x64x32xbf16, #tpu.memory_space<vmem>>, vector<1x64x32xbf16>
    %4 = vector.shape_cast %3 : vector<1x64x32xbf16> to vector<64x32xbf16>
    %5 = arith.extf %4 : vector<64x32xbf16> to vector<64x32xf32>
    %c0_3 = arith.constant 0 : index
    %c0_4 = arith.constant 0 : index
    %6 = vector.load %arg2[%c0_3, %c0_4] : memref<1x32xf32, #tpu.memory_space<vmem>>, vector<1x32xf32>
    %7 = vector.broadcast %6 : vector<1x32xf32> to vector<64x32xf32>
    %8 = arith.mulf %5, %7 : vector<64x32xf32>
    %c0_5 = arith.constant 0 : index
    %c0_6 = arith.constant 0 : index
    %9 = vector.load %arg3[%c0_5, %c0_6] : memref<1x32xf32, #tpu.memory_space<vmem>>, vector<1x32xf32>
    %10 = vector.broadcast %9 : vector<1x32xf32> to vector<64x32xf32>
    %11 = arith.addf %8, %10 : vector<64x32xf32>
    %cst = arith.constant 0.000000e+00 : f32
    %12 = vector.broadcast %cst : f32 to vector<64x32xf32>
    %13 = arith.maximumf %11, %12 : vector<64x32xf32>
    %14 = arith.truncf %13 : vector<64x32xf32> to vector<64x32xbf16>
    %15 = vector.shape_cast %14 : vector<64x32xbf16> to vector<8x8x32xbf16>
    %c1 = arith.constant 1 : index
    %c1_7 = arith.constant 1 : index
    %c0_8 = arith.constant 0 : index
    %16 = vector.load %arg8[%c1, %c1_7, %c0_8] : memref<10x10x32xbf16, #tpu.memory_space<vmem>>, vector<8x8x32xbf16>
    tpu.vector_store %arg8[%c1, %c1_7, %c0_8], %15 {strides = array<i32>} : memref<10x10x32xbf16, #tpu.memory_space<vmem>>, vector<8x8x32xbf16>,
    %cst_9 = arith.constant 0.000000e+00 : f32
    %17 = vector.broadcast %cst_9 : f32 to vector<64x32xf32>
    %c0_10 = arith.constant 0 : index
    %c0_11 = arith.constant 0 : index
    %c0_12 = arith.constant 0 : index
    %18 = vector.load %arg8[%c0_10, %c0_11, %c0_12] : memref<10x10x32xbf16, #tpu.memory_space<vmem>>, vector<8x8x32xbf16>
    %19 = vector.shape_cast %18 : vector<8x8x32xbf16> to vector<64x32xbf16>
    %c0_13 = arith.constant 0 : index
    %c0_14 = arith.constant 0 : index
    %c0_15 = arith.constant 0 : index
    %c0_16 = arith.constant 0 : index
    %20 = vector.load %arg4[%c0_13, %c0_14, %c0_15, %c0_16] : memref<3x3x32x32xbf16, #tpu.memory_space<vmem>>, vector<1x1x32x32xbf16>
    %21 = vector.shape_cast %20 : vector<1x1x32x32xbf16> to vector<32x32xbf16>
    %cst_17 = arith.constant dense<0.000000e+00> : vector<64x32xf32>
    %22 = tpu.matmul %19, %21, %cst_17 {dimension_numbers = #tpu.dot_dimension_numbers<[1], [0], [0], [1], [0, 0, 1, 1], [], []>} : vector<64x32xbf16>, vector<32x32xbf16>, vector<64x32xf32> -> vector<64x32xf32>
    %23 = arith.addf %17, %22 : vector<64x32xf32>
    %c0_18 = arith.constant 0 : index
    %c1_19 = arith.constant 1 : index
    %c0_20 = arith.constant 0 : index
    %24 = vector.load %arg8[%c0_18, %c1_19, %c0_20] : memref<10x10x32xbf16, #tpu.memory_space<vmem>>, vector<8x8x32xbf16>
    %25 = vector.shape_cast %24 : vector<8x8x32xbf16> to vector<64x32xbf16>
    %c0_21 = arith.constant 0 : index
    %c1_22 = arith.constant 1 : index
    %c0_23 = arith.constant 0 : index
    %c0_24 = arith.constant 0 : index
    %26 = vector.load %arg4[%c0_21, %c1_22, %c0_23, %c0_24] : memref<3x3x32x32xbf16, #tpu.memory_space<vmem>>, vector<1x1x32x32xbf16>
    %27 = vector.shape_cast %26 : vector<1x1x32x32xbf16> to vector<32x32xbf16>
    %cst_25 = arith.constant dense<0.000000e+00> : vector<64x32xf32>
    %28 = tpu.matmul %25, %27, %cst_25 {dimension_numbers = #tpu.dot_dimension_numbers<[1], [0], [0], [1], [0, 0, 1, 1], [], []>} : vector<64x32xbf16>, vector<32x32xbf16>, vector<64x32xf32> -> vector<64x32xf32>
    %29 = arith.addf %23, %28 : vector<64x32xf32>
    %c0_26 = arith.constant 0 : index
    %c2 = arith.constant 2 : index
    %c0_27 = arith.constant 0 : index
    %30 = vector.load %arg8[%c0_26, %c2, %c0_27] : memref<10x10x32xbf16, #tpu.memory_space<vmem>>, vector<8x8x32xbf16>
    %31 = vector.shape_cast %30 : vector<8x8x32xbf16> to vector<64x32xbf16>
    %c0_28 = arith.constant 0 : index
    %c2_29 = arith.constant 2 : index
    %c0_30 = arith.constant 0 : index
    %c0_31 = arith.constant 0 : index
    %32 = vector.load %arg4[%c0_28, %c2_29, %c0_30, %c0_31] : memref<3x3x32x32xbf16, #tpu.memory_space<vmem>>, vector<1x1x32x32xbf16>
    %33 = vector.shape_cast %32 : vector<1x1x32x32xbf16> to vector<32x32xbf16>
    %cst_32 = arith.constant dense<0.000000e+00> : vector<64x32xf32>
    %34 = tpu.matmul %31, %33, %cst_32 {dimension_numbers = #tpu.dot_dimension_numbers<[1], [0], [0], [1], [0, 0, 1, 1], [], []>} : vector<64x32xbf16>, vector<32x32xbf16>, vector<64x32xf32> -> vector<64x32xf32>
    %35 = arith.addf %29, %34 : vector<64x32xf32>
    %c1_33 = arith.constant 1 : index
    %c0_34 = arith.constant 0 : index
    %c0_35 = arith.constant 0 : index
    %36 = vector.load %arg8[%c1_33, %c0_34, %c0_35] : memref<10x10x32xbf16, #tpu.memory_space<vmem>>, vector<8x8x32xbf16>
    %37 = vector.shape_cast %36 : vector<8x8x32xbf16> to vector<64x32xbf16>
    %c1_36 = arith.constant 1 : index
    %c0_37 = arith.constant 0 : index
    %c0_38 = arith.constant 0 : index
    %c0_39 = arith.constant 0 : index
    %38 = vector.load %arg4[%c1_36, %c0_37, %c0_38, %c0_39] : memref<3x3x32x32xbf16, #tpu.memory_space<vmem>>, vector<1x1x32x32xbf16>
    %39 = vector.shape_cast %38 : vector<1x1x32x32xbf16> to vector<32x32xbf16>
    %cst_40 = arith.constant dense<0.000000e+00> : vector<64x32xf32>
    %40 = tpu.matmul %37, %39, %cst_40 {dimension_numbers = #tpu.dot_dimension_numbers<[1], [0], [0], [1], [0, 0, 1, 1], [], []>} : vector<64x32xbf16>, vector<32x32xbf16>, vector<64x32xf32> -> vector<64x32xf32>
    %41 = arith.addf %35, %40 : vector<64x32xf32>
    %c1_41 = arith.constant 1 : index
    %c1_42 = arith.constant 1 : index
    %c0_43 = arith.constant 0 : index
    %42 = vector.load %arg8[%c1_41, %c1_42, %c0_43] : memref<10x10x32xbf16, #tpu.memory_space<vmem>>, vector<8x8x32xbf16>
    %43 = vector.shape_cast %42 : vector<8x8x32xbf16> to vector<64x32xbf16>
    %c1_44 = arith.constant 1 : index
    %c1_45 = arith.constant 1 : index
    %c0_46 = arith.constant 0 : index
    %c0_47 = arith.constant 0 : index
    %44 = vector.load %arg4[%c1_44, %c1_45, %c0_46, %c0_47] : memref<3x3x32x32xbf16, #tpu.memory_space<vmem>>, vector<1x1x32x32xbf16>
    %45 = vector.shape_cast %44 : vector<1x1x32x32xbf16> to vector<32x32xbf16>
    %cst_48 = arith.constant dense<0.000000e+00> : vector<64x32xf32>
    %46 = tpu.matmul %43, %45, %cst_48 {dimension_numbers = #tpu.dot_dimension_numbers<[1], [0], [0], [1], [0, 0, 1, 1], [], []>} : vector<64x32xbf16>, vector<32x32xbf16>, vector<64x32xf32> -> vector<64x32xf32>
    %47 = arith.addf %41, %46 : vector<64x32xf32>
    %c1_49 = arith.constant 1 : index
    %c2_50 = arith.constant 2 : index
    %c0_51 = arith.constant 0 : index
    %48 = vector.load %arg8[%c1_49, %c2_50, %c0_51] : memref<10x10x32xbf16, #tpu.memory_space<vmem>>, vector<8x8x32xbf16>
    %49 = vector.shape_cast %48 : vector<8x8x32xbf16> to vector<64x32xbf16>
    %c1_52 = arith.constant 1 : index
    %c2_53 = arith.constant 2 : index
    %c0_54 = arith.constant 0 : index
    %c0_55 = arith.constant 0 : index
    %50 = vector.load %arg4[%c1_52, %c2_53, %c0_54, %c0_55] : memref<3x3x32x32xbf16, #tpu.memory_space<vmem>>, vector<1x1x32x32xbf16>
    %51 = vector.shape_cast %50 : vector<1x1x32x32xbf16> to vector<32x32xbf16>
    %cst_56 = arith.constant dense<0.000000e+00> : vector<64x32xf32>
    %52 = tpu.matmul %49, %51, %cst_56 {dimension_numbers = #tpu.dot_dimension_numbers<[1], [0], [0], [1], [0, 0, 1, 1], [], []>} : vector<64x32xbf16>, vector<32x32xbf16>, vector<64x32xf32> -> vector<64x32xf32>
    %53 = arith.addf %47, %52 : vector<64x32xf32>
    %c2_57 = arith.constant 2 : index
    %c0_58 = arith.constant 0 : index
    %c0_59 = arith.constant 0 : index
    %54 = vector.load %arg8[%c2_57, %c0_58, %c0_59] : memref<10x10x32xbf16, #tpu.memory_space<vmem>>, vector<8x8x32xbf16>
    %55 = vector.shape_cast %54 : vector<8x8x32xbf16> to vector<64x32xbf16>
    %c2_60 = arith.constant 2 : index
    %c0_61 = arith.constant 0 : index
    %c0_62 = arith.constant 0 : index
    %c0_63 = arith.constant 0 : index
    %56 = vector.load %arg4[%c2_60, %c0_61, %c0_62, %c0_63] : memref<3x3x32x32xbf16, #tpu.memory_space<vmem>>, vector<1x1x32x32xbf16>
    %57 = vector.shape_cast %56 : vector<1x1x32x32xbf16> to vector<32x32xbf16>
    %cst_64 = arith.constant dense<0.000000e+00> : vector<64x32xf32>
    %58 = tpu.matmul %55, %57, %cst_64 {dimension_numbers = #tpu.dot_dimension_numbers<[1], [0], [0], [1], [0, 0, 1, 1], [], []>} : vector<64x32xbf16>, vector<32x32xbf16>, vector<64x32xf32> -> vector<64x32xf32>
    %59 = arith.addf %53, %58 : vector<64x32xf32>
    %c2_65 = arith.constant 2 : index
    %c1_66 = arith.constant 1 : index
    %c0_67 = arith.constant 0 : index
    %60 = vector.load %arg8[%c2_65, %c1_66, %c0_67] : memref<10x10x32xbf16, #tpu.memory_space<vmem>>, vector<8x8x32xbf16>
    %61 = vector.shape_cast %60 : vector<8x8x32xbf16> to vector<64x32xbf16>
    %c2_68 = arith.constant 2 : index
    %c1_69 = arith.constant 1 : index
    %c0_70 = arith.constant 0 : index
    %c0_71 = arith.constant 0 : index
    %62 = vector.load %arg4[%c2_68, %c1_69, %c0_70, %c0_71] : memref<3x3x32x32xbf16, #tpu.memory_space<vmem>>, vector<1x1x32x32xbf16>
    %63 = vector.shape_cast %62 : vector<1x1x32x32xbf16> to vector<32x32xbf16>
    %cst_72 = arith.constant dense<0.000000e+00> : vector<64x32xf32>
    %64 = tpu.matmul %61, %63, %cst_72 {dimension_numbers = #tpu.dot_dimension_numbers<[1], [0], [0], [1], [0, 0, 1, 1], [], []>} : vector<64x32xbf16>, vector<32x32xbf16>, vector<64x32xf32> -> vector<64x32xf32>
    %65 = arith.addf %59, %64 : vector<64x32xf32>
    %c2_73 = arith.constant 2 : index
    %c2_74 = arith.constant 2 : index
    %c0_75 = arith.constant 0 : index
    %66 = vector.load %arg8[%c2_73, %c2_74, %c0_75] : memref<10x10x32xbf16, #tpu.memory_space<vmem>>, vector<8x8x32xbf16>
    %67 = vector.shape_cast %66 : vector<8x8x32xbf16> to vector<64x32xbf16>
    %c2_76 = arith.constant 2 : index
    %c2_77 = arith.constant 2 : index
    %c0_78 = arith.constant 0 : index
    %c0_79 = arith.constant 0 : index
    %68 = vector.load %arg4[%c2_76, %c2_77, %c0_78, %c0_79] : memref<3x3x32x32xbf16, #tpu.memory_space<vmem>>, vector<1x1x32x32xbf16>
    %69 = vector.shape_cast %68 : vector<1x1x32x32xbf16> to vector<32x32xbf16>
    %cst_80 = arith.constant dense<0.000000e+00> : vector<64x32xf32>
    %70 = tpu.matmul %67, %69, %cst_80 {dimension_numbers = #tpu.dot_dimension_numbers<[1], [0], [0], [1], [0, 0, 1, 1], [], []>} : vector<64x32xbf16>, vector<32x32xbf16>, vector<64x32xf32> -> vector<64x32xf32>
    %71 = arith.addf %65, %70 : vector<64x32xf32>
    %72 = arith.truncf %71 : vector<64x32xf32> to vector<64x32xbf16>
    %c0_81 = arith.constant 0 : index
    %c0_82 = arith.constant 0 : index
    %c0_83 = arith.constant 0 : index
    %73 = vector.load %arg5[%c0_81, %c0_82, %c0_83] : memref<1x64x32xbf16, #tpu.memory_space<vmem>>, vector<1x64x32xbf16>
    %74 = vector.shape_cast %73 : vector<1x64x32xbf16> to vector<64x32xbf16>
    %75 = vector.shape_cast %72 : vector<64x32xbf16> to vector<1x64x32xbf16>
    tpu.vector_store %arg5[%c0_81, %c0_82, %c0_83], %75 {strides = array<i32>} : memref<1x64x32xbf16, #tpu.memory_space<vmem>>, vector<1x64x32xbf16>,
    %cst_84 = arith.constant dense<0.000000e+00> : vector<32xf32>
    %76 = vector.multi_reduction <add>, %71, %cst_84 [0] : vector<64x32xf32> to vector<32xf32>
    %77 = vector.shape_cast %76 : vector<32xf32> to vector<1x32xf32>
    %cst_85 = arith.constant 6.400000e+01 : f32
    %78 = vector.broadcast %cst_85 : f32 to vector<1x32xf32>
    %79 = arith.divf %77, %78 : vector<1x32xf32>
    %c0_86 = arith.constant 0 : index
    %c0_87 = arith.constant 0 : index
    %c0_88 = arith.constant 0 : index
    %80 = vector.load %arg6[%c0_86, %c0_87, %c0_88] : memref<1x1x32xf32, #tpu.memory_space<vmem>>, vector<1x1x32xf32>
    %81 = vector.shape_cast %80 : vector<1x1x32xf32> to vector<1x32xf32>
    %82 = vector.shape_cast %79 : vector<1x32xf32> to vector<1x1x32xf32>
    tpu.vector_store %arg6[%c0_86, %c0_87, %c0_88], %82 {strides = array<i32>} : memref<1x1x32xf32, #tpu.memory_space<vmem>>, vector<1x1x32xf32>,
    %cst_89 = arith.constant dense<0.000000e+00> : vector<32xf32>
    %83 = vector.multi_reduction <add>, %71, %cst_89 [0] : vector<64x32xf32> to vector<32xf32>
    %84 = vector.shape_cast %83 : vector<32xf32> to vector<1x32xf32>
    %85 = arith.mulf %71, %71 : vector<64x32xf32>
    %cst_90 = arith.constant dense<0.000000e+00> : vector<32xf32>
    %86 = vector.multi_reduction <add>, %85, %cst_90 [0] : vector<64x32xf32> to vector<32xf32>
    %87 = vector.shape_cast %86 : vector<32xf32> to vector<1x32xf32>
    %88 = tpu.concatenate %84, %87 in 0 : vector<1x32xf32>, vector<1x32xf32> -> vector<2x32xf32>
    %89 = arith.extui %0 : i1 to i32
    %c0_i32_91 = arith.constant 0 : i32
    %90 = arith.cmpi ne, %89, %c0_i32_91 : i32
    scf.if %90 {
      %c0_93 = arith.constant 0 : index
      %c0_94 = arith.constant 0 : index
      %94 = vector.load %arg7[%c0_93, %c0_94] : memref<2x32xf32, #tpu.memory_space<vmem>>, vector<2x32xf32>
      tpu.vector_store %arg7[%c0_93, %c0_94], %88 {strides = array<i32>} : memref<2x32xf32, #tpu.memory_space<vmem>>, vector<2x32xf32>,
    } else {
    }
    %true = arith.constant true
    %91 = arith.xori %0, %true : i1
    %92 = arith.extui %91 : i1 to i32
    %c0_i32_92 = arith.constant 0 : i32
    %93 = arith.cmpi ne, %92, %c0_i32_92 : i32
    scf.if %93 {
      %c0_93 = arith.constant 0 : index
      %c0_94 = arith.constant 0 : index
      %94 = vector.load %arg7[%c0_93, %c0_94] : memref<2x32xf32, #tpu.memory_space<vmem>>, vector<2x32xf32>
      %95 = arith.addf %94, %88 : vector<2x32xf32>
      %c0_95 = arith.constant 0 : index
      %c0_96 = arith.constant 0 : index
      %96 = vector.load %arg7[%c0_95, %c0_96] : memref<2x32xf32, #tpu.memory_space<vmem>>, vector<2x32xf32>
      tpu.vector_store %arg7[%c0_95, %c0_96], %95 {strides = array<i32>} : memref<2x32xf32, #tpu.memory_space<vmem>>, vector<2x32xf32>,
    } else {
    }
    return
  }
  func.func @transform_0(%arg0: i32) -> (i32, i32, i32) {
    %c0_i32 = arith.constant 0 : i32
    %c0_i32_0 = arith.constant 0 : i32
    %c0_i32_1 = arith.constant 0 : i32
    return %arg0, %c0_i32, %c0_i32_0 : i32, i32, i32
  }
  func.func @transform_1(%arg0: i32) -> (i32, i32) {
    %c0_i32 = arith.constant 0 : i32
    %c0_i32_0 = arith.constant 0 : i32
    %c0_i32_1 = arith.constant 0 : i32
    return %c0_i32, %c0_i32_0 : i32, i32
  }
  func.func @transform_2(%arg0: i32) -> (i32, i32) {
    %c0_i32 = arith.constant 0 : i32
    %c0_i32_0 = arith.constant 0 : i32
    %c0_i32_1 = arith.constant 0 : i32
    return %c0_i32, %c0_i32_0 : i32, i32
  }
  func.func @transform_3(%arg0: i32) -> (i32, i32, i32, i32) {
    %c0_i32 = arith.constant 0 : i32
    %c0_i32_0 = arith.constant 0 : i32
    %c0_i32_1 = arith.constant 0 : i32
    %c0_i32_2 = arith.constant 0 : i32
    %c0_i32_3 = arith.constant 0 : i32
    return %c0_i32, %c0_i32_0, %c0_i32_1, %c0_i32_2 : i32, i32, i32, i32
  }
  func.func @transform_4(%arg0: i32) -> (i32, i32, i32) {
    %c0_i32 = arith.constant 0 : i32
    %c0_i32_0 = arith.constant 0 : i32
    %c0_i32_1 = arith.constant 0 : i32
    return %arg0, %c0_i32, %c0_i32_0 : i32, i32, i32
  }
  func.func @transform_5(%arg0: i32) -> (i32, i32, i32) {
    %c0_i32 = arith.constant 0 : i32
    %c0_i32_0 = arith.constant 0 : i32
    %c0_i32_1 = arith.constant 0 : i32
    return %arg0, %c0_i32, %c0_i32_0 : i32, i32, i32
  }
  func.func @transform_6(%arg0: i32) -> (i32, i32) {
    %c0_i32 = arith.constant 0 : i32
    %c0_i32_0 = arith.constant 0 : i32
    %c0_i32_1 = arith.constant 0 : i32
    return %c0_i32, %c0_i32_0 : i32, i32
  }
}

module attributes {stable_mosaic.version = 11 : i64} {
  func.func @kernel(%arg0: i32, %arg1: memref<1x4x9x9x32xbf16, #tpu.memory_space<vmem>>, %arg2: memref<3x3x32x32xbf16, #tpu.memory_space<vmem>>, %arg3: memref<32x32xbf16, #tpu.memory_space<vmem>>, %arg4: memref<1x64x32xbf16, #tpu.memory_space<vmem>>, %arg5: memref<1x64x32xbf16, #tpu.memory_space<vmem>>, %arg6: memref<2x32xf32, #tpu.memory_space<vmem>>, %arg7: memref<2x32xf32, #tpu.memory_space<vmem>>) attributes {dimension_semantics = [#tpu.dimension_semantics<arbitrary>], iteration_bounds = array<i64: 2>, scalar_prefetch = 0 : i64, scratch_operands = 0 : i64, tpu.core_type = #tpu.core_type<tc>, window_params = [{transform_indices = @transform_0, window_bounds = array<i64: 1, 4, 9, 9, 32>}, {pipeline_mode = #tpu.pipeline_mode<synchronous>, transform_indices = @transform_1, window_bounds = array<i64: 3, 3, 32, 32>}, {pipeline_mode = #tpu.pipeline_mode<synchronous>, transform_indices = @transform_2, window_bounds = array<i64: 32, 32>}, {transform_indices = @transform_3, window_bounds = array<i64: 1, 64, 32>}, {transform_indices = @transform_4, window_bounds = array<i64: 1, 64, 32>}, {pipeline_mode = #tpu.pipeline_mode<synchronous>, transform_indices = @transform_5, window_bounds = array<i64: 2, 32>}, {pipeline_mode = #tpu.pipeline_mode<synchronous>, transform_indices = @transform_6, window_bounds = array<i64: 2, 32>}]} {
    %c0_i32 = arith.constant 0 : i32
    %0 = arith.cmpi eq, %arg0, %c0_i32 : i32
    %cst = arith.constant 0.000000e+00 : f32
    %1 = vector.broadcast %cst : f32 to vector<64x32xf32>
    %c0 = arith.constant 0 : index
    %c0_0 = arith.constant 0 : index
    %c0_1 = arith.constant 0 : index
    %c0_2 = arith.constant 0 : index
    %c0_3 = arith.constant 0 : index
    %2 = vector.load %arg1[%c0, %c0_0, %c0_1, %c0_2, %c0_3] : memref<1x4x9x9x32xbf16, #tpu.memory_space<vmem>>, vector<1x1x8x8x32xbf16>
    %3 = vector.shape_cast %2 : vector<1x1x8x8x32xbf16> to vector<8x8x32xbf16>
    %4 = vector.shape_cast %3 : vector<8x8x32xbf16> to vector<64x32xbf16>
    %c0_4 = arith.constant 0 : index
    %c0_5 = arith.constant 0 : index
    %c0_6 = arith.constant 0 : index
    %c0_7 = arith.constant 0 : index
    %5 = vector.load %arg2[%c0_4, %c0_5, %c0_6, %c0_7] : memref<3x3x32x32xbf16, #tpu.memory_space<vmem>>, vector<1x1x32x32xbf16>
    %6 = vector.shape_cast %5 : vector<1x1x32x32xbf16> to vector<32x32xbf16>
    %cst_8 = arith.constant dense<0.000000e+00> : vector<64x32xf32>
    %7 = tpu.matmul %4, %6, %cst_8 {dimension_numbers = #tpu.dot_dimension_numbers<[1], [0], [0], [1], [0, 0, 1, 1], [], []>} : vector<64x32xbf16>, vector<32x32xbf16>, vector<64x32xf32> -> vector<64x32xf32>
    %8 = arith.addf %1, %7 : vector<64x32xf32>
    %c0_9 = arith.constant 0 : index
    %c1 = arith.constant 1 : index
    %c0_10 = arith.constant 0 : index
    %c0_11 = arith.constant 0 : index
    %c0_12 = arith.constant 0 : index
    %9 = vector.load %arg1[%c0_9, %c1, %c0_10, %c0_11, %c0_12] : memref<1x4x9x9x32xbf16, #tpu.memory_space<vmem>>, vector<1x1x8x8x32xbf16>
    %10 = vector.shape_cast %9 : vector<1x1x8x8x32xbf16> to vector<8x8x32xbf16>
    %11 = vector.shape_cast %10 : vector<8x8x32xbf16> to vector<64x32xbf16>
    %c0_13 = arith.constant 0 : index
    %c1_14 = arith.constant 1 : index
    %c0_15 = arith.constant 0 : index
    %c0_16 = arith.constant 0 : index
    %12 = vector.load %arg2[%c0_13, %c1_14, %c0_15, %c0_16] : memref<3x3x32x32xbf16, #tpu.memory_space<vmem>>, vector<1x1x32x32xbf16>
    %13 = vector.shape_cast %12 : vector<1x1x32x32xbf16> to vector<32x32xbf16>
    %cst_17 = arith.constant dense<0.000000e+00> : vector<64x32xf32>
    %14 = tpu.matmul %11, %13, %cst_17 {dimension_numbers = #tpu.dot_dimension_numbers<[1], [0], [0], [1], [0, 0, 1, 1], [], []>} : vector<64x32xbf16>, vector<32x32xbf16>, vector<64x32xf32> -> vector<64x32xf32>
    %15 = arith.addf %8, %14 : vector<64x32xf32>
    %c0_18 = arith.constant 0 : index
    %c0_19 = arith.constant 0 : index
    %c0_20 = arith.constant 0 : index
    %c1_21 = arith.constant 1 : index
    %c0_22 = arith.constant 0 : index
    %16 = vector.load %arg1[%c0_18, %c0_19, %c0_20, %c1_21, %c0_22] : memref<1x4x9x9x32xbf16, #tpu.memory_space<vmem>>, vector<1x1x8x8x32xbf16>
    %17 = vector.shape_cast %16 : vector<1x1x8x8x32xbf16> to vector<8x8x32xbf16>
    %18 = vector.shape_cast %17 : vector<8x8x32xbf16> to vector<64x32xbf16>
    %c0_23 = arith.constant 0 : index
    %c2 = arith.constant 2 : index
    %c0_24 = arith.constant 0 : index
    %c0_25 = arith.constant 0 : index
    %19 = vector.load %arg2[%c0_23, %c2, %c0_24, %c0_25] : memref<3x3x32x32xbf16, #tpu.memory_space<vmem>>, vector<1x1x32x32xbf16>
    %20 = vector.shape_cast %19 : vector<1x1x32x32xbf16> to vector<32x32xbf16>
    %cst_26 = arith.constant dense<0.000000e+00> : vector<64x32xf32>
    %21 = tpu.matmul %18, %20, %cst_26 {dimension_numbers = #tpu.dot_dimension_numbers<[1], [0], [0], [1], [0, 0, 1, 1], [], []>} : vector<64x32xbf16>, vector<32x32xbf16>, vector<64x32xf32> -> vector<64x32xf32>
    %22 = arith.addf %15, %21 : vector<64x32xf32>
    %c0_27 = arith.constant 0 : index
    %c2_28 = arith.constant 2 : index
    %c0_29 = arith.constant 0 : index
    %c0_30 = arith.constant 0 : index
    %c0_31 = arith.constant 0 : index
    %23 = vector.load %arg1[%c0_27, %c2_28, %c0_29, %c0_30, %c0_31] : memref<1x4x9x9x32xbf16, #tpu.memory_space<vmem>>, vector<1x1x8x8x32xbf16>
    %24 = vector.shape_cast %23 : vector<1x1x8x8x32xbf16> to vector<8x8x32xbf16>
    %25 = vector.shape_cast %24 : vector<8x8x32xbf16> to vector<64x32xbf16>
    %c1_32 = arith.constant 1 : index
    %c0_33 = arith.constant 0 : index
    %c0_34 = arith.constant 0 : index
    %c0_35 = arith.constant 0 : index
    %26 = vector.load %arg2[%c1_32, %c0_33, %c0_34, %c0_35] : memref<3x3x32x32xbf16, #tpu.memory_space<vmem>>, vector<1x1x32x32xbf16>
    %27 = vector.shape_cast %26 : vector<1x1x32x32xbf16> to vector<32x32xbf16>
    %cst_36 = arith.constant dense<0.000000e+00> : vector<64x32xf32>
    %28 = tpu.matmul %25, %27, %cst_36 {dimension_numbers = #tpu.dot_dimension_numbers<[1], [0], [0], [1], [0, 0, 1, 1], [], []>} : vector<64x32xbf16>, vector<32x32xbf16>, vector<64x32xf32> -> vector<64x32xf32>
    %29 = arith.addf %22, %28 : vector<64x32xf32>
    %c0_37 = arith.constant 0 : index
    %c3 = arith.constant 3 : index
    %c0_38 = arith.constant 0 : index
    %c0_39 = arith.constant 0 : index
    %c0_40 = arith.constant 0 : index
    %30 = vector.load %arg1[%c0_37, %c3, %c0_38, %c0_39, %c0_40] : memref<1x4x9x9x32xbf16, #tpu.memory_space<vmem>>, vector<1x1x8x8x32xbf16>
    %31 = vector.shape_cast %30 : vector<1x1x8x8x32xbf16> to vector<8x8x32xbf16>
    %32 = vector.shape_cast %31 : vector<8x8x32xbf16> to vector<64x32xbf16>
    %c1_41 = arith.constant 1 : index
    %c1_42 = arith.constant 1 : index
    %c0_43 = arith.constant 0 : index
    %c0_44 = arith.constant 0 : index
    %33 = vector.load %arg2[%c1_41, %c1_42, %c0_43, %c0_44] : memref<3x3x32x32xbf16, #tpu.memory_space<vmem>>, vector<1x1x32x32xbf16>
    %34 = vector.shape_cast %33 : vector<1x1x32x32xbf16> to vector<32x32xbf16>
    %cst_45 = arith.constant dense<0.000000e+00> : vector<64x32xf32>
    %35 = tpu.matmul %32, %34, %cst_45 {dimension_numbers = #tpu.dot_dimension_numbers<[1], [0], [0], [1], [0, 0, 1, 1], [], []>} : vector<64x32xbf16>, vector<32x32xbf16>, vector<64x32xf32> -> vector<64x32xf32>
    %36 = arith.addf %29, %35 : vector<64x32xf32>
    %c0_46 = arith.constant 0 : index
    %c0_47 = arith.constant 0 : index
    %37 = vector.load %arg3[%c0_46, %c0_47] : memref<32x32xbf16, #tpu.memory_space<vmem>>, vector<32x32xbf16>
    %cst_48 = arith.constant dense<0.000000e+00> : vector<64x32xf32>
    %38 = tpu.matmul %32, %37, %cst_48 {dimension_numbers = #tpu.dot_dimension_numbers<[1], [0], [0], [1], [0, 0, 1, 1], [], []>} : vector<64x32xbf16>, vector<32x32xbf16>, vector<64x32xf32> -> vector<64x32xf32>
    %c0_49 = arith.constant 0 : index
    %c2_50 = arith.constant 2 : index
    %c0_51 = arith.constant 0 : index
    %c1_52 = arith.constant 1 : index
    %c0_53 = arith.constant 0 : index
    %39 = vector.load %arg1[%c0_49, %c2_50, %c0_51, %c1_52, %c0_53] : memref<1x4x9x9x32xbf16, #tpu.memory_space<vmem>>, vector<1x1x8x8x32xbf16>
    %40 = vector.shape_cast %39 : vector<1x1x8x8x32xbf16> to vector<8x8x32xbf16>
    %41 = vector.shape_cast %40 : vector<8x8x32xbf16> to vector<64x32xbf16>
    %c1_54 = arith.constant 1 : index
    %c2_55 = arith.constant 2 : index
    %c0_56 = arith.constant 0 : index
    %c0_57 = arith.constant 0 : index
    %42 = vector.load %arg2[%c1_54, %c2_55, %c0_56, %c0_57] : memref<3x3x32x32xbf16, #tpu.memory_space<vmem>>, vector<1x1x32x32xbf16>
    %43 = vector.shape_cast %42 : vector<1x1x32x32xbf16> to vector<32x32xbf16>
    %cst_58 = arith.constant dense<0.000000e+00> : vector<64x32xf32>
    %44 = tpu.matmul %41, %43, %cst_58 {dimension_numbers = #tpu.dot_dimension_numbers<[1], [0], [0], [1], [0, 0, 1, 1], [], []>} : vector<64x32xbf16>, vector<32x32xbf16>, vector<64x32xf32> -> vector<64x32xf32>
    %45 = arith.addf %36, %44 : vector<64x32xf32>
    %c0_59 = arith.constant 0 : index
    %c0_60 = arith.constant 0 : index
    %c1_61 = arith.constant 1 : index
    %c0_62 = arith.constant 0 : index
    %c0_63 = arith.constant 0 : index
    %46 = vector.load %arg1[%c0_59, %c0_60, %c1_61, %c0_62, %c0_63] : memref<1x4x9x9x32xbf16, #tpu.memory_space<vmem>>, vector<1x1x8x8x32xbf16>
    %47 = vector.shape_cast %46 : vector<1x1x8x8x32xbf16> to vector<8x8x32xbf16>
    %48 = vector.shape_cast %47 : vector<8x8x32xbf16> to vector<64x32xbf16>
    %c2_64 = arith.constant 2 : index
    %c0_65 = arith.constant 0 : index
    %c0_66 = arith.constant 0 : index
    %c0_67 = arith.constant 0 : index
    %49 = vector.load %arg2[%c2_64, %c0_65, %c0_66, %c0_67] : memref<3x3x32x32xbf16, #tpu.memory_space<vmem>>, vector<1x1x32x32xbf16>
    %50 = vector.shape_cast %49 : vector<1x1x32x32xbf16> to vector<32x32xbf16>
    %cst_68 = arith.constant dense<0.000000e+00> : vector<64x32xf32>
    %51 = tpu.matmul %48, %50, %cst_68 {dimension_numbers = #tpu.dot_dimension_numbers<[1], [0], [0], [1], [0, 0, 1, 1], [], []>} : vector<64x32xbf16>, vector<32x32xbf16>, vector<64x32xf32> -> vector<64x32xf32>
    %52 = arith.addf %45, %51 : vector<64x32xf32>
    %c0_69 = arith.constant 0 : index
    %c1_70 = arith.constant 1 : index
    %c1_71 = arith.constant 1 : index
    %c0_72 = arith.constant 0 : index
    %c0_73 = arith.constant 0 : index
    %53 = vector.load %arg1[%c0_69, %c1_70, %c1_71, %c0_72, %c0_73] : memref<1x4x9x9x32xbf16, #tpu.memory_space<vmem>>, vector<1x1x8x8x32xbf16>
    %54 = vector.shape_cast %53 : vector<1x1x8x8x32xbf16> to vector<8x8x32xbf16>
    %55 = vector.shape_cast %54 : vector<8x8x32xbf16> to vector<64x32xbf16>
    %c2_74 = arith.constant 2 : index
    %c1_75 = arith.constant 1 : index
    %c0_76 = arith.constant 0 : index
    %c0_77 = arith.constant 0 : index
    %56 = vector.load %arg2[%c2_74, %c1_75, %c0_76, %c0_77] : memref<3x3x32x32xbf16, #tpu.memory_space<vmem>>, vector<1x1x32x32xbf16>
    %57 = vector.shape_cast %56 : vector<1x1x32x32xbf16> to vector<32x32xbf16>
    %cst_78 = arith.constant dense<0.000000e+00> : vector<64x32xf32>
    %58 = tpu.matmul %55, %57, %cst_78 {dimension_numbers = #tpu.dot_dimension_numbers<[1], [0], [0], [1], [0, 0, 1, 1], [], []>} : vector<64x32xbf16>, vector<32x32xbf16>, vector<64x32xf32> -> vector<64x32xf32>
    %59 = arith.addf %52, %58 : vector<64x32xf32>
    %c0_79 = arith.constant 0 : index
    %c0_80 = arith.constant 0 : index
    %c1_81 = arith.constant 1 : index
    %c1_82 = arith.constant 1 : index
    %c0_83 = arith.constant 0 : index
    %60 = vector.load %arg1[%c0_79, %c0_80, %c1_81, %c1_82, %c0_83] : memref<1x4x9x9x32xbf16, #tpu.memory_space<vmem>>, vector<1x1x8x8x32xbf16>
    %61 = vector.shape_cast %60 : vector<1x1x8x8x32xbf16> to vector<8x8x32xbf16>
    %62 = vector.shape_cast %61 : vector<8x8x32xbf16> to vector<64x32xbf16>
    %c2_84 = arith.constant 2 : index
    %c2_85 = arith.constant 2 : index
    %c0_86 = arith.constant 0 : index
    %c0_87 = arith.constant 0 : index
    %63 = vector.load %arg2[%c2_84, %c2_85, %c0_86, %c0_87] : memref<3x3x32x32xbf16, #tpu.memory_space<vmem>>, vector<1x1x32x32xbf16>
    %64 = vector.shape_cast %63 : vector<1x1x32x32xbf16> to vector<32x32xbf16>
    %cst_88 = arith.constant dense<0.000000e+00> : vector<64x32xf32>
    %65 = tpu.matmul %62, %64, %cst_88 {dimension_numbers = #tpu.dot_dimension_numbers<[1], [0], [0], [1], [0, 0, 1, 1], [], []>} : vector<64x32xbf16>, vector<32x32xbf16>, vector<64x32xf32> -> vector<64x32xf32>
    %66 = arith.addf %59, %65 : vector<64x32xf32>
    %67 = arith.truncf %66 : vector<64x32xf32> to vector<64x32xbf16>
    %c0_89 = arith.constant 0 : index
    %c0_90 = arith.constant 0 : index
    %c0_91 = arith.constant 0 : index
    %68 = vector.load %arg4[%c0_89, %c0_90, %c0_91] : memref<1x64x32xbf16, #tpu.memory_space<vmem>>, vector<1x64x32xbf16>
    %69 = vector.shape_cast %68 : vector<1x64x32xbf16> to vector<64x32xbf16>
    %70 = vector.shape_cast %67 : vector<64x32xbf16> to vector<1x64x32xbf16>
    tpu.vector_store %arg4[%c0_89, %c0_90, %c0_91], %70 {strides = array<i32>} : memref<1x64x32xbf16, #tpu.memory_space<vmem>>, vector<1x64x32xbf16>,
    %cst_92 = arith.constant dense<0.000000e+00> : vector<32xf32>
    %71 = vector.multi_reduction <add>, %66, %cst_92 [0] : vector<64x32xf32> to vector<32xf32>
    %72 = vector.shape_cast %71 : vector<32xf32> to vector<1x32xf32>
    %73 = arith.mulf %66, %66 : vector<64x32xf32>
    %cst_93 = arith.constant dense<0.000000e+00> : vector<32xf32>
    %74 = vector.multi_reduction <add>, %73, %cst_93 [0] : vector<64x32xf32> to vector<32xf32>
    %75 = vector.shape_cast %74 : vector<32xf32> to vector<1x32xf32>
    %76 = tpu.concatenate %72, %75 in 0 : vector<1x32xf32>, vector<1x32xf32> -> vector<2x32xf32>
    %77 = arith.extui %0 : i1 to i32
    %c0_i32_94 = arith.constant 0 : i32
    %78 = arith.cmpi ne, %77, %c0_i32_94 : i32
    scf.if %78 {
      %c0_104 = arith.constant 0 : index
      %c0_105 = arith.constant 0 : index
      %97 = vector.load %arg6[%c0_104, %c0_105] : memref<2x32xf32, #tpu.memory_space<vmem>>, vector<2x32xf32>
      tpu.vector_store %arg6[%c0_104, %c0_105], %76 {strides = array<i32>} : memref<2x32xf32, #tpu.memory_space<vmem>>, vector<2x32xf32>,
    } else {
    }
    %true = arith.constant true
    %79 = arith.xori %0, %true : i1
    %80 = arith.extui %79 : i1 to i32
    %c0_i32_95 = arith.constant 0 : i32
    %81 = arith.cmpi ne, %80, %c0_i32_95 : i32
    scf.if %81 {
      %c0_104 = arith.constant 0 : index
      %c0_105 = arith.constant 0 : index
      %97 = vector.load %arg6[%c0_104, %c0_105] : memref<2x32xf32, #tpu.memory_space<vmem>>, vector<2x32xf32>
      %98 = arith.addf %97, %76 : vector<2x32xf32>
      %c0_106 = arith.constant 0 : index
      %c0_107 = arith.constant 0 : index
      %99 = vector.load %arg6[%c0_106, %c0_107] : memref<2x32xf32, #tpu.memory_space<vmem>>, vector<2x32xf32>
      tpu.vector_store %arg6[%c0_106, %c0_107], %98 {strides = array<i32>} : memref<2x32xf32, #tpu.memory_space<vmem>>, vector<2x32xf32>,
    } else {
    }
    %82 = arith.truncf %38 : vector<64x32xf32> to vector<64x32xbf16>
    %c0_96 = arith.constant 0 : index
    %c0_97 = arith.constant 0 : index
    %c0_98 = arith.constant 0 : index
    %83 = vector.load %arg5[%c0_96, %c0_97, %c0_98] : memref<1x64x32xbf16, #tpu.memory_space<vmem>>, vector<1x64x32xbf16>
    %84 = vector.shape_cast %83 : vector<1x64x32xbf16> to vector<64x32xbf16>
    %85 = vector.shape_cast %82 : vector<64x32xbf16> to vector<1x64x32xbf16>
    tpu.vector_store %arg5[%c0_96, %c0_97, %c0_98], %85 {strides = array<i32>} : memref<1x64x32xbf16, #tpu.memory_space<vmem>>, vector<1x64x32xbf16>,
    %cst_99 = arith.constant dense<0.000000e+00> : vector<32xf32>
    %86 = vector.multi_reduction <add>, %38, %cst_99 [0] : vector<64x32xf32> to vector<32xf32>
    %87 = vector.shape_cast %86 : vector<32xf32> to vector<1x32xf32>
    %88 = arith.mulf %38, %38 : vector<64x32xf32>
    %cst_100 = arith.constant dense<0.000000e+00> : vector<32xf32>
    %89 = vector.multi_reduction <add>, %88, %cst_100 [0] : vector<64x32xf32> to vector<32xf32>
    %90 = vector.shape_cast %89 : vector<32xf32> to vector<1x32xf32>
    %91 = tpu.concatenate %87, %90 in 0 : vector<1x32xf32>, vector<1x32xf32> -> vector<2x32xf32>
    %92 = arith.extui %0 : i1 to i32
    %c0_i32_101 = arith.constant 0 : i32
    %93 = arith.cmpi ne, %92, %c0_i32_101 : i32
    scf.if %93 {
      %c0_104 = arith.constant 0 : index
      %c0_105 = arith.constant 0 : index
      %97 = vector.load %arg7[%c0_104, %c0_105] : memref<2x32xf32, #tpu.memory_space<vmem>>, vector<2x32xf32>
      tpu.vector_store %arg7[%c0_104, %c0_105], %91 {strides = array<i32>} : memref<2x32xf32, #tpu.memory_space<vmem>>, vector<2x32xf32>,
    } else {
    }
    %true_102 = arith.constant true
    %94 = arith.xori %0, %true_102 : i1
    %95 = arith.extui %94 : i1 to i32
    %c0_i32_103 = arith.constant 0 : i32
    %96 = arith.cmpi ne, %95, %c0_i32_103 : i32
    scf.if %96 {
      %c0_104 = arith.constant 0 : index
      %c0_105 = arith.constant 0 : index
      %97 = vector.load %arg7[%c0_104, %c0_105] : memref<2x32xf32, #tpu.memory_space<vmem>>, vector<2x32xf32>
      %98 = arith.addf %97, %91 : vector<2x32xf32>
      %c0_106 = arith.constant 0 : index
      %c0_107 = arith.constant 0 : index
      %99 = vector.load %arg7[%c0_106, %c0_107] : memref<2x32xf32, #tpu.memory_space<vmem>>, vector<2x32xf32>
      tpu.vector_store %arg7[%c0_106, %c0_107], %98 {strides = array<i32>} : memref<2x32xf32, #tpu.memory_space<vmem>>, vector<2x32xf32>,
    } else {
    }
    return
  }
  func.func @transform_0(%arg0: i32) -> (i32, i32, i32, i32, i32) {
    %c0_i32 = arith.constant 0 : i32
    %c0_i32_0 = arith.constant 0 : i32
    %c0_i32_1 = arith.constant 0 : i32
    %c0_i32_2 = arith.constant 0 : i32
    %c0_i32_3 = arith.constant 0 : i32
    return %arg0, %c0_i32, %c0_i32_0, %c0_i32_1, %c0_i32_2 : i32, i32, i32, i32, i32
  }
  func.func @transform_1(%arg0: i32) -> (i32, i32, i32, i32) {
    %c0_i32 = arith.constant 0 : i32
    %c0_i32_0 = arith.constant 0 : i32
    %c0_i32_1 = arith.constant 0 : i32
    %c0_i32_2 = arith.constant 0 : i32
    %c0_i32_3 = arith.constant 0 : i32
    return %c0_i32, %c0_i32_0, %c0_i32_1, %c0_i32_2 : i32, i32, i32, i32
  }
  func.func @transform_2(%arg0: i32) -> (i32, i32) {
    %c0_i32 = arith.constant 0 : i32
    %c0_i32_0 = arith.constant 0 : i32
    %c0_i32_1 = arith.constant 0 : i32
    return %c0_i32, %c0_i32_0 : i32, i32
  }
  func.func @transform_3(%arg0: i32) -> (i32, i32, i32) {
    %c0_i32 = arith.constant 0 : i32
    %c0_i32_0 = arith.constant 0 : i32
    %c0_i32_1 = arith.constant 0 : i32
    return %arg0, %c0_i32, %c0_i32_0 : i32, i32, i32
  }
  func.func @transform_4(%arg0: i32) -> (i32, i32, i32) {
    %c0_i32 = arith.constant 0 : i32
    %c0_i32_0 = arith.constant 0 : i32
    %c0_i32_1 = arith.constant 0 : i32
    return %arg0, %c0_i32, %c0_i32_0 : i32, i32, i32
  }
  func.func @transform_5(%arg0: i32) -> (i32, i32) {
    %c0_i32 = arith.constant 0 : i32
    %c0_i32_0 = arith.constant 0 : i32
    %c0_i32_1 = arith.constant 0 : i32
    return %c0_i32, %c0_i32_0 : i32, i32
  }
  func.func @transform_6(%arg0: i32) -> (i32, i32) {
    %c0_i32 = arith.constant 0 : i32
    %c0_i32_0 = arith.constant 0 : i32
    %c0_i32_1 = arith.constant 0 : i32
    return %c0_i32, %c0_i32_0 : i32, i32
  }
}

module attributes {stable_mosaic.version = 11 : i64} {
  func.func @_se_kernel(%arg0: memref<2x1x32xf32, #tpu.memory_space<vmem>>, %arg1: memref<1x32xf32, #tpu.memory_space<vmem>>, %arg2: memref<1x32xf32, #tpu.memory_space<vmem>>, %arg3: memref<32x2xf32, #tpu.memory_space<vmem>>, %arg4: memref<1x2xf32, #tpu.memory_space<vmem>>, %arg5: memref<2x32xf32, #tpu.memory_space<vmem>>, %arg6: memref<1x32xf32, #tpu.memory_space<vmem>>, %arg7: memref<2x32xf32, #tpu.memory_space<vmem>>) attributes {dimension_semantics = [], scalar_prefetch = 0 : i64, scratch_operands = 0 : i64, tpu.core_type = #tpu.core_type<tc>} {
    %c0 = arith.constant 0 : index
    %c0_0 = arith.constant 0 : index
    %c0_1 = arith.constant 0 : index
    %0 = vector.load %arg0[%c0, %c0_0, %c0_1] : memref<2x1x32xf32, #tpu.memory_space<vmem>>, vector<2x1x32xf32>
    %1 = vector.shape_cast %0 : vector<2x1x32xf32> to vector<2x32xf32>
    %c0_2 = arith.constant 0 : index
    %c0_3 = arith.constant 0 : index
    %2 = vector.load %arg1[%c0_2, %c0_3] : memref<1x32xf32, #tpu.memory_space<vmem>>, vector<1x32xf32>
    %3 = vector.broadcast %2 : vector<1x32xf32> to vector<2x32xf32>
    %4 = arith.mulf %1, %3 : vector<2x32xf32>
    %c0_4 = arith.constant 0 : index
    %c0_5 = arith.constant 0 : index
    %5 = vector.load %arg2[%c0_4, %c0_5] : memref<1x32xf32, #tpu.memory_space<vmem>>, vector<1x32xf32>
    %6 = vector.broadcast %5 : vector<1x32xf32> to vector<2x32xf32>
    %7 = arith.addf %4, %6 : vector<2x32xf32>
    %c0_6 = arith.constant 0 : index
    %c0_7 = arith.constant 0 : index
    %8 = vector.load %arg3[%c0_6, %c0_7] : memref<32x2xf32, #tpu.memory_space<vmem>>, vector<32x2xf32>
    %cst = arith.constant dense<0.000000e+00> : vector<2x2xf32>
    %9 = tpu.matmul %7, %8, %cst {dimension_numbers = #tpu.dot_dimension_numbers<[1], [0], [0], [1], [0, 0, 1, 1], [], []>} : vector<2x32xf32>, vector<32x2xf32>, vector<2x2xf32> -> vector<2x2xf32>
    %c0_8 = arith.constant 0 : index
    %c0_9 = arith.constant 0 : index
    %10 = vector.load %arg4[%c0_8, %c0_9] : memref<1x2xf32, #tpu.memory_space<vmem>>, vector<1x2xf32>
    %11 = vector.broadcast %10 : vector<1x2xf32> to vector<2x2xf32>
    %12 = arith.addf %9, %11 : vector<2x2xf32>
    %cst_10 = arith.constant 0.000000e+00 : f32
    %13 = vector.broadcast %cst_10 : f32 to vector<2x2xf32>
    %14 = arith.maximumf %12, %13 : vector<2x2xf32>
    %c0_11 = arith.constant 0 : index
    %c0_12 = arith.constant 0 : index
    %15 = vector.load %arg5[%c0_11, %c0_12] : memref<2x32xf32, #tpu.memory_space<vmem>>, vector<2x32xf32>
    %cst_13 = arith.constant dense<0.000000e+00> : vector<2x32xf32>
    %16 = tpu.matmul %14, %15, %cst_13 {dimension_numbers = #tpu.dot_dimension_numbers<[1], [0], [0], [1], [0, 0, 1, 1], [], []>} : vector<2x2xf32>, vector<2x32xf32>, vector<2x32xf32> -> vector<2x32xf32>
    %c0_14 = arith.constant 0 : index
    %c0_15 = arith.constant 0 : index
    %17 = vector.load %arg6[%c0_14, %c0_15] : memref<1x32xf32, #tpu.memory_space<vmem>>, vector<1x32xf32>
    %18 = vector.broadcast %17 : vector<1x32xf32> to vector<2x32xf32>
    %19 = arith.addf %16, %18 : vector<2x32xf32>
    %cst_16 = arith.constant 0.000000e+00 : f32
    %20 = vector.broadcast %cst_16 : f32 to vector<2x32xf32>
    %21 = arith.subf %20, %19 : vector<2x32xf32>
    %22 = math.exp %21 : vector<2x32xf32>
    %cst_17 = arith.constant 1.000000e+00 : f32
    %23 = vector.broadcast %cst_17 : f32 to vector<2x32xf32>
    %24 = arith.addf %23, %22 : vector<2x32xf32>
    %cst_18 = arith.constant 1.000000e+00 : f32
    %25 = vector.broadcast %cst_18 : f32 to vector<2x32xf32>
    %26 = arith.divf %25, %24 : vector<2x32xf32>
    %c0_19 = arith.constant 0 : index
    %c0_20 = arith.constant 0 : index
    %27 = vector.load %arg7[%c0_19, %c0_20] : memref<2x32xf32, #tpu.memory_space<vmem>>, vector<2x32xf32>
    tpu.vector_store %arg7[%c0_19, %c0_20], %26 {strides = array<i32>} : memref<2x32xf32, #tpu.memory_space<vmem>>, vector<2x32xf32>,
    return
  }
}

module attributes {stable_mosaic.version = 11 : i64} {
  func.func @_epilogue_kernel(%arg0: i32, %arg1: memref<1x64x32xbf16, #tpu.memory_space<vmem>>, %arg2: memref<1x32xf32, #tpu.memory_space<vmem>>, %arg3: memref<1x32xf32, #tpu.memory_space<vmem>>, %arg4: memref<1x1x32xf32, #tpu.memory_space<vmem>>, %arg5: memref<1x64x32xbf16, #tpu.memory_space<vmem>>, %arg6: memref<1x32xf32, #tpu.memory_space<vmem>>, %arg7: memref<1x32xf32, #tpu.memory_space<vmem>>, %arg8: memref<1x64x32xf32, #tpu.memory_space<vmem>>) attributes {dimension_semantics = [#tpu.dimension_semantics<parallel>], iteration_bounds = array<i64: 2>, scalar_prefetch = 0 : i64, scratch_operands = 0 : i64, tpu.core_type = #tpu.core_type<tc>, window_params = [{transform_indices = @transform_0, window_bounds = array<i64: 1, 64, 32>}, {pipeline_mode = #tpu.pipeline_mode<synchronous>, transform_indices = @transform_1, window_bounds = array<i64: 1, 32>}, {pipeline_mode = #tpu.pipeline_mode<synchronous>, transform_indices = @transform_2, window_bounds = array<i64: 1, 32>}, {transform_indices = @transform_3, window_bounds = array<i64: 1, 1, 32>}, {transform_indices = @transform_4, window_bounds = array<i64: 1, 64, 32>}, {pipeline_mode = #tpu.pipeline_mode<synchronous>, transform_indices = @transform_5, window_bounds = array<i64: 1, 32>}, {pipeline_mode = #tpu.pipeline_mode<synchronous>, transform_indices = @transform_6, window_bounds = array<i64: 1, 32>}, {transform_indices = @transform_7, window_bounds = array<i64: 1, 64, 32>}]} {
    %c0 = arith.constant 0 : index
    %c0_0 = arith.constant 0 : index
    %c0_1 = arith.constant 0 : index
    %0 = vector.load %arg1[%c0, %c0_0, %c0_1] : memref<1x64x32xbf16, #tpu.memory_space<vmem>>, vector<1x64x32xbf16>
    %1 = vector.shape_cast %0 : vector<1x64x32xbf16> to vector<64x32xbf16>
    %2 = arith.extf %1 : vector<64x32xbf16> to vector<64x32xf32>
    %c0_2 = arith.constant 0 : index
    %c0_3 = arith.constant 0 : index
    %3 = vector.load %arg2[%c0_2, %c0_3] : memref<1x32xf32, #tpu.memory_space<vmem>>, vector<1x32xf32>
    %4 = vector.broadcast %3 : vector<1x32xf32> to vector<64x32xf32>
    %5 = arith.mulf %2, %4 : vector<64x32xf32>
    %c0_4 = arith.constant 0 : index
    %c0_5 = arith.constant 0 : index
    %6 = vector.load %arg3[%c0_4, %c0_5] : memref<1x32xf32, #tpu.memory_space<vmem>>, vector<1x32xf32>
    %7 = vector.broadcast %6 : vector<1x32xf32> to vector<64x32xf32>
    %8 = arith.addf %5, %7 : vector<64x32xf32>
    %c0_6 = arith.constant 0 : index
    %c0_7 = arith.constant 0 : index
    %c0_8 = arith.constant 0 : index
    %9 = vector.load %arg4[%c0_6, %c0_7, %c0_8] : memref<1x1x32xf32, #tpu.memory_space<vmem>>, vector<1x1x32xf32>
    %10 = vector.shape_cast %9 : vector<1x1x32xf32> to vector<1x32xf32>
    %11 = vector.broadcast %10 : vector<1x32xf32> to vector<64x32xf32>
    %12 = arith.mulf %8, %11 : vector<64x32xf32>
    %c0_9 = arith.constant 0 : index
    %c0_10 = arith.constant 0 : index
    %c0_11 = arith.constant 0 : index
    %13 = vector.load %arg5[%c0_9, %c0_10, %c0_11] : memref<1x64x32xbf16, #tpu.memory_space<vmem>>, vector<1x64x32xbf16>
    %14 = vector.shape_cast %13 : vector<1x64x32xbf16> to vector<64x32xbf16>
    %15 = arith.extf %14 : vector<64x32xbf16> to vector<64x32xf32>
    %c0_12 = arith.constant 0 : index
    %c0_13 = arith.constant 0 : index
    %16 = vector.load %arg6[%c0_12, %c0_13] : memref<1x32xf32, #tpu.memory_space<vmem>>, vector<1x32xf32>
    %17 = vector.broadcast %16 : vector<1x32xf32> to vector<64x32xf32>
    %18 = arith.mulf %15, %17 : vector<64x32xf32>
    %c0_14 = arith.constant 0 : index
    %c0_15 = arith.constant 0 : index
    %19 = vector.load %arg7[%c0_14, %c0_15] : memref<1x32xf32, #tpu.memory_space<vmem>>, vector<1x32xf32>
    %20 = vector.broadcast %19 : vector<1x32xf32> to vector<64x32xf32>
    %21 = arith.addf %18, %20 : vector<64x32xf32>
    %22 = arith.addf %12, %21 : vector<64x32xf32>
    %cst = arith.constant 0.000000e+00 : f32
    %23 = vector.broadcast %cst : f32 to vector<64x32xf32>
    %24 = arith.maximumf %22, %23 : vector<64x32xf32>
    %c0_16 = arith.constant 0 : index
    %c0_17 = arith.constant 0 : index
    %c0_18 = arith.constant 0 : index
    %25 = vector.load %arg8[%c0_16, %c0_17, %c0_18] : memref<1x64x32xf32, #tpu.memory_space<vmem>>, vector<1x64x32xf32>
    %26 = vector.shape_cast %25 : vector<1x64x32xf32> to vector<64x32xf32>
    %27 = vector.shape_cast %24 : vector<64x32xf32> to vector<1x64x32xf32>
    tpu.vector_store %arg8[%c0_16, %c0_17, %c0_18], %27 {strides = array<i32>} : memref<1x64x32xf32, #tpu.memory_space<vmem>>, vector<1x64x32xf32>,
    return
  }
  func.func @transform_0(%arg0: i32) -> (i32, i32, i32) {
    %c0_i32 = arith.constant 0 : i32
    %c0_i32_0 = arith.constant 0 : i32
    %c0_i32_1 = arith.constant 0 : i32
    return %arg0, %c0_i32, %c0_i32_0 : i32, i32, i32
  }
  func.func @transform_1(%arg0: i32) -> (i32, i32) {
    %c0_i32 = arith.constant 0 : i32
    %c0_i32_0 = arith.constant 0 : i32
    %c0_i32_1 = arith.constant 0 : i32
    return %c0_i32, %c0_i32_0 : i32, i32
  }
  func.func @transform_2(%arg0: i32) -> (i32, i32) {
    %c0_i32 = arith.constant 0 : i32
    %c0_i32_0 = arith.constant 0 : i32
    %c0_i32_1 = arith.constant 0 : i32
    return %c0_i32, %c0_i32_0 : i32, i32
  }
  func.func @transform_3(%arg0: i32) -> (i32, i32, i32) {
    %c0_i32 = arith.constant 0 : i32
    %c0_i32_0 = arith.constant 0 : i32
    %c0_i32_1 = arith.constant 0 : i32
    return %arg0, %c0_i32, %c0_i32_0 : i32, i32, i32
  }
  func.func @transform_4(%arg0: i32) -> (i32, i32, i32) {
    %c0_i32 = arith.constant 0 : i32
    %c0_i32_0 = arith.constant 0 : i32
    %c0_i32_1 = arith.constant 0 : i32
    return %arg0, %c0_i32, %c0_i32_0 : i32, i32, i32
  }
  func.func @transform_5(%arg0: i32) -> (i32, i32) {
    %c0_i32 = arith.constant 0 : i32
    %c0_i32_0 = arith.constant 0 : i32
    %c0_i32_1 = arith.constant 0 : i32
    return %c0_i32, %c0_i32_0 : i32, i32
  }
  func.func @transform_6(%arg0: i32) -> (i32, i32) {
    %c0_i32 = arith.constant 0 : i32
    %c0_i32_0 = arith.constant 0 : i32
    %c0_i32_1 = arith.constant 0 : i32
    return %c0_i32, %c0_i32_0 : i32, i32
  }
  func.func @transform_7(%arg0: i32) -> (i32, i32, i32) {
    %c0_i32 = arith.constant 0 : i32
    %c0_i32_0 = arith.constant 0 : i32
    %c0_i32_1 = arith.constant 0 : i32
    return %arg0, %c0_i32, %c0_i32_0 : i32, i32, i32
  }
}

</mosaic_0001>

<llo_original>
// kernel: basic_block_forward.6
$region0: #{basic_block_forward.6}
  #allocation0 [shape = 'u32[]', space=smem, size = 0x4, offset = 0x4, fixed_abs, tag = 'smem constant byte address 0x4 - core index']
  #allocation1 [shape = 'u32[72,128]{1,0:T(1,128)}', space=vmem, size = 0x9000, scoped, tag = 'internal scratch']
  %s0 = inlined_call_operand.vmem [shape: f32[2,1,32], index: 0, kind: input, shape index: {}]
  %s1 = inlined_call_operand.vmem [shape: f32[1,32], index: 1, kind: input, shape index: {}]
  %s2 = inlined_call_operand.vmem [shape: f32[1,32], index: 2, kind: input, shape index: {}]
  %s3 = inlined_call_operand.vmem [shape: f32[32,2], index: 3, kind: input, shape index: {}]
  %s4 = inlined_call_operand.vmem [shape: f32[1,2], index: 4, kind: input, shape index: {}]
  %s5 = inlined_call_operand.vmem [shape: f32[2,32], index: 5, kind: input, shape index: {}]
  %s6 = inlined_call_operand.vmem [shape: f32[1,32], index: 6, kind: input, shape index: {}]
  %s7 = inlined_call_operand.vmem [shape: f32[2,32], index: 7, kind: output, shape index: {}]
  %s8 = sld [smem:[#allocation0]]
  $region38: #{basic_block_forward.6} parent=0
    _
  %s10 = ssub.s32 1, %s8
  %s11 = scalar_select 0, %s10, %s8
  // Predicated region
  $region2: #{basic_block_forward.6} parent=0 // pred_check
    _
  $region3: #{basic_block_forward.6} parent=0 // pred_check_branch
    %13 = sbr.rel (0) target = $region5
  $region4: #{basic_block_forward.6} parent=0 // pred_region
    _
  $region5: #{basic_block_forward.6} parent=0 // pred_fallthru
    _
  // Predicated region
  $region6: #{basic_block_forward.6} parent=0 // pred_check
    _
  $region7: #{basic_block_forward.6} parent=0 // pred_check_branch
    %15 = sbr.rel (0) target = $region9
  $region8: #{basic_block_forward.6} parent=0 // pred_region
    _
  $region9: #{basic_block_forward.6} parent=0 // pred_fallthru
    _
  // Predicated region
  $region10: #{basic_block_forward.6} parent=0 // pred_check
    _
  $region11: #{basic_block_forward.6} parent=0 // pred_check_branch
    %17 = sbr.rel (0) target = $region13
  $region12: #{basic_block_forward.6} parent=0 // pred_region
    _
  $region13: #{basic_block_forward.6} parent=0 // pred_fallthru
    _
  // Predicated region
  $region14: #{basic_block_forward.6} parent=0 // pred_check
    _
  $region15: #{basic_block_forward.6} parent=0 // pred_check_branch
    %19 = sbr.rel (0) target = $region17
  $region16: #{basic_block_forward.6} parent=0 // pred_region
    _
  $region17: #{basic_block_forward.6} parent=0 // pred_fallthru
    _
  // Predicated region
  $region18: #{basic_block_forward.6} parent=0 // pred_check
    _
  $region19: #{basic_block_forward.6} parent=0 // pred_check_branch
    %21 = sbr.rel (0) target = $region21
  $region20: #{basic_block_forward.6} parent=0 // pred_region
    _
  $region21: #{basic_block_forward.6} parent=0 // pred_fallthru
    _
  // Predicated region
  $region22: #{basic_block_forward.6} parent=0 // pred_check
    _
  $region23: #{basic_block_forward.6} parent=0 // pred_check_branch
    %23 = sbr.rel (0) target = $region25
  $region24: #{basic_block_forward.6} parent=0 // pred_region
    _
  $region25: #{basic_block_forward.6} parent=0 // pred_fallthru
    _
  // Predicated region
  $region26: #{basic_block_forward.6} parent=0 // pred_check
    _
  $region27: #{basic_block_forward.6} parent=0 // pred_check_branch
    %25 = sbr.rel (0) target = $region29
  $region28: #{basic_block_forward.6} parent=0 // pred_region
    _
  $region29: #{basic_block_forward.6} parent=0 // pred_fallthru
    _
  %v26 = vld [vmem:[%s0] sm:$0x1]
  %v27 = vld [vmem:[%s0 + $0x1] sm:$0x1]
  %v28 = vld [vmem:[%s1] sm:$0x1]
  %v30 = vperm.slane %v28, 0
  %v32 = vrot.slane %v30, 1
  %v34 = vmul.f32 %v26, %v30
  %v35 = vmul.f32 %v27, %v32
  %v36 = vld [vmem:[%s2] sm:$0x1]
  %v38 = vperm.slane %v36, 0
  %v40 = vrot.slane %v38, 1
  %v42 = vadd.f32 %v34, %v38
  %v43 = vadd.f32 %v35, %v40
  %v44 = vld [vmem:[%s3] sm:$0xff]
  %v45 = vld [vmem:[%s3 + $0x8] sm:$0xff]
  %v46 = vld [vmem:[%s3 + $0x10] sm:$0xff]
  %v47 = vld [vmem:[%s3 + $0x18] sm:$0xff]
  %v48 = vld [vmem:[%s4] sm:$0x1]
  %v50 = vperm.slane %v48, 0
  %54 = vst [vmem:[#allocation1] ss:$9 sm:$0xff] %v42
  %s55 = scalar_lea.vmem [#allocation1], 1
  %56 = vst [vmem:[%s55] ss:$9 sm:$0xff] %v43
  %v57 = vld [vmem:[#allocation1] sm:$0xff]
  %vm58 = vcmask 261120
  %v59 = vsel %vm58, %v57, 0
  %61 = vmatpush.msra.mxu0 0.0
  %62 = vmatpush.msra.mxu0 0.0
  %63 = vmatpush.msra.mxu0 0.0
  %64 = vmatpush.msra.mxu0 0.0
  %65 = vmatpush.msra.mxu0 0.0
  %66 = vmatpush.msra.mxu0 0.0
  %67 = vmatpush.msra.mxu0 0.0
  %68 = vmatpush.msra.mxu0 0.0
  %69 = vmatpush.msra.mxu0 0.0
  %70 = vmatpush.msra.mxu0 0.0
  %71 = vmatpush.msra.mxu0 0.0
  %72 = vmatpush.msra.mxu0 0.0
  %73 = vmatpush.msra.mxu0 %v47
  %74 = vmatpush.msra.mxu0 %v46
  %75 = vmatpush.msra.mxu0 %v45
  %76 = vmatpush.msra.mxu0 %v44
  %77 = vmatmul.f32.gmra.mxu0 %v59
  %v78 = vpop.f32.mrf.mxu0
  %v79 = vadd.f32 %v50, %v78
  %80 = vdwg.mxu0
  %v81 = vmax.f32 %v79, 0.0
  %v82 = vld [vmem:[%s5] sm:$0x3]
  %v83 = vld [vmem:[%s6] sm:$0x1]
  %v85 = vperm.slane %v83, 0
  %vm87 = vcmask 15360
  %v89 = vsel %vm87, %v81, 0
  %vm91 = vcmask 1041408
  %v93 = vsel %vm91, %v82, 0
  %95 = vmatpush.msra.mxu0 0.0
  %96 = vmatpush.msra.mxu0 0.0
  %97 = vmatpush.msra.mxu0 0.0
  %98 = vmatpush.msra.mxu0 0.0
  %99 = vmatpush.msra.mxu0 0.0
  %100 = vmatpush.msra.mxu0 0.0
  %101 = vmatpush.msra.mxu0 0.0
  %102 = vmatpush.msra.mxu0 0.0
  %103 = vmatpush.msra.mxu0 0.0
  %104 = vmatpush.msra.mxu0 0.0
  %105 = vmatpush.msra.mxu0 0.0
  %106 = vmatpush.msra.mxu0 0.0
  %107 = vmatpush.msra.mxu0 0.0
  %108 = vmatpush.msra.mxu0 0.0
  %109 = vmatpush.msra.mxu0 0.0
  %110 = vmatpush.msra.mxu0 %v93
  %111 = vmatmul.f32.gmra.mxu0 %v89
  %v112 = vpop.f32.mrf.mxu0
  %v113 = vadd.f32 %v85, %v112
  %114 = vdwg.mxu0
  %v115 = vsub.f32 0.0, %v113
  %v116 = vmul.f32 %v115, 1.442695
  %v117 = vpow.pop %v116
  %v118 = vadd.f32 %v117, 1.0
  %v119 = vrcp.pop %v118
  %v120 = vmul.f32 %v118, %v119
  %v121 = vsub.f32 1.0, %v120
  %v122 = vmul.f32 %v119, %v121
  %v123 = vadd.f32 %v119, %v122
  %vm124 = vweird.f32 %v118
  %vm125 = vweird.f32 %v119
  %vm126 = vmor %vm124, %vm125
  %v127 = vsel %vm126, %v119, %v123
  %v128 = vand.u32 2147483647, %v118
  %vm129 = vcmp.eq.f32.partialorder %v128, 8.507059e+37
  %v130 = vand.u32 %v118, 2147483648
  %v131 = vor.u32 1.1754944e-38, %v130
  %v132 = vsel %vm129, %v131, %v127
  %v133 = vmul.f32 1.0, %v132
  %vm134 = vcmask 254976
  %135 = vst.msk [vmem:[%s7] sm:$0x3] %vm134, %v133
  // Predicated region
  $region30: #{basic_block_forward.6} parent=0 // pred_check
    _
  $region31: #{basic_block_forward.6} parent=0 // pred_check_branch
    %137 = sbr.rel (0) target = $region33
  $region32: #{basic_block_forward.6} parent=0 // pred_region
    _
  $region33: #{basic_block_forward.6} parent=0 // pred_fallthru
    _
  // Predicated region
  $region34: #{basic_block_forward.6} parent=0 // pred_check
    _
  $region35: #{basic_block_forward.6} parent=0 // pred_check_branch
    %139 = sbr.rel (0) target = $region37
  $region36: #{basic_block_forward.6} parent=0 // pred_region
    _
  $region37: #{basic_block_forward.6} parent=0 // pred_fallthru
    _

// kernel: basic_block_forward.7
$region0: #{basic_block_forward.7}
  #allocation0 [shape = 'u32[]', space=smem, size = 0x4, offset = 0x4, fixed_abs, tag = 'smem constant byte address 0x4 - core index']
  #allocation1 [shape = 'u32[72,128]{1,0:T(1,128)}', space=vmem, size = 0x9000, scoped, tag = 'internal scratch']
  %s0 = inlined_call_operand.vmem [shape: bf16[2,64,32], index: 0, kind: input, shape index: {}]
  %s1 = inlined_call_operand.vmem [shape: f32[1,32], index: 1, kind: input, shape index: {}]
  %s2 = inlined_call_operand.vmem [shape: f32[1,32], index: 2, kind: input, shape index: {}]
  %s3 = inlined_call_operand.vmem [shape: f32[2,1,32], index: 3, kind: input, shape index: {}]
  %s4 = inlined_call_operand.vmem [shape: bf16[2,64,32], index: 4, kind: input, shape index: {}]
  %s5 = inlined_call_operand.vmem [shape: f32[1,32], index: 5, kind: input, shape index: {}]
  %s6 = inlined_call_operand.vmem [shape: f32[1,32], index: 6, kind: input, shape index: {}]
  %s7 = inlined_call_operand.hbm [shape: f32[2,64,32], index: 7, kind: output, shape index: {}]
  %s8 = sld [smem:[#allocation0]]
  $region61: #{basic_block_forward.7} parent=0
    _
  %s10 = ssub.s32 1, %s8
  %s11 = scalar_select 0, %s10, %s8
  $region1: #{basic_block_forward.7} parent=0
    #allocation2 [shape = 'u8[65536]{0}', space=vmem, size = 0x10000, scoped, tag = 'output window, operand 0']
    #allocation3 [shape = 's32[2]{0}', space=sflag, size = 0x8, scoped, tag = 'scoped memory for basic_block_forward.7']
    %12 = vsyncpa [#allocation3], 0
    %s13 = scalar_lea.sflag [#allocation3], 1
    %14 = vsyncpa %s13, 0
    loop: start=0, step=1, limit=4
    $region2: #{basic_block_forward.7} parent=1 // loop_pre_header
      _
    $region3: #{basic_block_forward.7} parent=1 // loop_header
      %s16 = sphi 0, %s20
      %p17 = scmp.ge.s32.totalorder %s16, 4
      %s26 = sphi 0, %s28
      %s29 = sphi 0, %s26
      %s30 = sphi 0, %s29
      %s46 = sphi 0, %s30
      %s50 = sphi 0, %s50
      %s52 = sphi 0, %s50
      %s53 = sphi 0, %s52
      %s67 = sphi 0, %s53
      %s71 = sphi 0, %s71
      %s73 = sphi 0, %s71
      %s74 = sphi 0, %s73
      %s88 = sphi 0, %s74
      %s94 = sphi 0, %s96
      %s97 = sphi 0, %s94
      %s98 = sphi 0, %s97
      %s114 = sphi 0, %s98
      %s120 = sphi 0, %s122
      %s123 = sphi 0, %s120
      %s124 = sphi 0, %s123
      %s140 = sphi 0, %s124
      %s144 = sphi 0, %s144
      %s146 = sphi 0, %s144
      %s147 = sphi 0, %s146
      %s161 = sphi 0, %s147
      %s165 = sphi 0, %s165
      %s167 = sphi 0, %s165
      %s168 = sphi 0, %s167
      %s182 = sphi 0, %s168
      %s188 = sphi 0, %s190
      %s191 = sphi 0, %s188
      %s192 = sphi 0, %s191
      %s208 = sphi 0, %s192
    $region4: #{basic_block_forward.7} parent=1 // loop_header_branch
      %19 = sbr.rel (%p17) target = $region8
    $region5: #{basic_block_forward.7} parent=1 // loop_body
      %s21 = ssub.s32 %s16, 1
      %s22 = ssub.s32 %s16, 2
      %s23 = sadd.s32 %s16, 1
      %s24 = ssub.s32 %s16, %s23
      %p25 = scmp.eq.s32.totalorder %s24, 0
      %s27 = sadd.s32 %s26, 1
      %s28 = scalar_select %p25, %s26, %s27
      %p31 = pneg %p25
      %p32 = scmp.eq.s32.totalorder %s16, 1
      %p33 = por %p31, %p32
      %p34 = scmp.ne.s32.totalorder %s26, %s29
      %p35 = scmp.eq.s32.totalorder %s16, 0
      %p36 = por %p34, %p35
      %p37 = scmp.ne.s32.totalorder %s26, %s29
      %p38 = scmp.eq.s32.totalorder %s21, 1
      %p39 = por %p37, %p38
      %p40 = scmp.ne.s32.totalorder %s29, %s30
      %p41 = scmp.eq.s32.totalorder %s21, 0
      %p42 = por %p40, %p41
      %p43 = scmp.ne.s32.totalorder %s29, %s30
      %p44 = scmp.eq.s32.totalorder %s22, 1
      %p45 = por %p43, %p44
      %p47 = scmp.ne.s32.totalorder %s30, %s46
      %p48 = scmp.eq.s32.totalorder %s22, 0
      %p49 = por %p47, %p48
      %s51 = sadd.s32 %s50, 1
      %p54 = scmp.eq.s32.totalorder %s16, 1
      %p55 = scmp.ne.s32.totalorder %s50, %s52
      %p56 = scmp.eq.s32.totalorder %s16, 0
      %p57 = por %p55, %p56
      %p58 = scmp.ne.s32.totalorder %s50, %s52
      %p59 = scmp.eq.s32.totalorder %s21, 1
      %p60 = por %p58, %p59
      %p61 = scmp.ne.s32.totalorder %s52, %s53
      %p62 = scmp.eq.s32.totalorder %s21, 0
      %p63 = por %p61, %p62
      %p64 = scmp.ne.s32.totalorder %s52, %s53
      %p65 = scmp.eq.s32.totalorder %s22, 1
      %p66 = por %p64, %p65
      %p68 = scmp.ne.s32.totalorder %s53, %s67
      %p69 = scmp.eq.s32.totalorder %s22, 0
      %p70 = por %p68, %p69
      %s72 = sadd.s32 %s71, 1
      %p75 = scmp.eq.s32.totalorder %s16, 1
      %p76 = scmp.ne.s32.totalorder %s71, %s73
      %p77 = scmp.eq.s32.totalorder %s16, 0
      %p78 = por %p76, %p77
      %p79 = scmp.ne.s32.totalorder %s71, %s73
      %p80 = scmp.eq.s32.totalorder %s21, 1
      %p81 = por %p79, %p80
      %p82 = scmp.ne.s32.totalorder %s73, %s74
      %p83 = scmp.eq.s32.totalorder %s21, 0
      %p84 = por %p82, %p83
      %p85 = scmp.ne.s32.totalorder %s73, %s74
      %p86 = scmp.eq.s32.totalorder %s22, 1
      %p87 = por %p85, %p86
      %p89 = scmp.ne.s32.totalorder %s74, %s88
      %p90 = scmp.eq.s32.totalorder %s22, 0
      %p91 = por %p89, %p90
      %s92 = ssub.s32 %s16, %s23
      %p93 = scmp.eq.s32.totalorder %s92, 0
      %s95 = sadd.s32 %s94, 1
      %s96 = scalar_select %p93, %s94, %s95
      %p99 = pneg %p93
      %p100 = scmp.eq.s32.totalorder %s16, 1
      %p101 = por %p99, %p100
      %p102 = scmp.ne.s32.totalorder %s94, %s97
      %p103 = scmp.eq.s32.totalorder %s16, 0
      %p104 = por %p102, %p103
      %p105 = scmp.ne.s32.totalorder %s94, %s97
      %p106 = scmp.eq.s32.totalorder %s21, 1
      %p107 = por %p105, %p106
      %p108 = scmp.ne.s32.totalorder %s97, %s98
      %p109 = scmp.eq.s32.totalorder %s21, 0
      %p110 = por %p108, %p109
      %p111 = scmp.ne.s32.totalorder %s97, %s98
      %p112 = scmp.eq.s32.totalorder %s22, 1
      %p113 = por %p111, %p112
      %p115 = scmp.ne.s32.totalorder %s98, %s114
      %p116 = scmp.eq.s32.totalorder %s22, 0
      %p117 = por %p115, %p116
      %s118 = ssub.s32 %s16, %s23
      %p119 = scmp.eq.s32.totalorder %s118, 0
      %s121 = sadd.s32 %s120, 1
      %s122 = scalar_select %p119, %s120, %s121
      %p125 = pneg %p119
      %p126 = scmp.eq.s32.totalorder %s16, 1
      %p127 = por %p125, %p126
      %p128 = scmp.ne.s32.totalorder %s120, %s123
      %p129 = scmp.eq.s32.totalorder %s16, 0
      %p130 = por %p128, %p129
      %p131 = scmp.ne.s32.totalorder %s120, %s123
      %p132 = scmp.eq.s32.totalorder %s21, 1
      %p133 = por %p131, %p132
      %p134 = scmp.ne.s32.totalorder %s123, %s124
      %p135 = scmp.eq.s32.totalorder %s21, 0
      %p136 = por %p134, %p135
      %p137 = scmp.ne.s32.totalorder %s123, %s124
      %p138 = scmp.eq.s32.totalorder %s22, 1
      %p139 = por %p137, %p138
      %p141 = scmp.ne.s32.totalorder %s124, %s140
      %p142 = scmp.eq.s32.totalorder %s22, 0
      %p143 = por %p141, %p142
      %s145 = sadd.s32 %s144, 1
      %p148 = scmp.eq.s32.totalorder %s16, 1
      %p149 = scmp.ne.s32.totalorder %s144, %s146
      %p150 = scmp.eq.s32.totalorder %s16, 0
      %p151 = por %p149, %p150
      %p152 = scmp.ne.s32.totalorder %s144, %s146
      %p153 = scmp.eq.s32.totalorder %s21, 1
      %p154 = por %p152, %p153
      %p155 = scmp.ne.s32.totalorder %s146, %s147
      %p156 = scmp.eq.s32.totalorder %s21, 0
      %p157 = por %p155, %p156
      %p158 = scmp.ne.s32.totalorder %s146, %s147
      %p159 = scmp.eq.s32.totalorder %s22, 1
      %p160 = por %p158, %p159
      %p162 = scmp.ne.s32.totalorder %s147, %s161
      %p163 = scmp.eq.s32.totalorder %s22, 0
      %p164 = por %p162, %p163
      %s166 = sadd.s32 %s165, 1
      %p169 = scmp.eq.s32.totalorder %s16, 1
      %p170 = scmp.ne.s32.totalorder %s165, %s167
      %p171 = scmp.eq.s32.totalorder %s16, 0
      %p172 = por %p170, %p171
      %p173 = scmp.ne.s32.totalorder %s165, %s167
      %p174 = scmp.eq.s32.totalorder %s21, 1
      %p175 = por %p173, %p174
      %p176 = scmp.ne.s32.totalorder %s167, %s168
      %p177 = scmp.eq.s32.totalorder %s21, 0
      %p178 = por %p176, %p177
      %p179 = scmp.ne.s32.totalorder %s167, %s168
      %p180 = scmp.eq.s32.totalorder %s22, 1
      %p181 = por %p179, %p180
      %p183 = scmp.ne.s32.totalorder %s168, %s182
      %p184 = scmp.eq.s32.totalorder %s22, 0
      %p185 = por %p183, %p184
      %s186 = ssub.s32 %s16, %s23
      %p187 = scmp.eq.s32.totalorder %s186, 0
      %s189 = sadd.s32 %s188, 1
      %s190 = scalar_select %p187, %s188, %s189
      %p193 = pneg %p187
      %p194 = scmp.eq.s32.totalorder %s16, 1
      %p195 = por %p193, %p194
      %p196 = scmp.ne.s32.totalorder %s188, %s191
      %p197 = scmp.eq.s32.totalorder %s16, 0
      %p198 = por %p196, %p197
      %p199 = scmp.ne.s32.totalorder %s188, %s191
      %p200 = scmp.eq.s32.totalorder %s21, 1
      %p201 = por %p199, %p200
      %p202 = scmp.ne.s32.totalorder %s191, %s192
      %p203 = scmp.eq.s32.totalorder %s21, 0
      %p204 = por %p202, %p203
      %p205 = scmp.ne.s32.totalorder %s191, %s192
      %p206 = scmp.eq.s32.totalorder %s22, 1
      %p207 = por %p205, %p206
      %p209 = scmp.ne.s32.totalorder %s192, %s208
      %p210 = scmp.eq.s32.totalorder %s22, 0
      %p211 = por %p209, %p210
      %p212 = scmp.le.s32.totalorder 1, %s16
      %p213 = scmp.lt.s32.totalorder %s16, 3
      %p214 = pnand %p212, %p213
      %p215 = pneg %p214
      // Predicated region
      $region9: #{basic_block_forward.7} parent=5 // pred_check
        _
      $region10: #{basic_block_forward.7} parent=5 // pred_check_branch
        %217 = sbr.rel (%p214) target = $region12
      $region11: #{basic_block_forward.7} parent=5 // pred_region
        %s218 = ssub.s32 %s16, 1
        // Predicated region
        $region13: #{basic_block_forward.7} parent=11 // pred_check
          %p219 = pneg %p63
        $region14: #{basic_block_forward.7} parent=11 // pred_check_branch
          %221 = sbr.rel (%p219) target = $region16
        $region15: #{basic_block_forward.7} parent=11 // pred_region
          _
        $region16: #{basic_block_forward.7} parent=11 // pred_fallthru
          _
        // Predicated region
        $region17: #{basic_block_forward.7} parent=11 // pred_check
          %p222 = pneg %p84
        $region18: #{basic_block_forward.7} parent=11 // pred_check_branch
          %224 = sbr.rel (%p222) target = $region20
        $region19: #{basic_block_forward.7} parent=11 // pred_region
          _
        $region20: #{basic_block_forward.7} parent=11 // pred_fallthru
          _
        // Predicated region
        $region21: #{basic_block_forward.7} parent=11 // pred_check
          %p225 = pneg %p157
        $region22: #{basic_block_forward.7} parent=11 // pred_check_branch
          %227 = sbr.rel (%p225) target = $region24
        $region23: #{basic_block_forward.7} parent=11 // pred_region
          _
        $region24: #{basic_block_forward.7} parent=11 // pred_fallthru
          _
        // Predicated region
        $region25: #{basic_block_forward.7} parent=11 // pred_check
          %p228 = pneg %p178
        $region26: #{basic_block_forward.7} parent=11 // pred_check_branch
          %230 = sbr.rel (%p228) target = $region28
        $region27: #{basic_block_forward.7} parent=11 // pred_region
          _
        $region28: #{basic_block_forward.7} parent=11 // pred_fallthru
          _
      $region12: #{basic_block_forward.7} parent=5 // pred_fallthru
        _
      %p231 = scmp.lt.s32.totalorder %s16, 2
      // Predicated region
      $region29: #{basic_block_forward.7} parent=5 // pred_check
        %p232 = pneg %p231
      $region30: #{basic_block_forward.7} parent=5 // pred_check_branch
        %234 = sbr.rel (%p232) target = $region32
      $region31: #{basic_block_forward.7} parent=5 // pred_region
        // Predicated region
        $region33: #{basic_block_forward.7} parent=31 // pred_check
          %p235 = pneg %p36
        $region34: #{basic_block_forward.7} parent=31 // pred_check_branch
          %237 = sbr.rel (%p235) target = $region36
        $region35: #{basic_block_forward.7} parent=31 // pred_region
          %p238 = scmp.lt.s32.totalorder %s16, 1
          %s239 = scalar_select %p238, %s16, 1
          %s240 = smul.addr %s239, 8
          %s241 = smul.addr %s240, 4
          %s242 = scalar_lea.vmem %s0, %s241
        $region36: #{basic_block_forward.7} parent=31 // pred_fallthru
          _
        // Predicated region
        $region37: #{basic_block_forward.7} parent=31 // pred_check
          %p243 = pneg %p104
        $region38: #{basic_block_forward.7} parent=31 // pred_check_branch
          %245 = sbr.rel (%p243) target = $region40
        $region39: #{basic_block_forward.7} parent=31 // pred_region
          %p246 = scmp.lt.s32.totalorder %s16, 1
          %s247 = scalar_select %p246, %s16, 1
          %s248 = scalar_lea.vmem %s3, %s247
        $region40: #{basic_block_forward.7} parent=31 // pred_fallthru
          _
        // Predicated region
        $region41: #{basic_block_forward.7} parent=31 // pred_check
          %p249 = pneg %p130
        $region42: #{basic_block_forward.7} parent=31 // pred_check_branch
          %251 = sbr.rel (%p249) target = $region44
        $region43: #{basic_block_forward.7} parent=31 // pred_region
          %p252 = scmp.lt.s32.totalorder %s16, 1
          %s253 = scalar_select %p252, %s16, 1
          %s254 = smul.addr %s253, 8
          %s255 = smul.addr %s254, 4
          %s256 = scalar_lea.vmem %s4, %s255
        $region44: #{basic_block_forward.7} parent=31 // pred_fallthru
          _
      $region32: #{basic_block_forward.7} parent=5 // pred_fallthru
        _
      %p257 = scmp.le.s32.totalorder 1, %s16
      %p258 = scmp.lt.s32.totalorder %s16, 3
      %p259 = pnand %p257, %p258
      %p260 = pneg %p259
      // Predicated region
      $region45: #{basic_block_forward.7} parent=5 // pred_check
        _
      $region46: #{basic_block_forward.7} parent=5 // pred_check_branch
        %262 = sbr.rel (%p259) target = $region48
      $region47: #{basic_block_forward.7} parent=5 // pred_region
        %s263 = ssub.s32 %s16, 1
        %p264 = scmp.lt.s32.totalorder %s21, 1
        %s265 = scalar_select %p264, %s21, 1
        %s266 = smul.addr %s265, 8
        %s267 = smul.addr %s266, 4
        %s268 = scalar_lea.vmem %s0, %s267
        %p269 = pneg %p42
        %p270 = pneg %p39
        %p271 = pneg %p63
        %p272 = pneg %p60
        %p273 = pneg %p84
        %p274 = pneg %p81
        %p275 = scmp.lt.s32.totalorder %s21, 1
        %s276 = scalar_select %p275, %s21, 1
        %s277 = scalar_lea.vmem %s3, %s276
        %p278 = pneg %p110
        %p279 = pneg %p107
        %p280 = scmp.lt.s32.totalorder %s21, 1
        %s281 = scalar_select %p280, %s21, 1
        %s282 = smul.addr %s281, 8
        %s283 = smul.addr %s282, 4
        %s284 = scalar_lea.vmem %s4, %s283
        %p285 = pneg %p136
        %p286 = pneg %p133
        %p287 = pneg %p157
        %p288 = pneg %p154
        %p289 = pneg %p178
        %p290 = pneg %p175
        %p291 = pneg %p204
        %p292 = pneg %p201
        %s293 = sand.u32 %s191, 1
        %s294 = scalar_lea.sflag [#allocation3], %s293
        %s295 = sand.u32 %s191, 1
        %s296 = smul.addr %s295, 64
        %s297 = scalar_lea.vmem [#allocation2], %s296
        %p298 = scmp.lt.s32.totalorder %s21, 1
        %s299 = scalar_select %p298, %s21, 1
        %s300 = smul.addr %s299, 8
        %s301 = smul.addr %s300, 4
        %s302 = scalar_lea.vmem %s0, %s301
        %p303 = scmp.lt.s32.totalorder %s21, 1
        %s304 = scalar_select %p303, %s21, 1
        %s305 = scalar_lea.vmem %s3, %s304
        %p306 = scmp.lt.s32.totalorder %s21, 1
        %s307 = scalar_select %p306, %s21, 1
        %s308 = smul.addr %s307, 8
        %s309 = smul.addr %s308, 4
        %s310 = scalar_lea.vmem %s4, %s309
        %v311 = vld [vmem:[%s302] sm:$0xf]
        %v312 = vld [vmem:[%s302 + $0x4] sm:$0xf]
        %v313 = vld [vmem:[%s302 + $0x8] sm:$0xf]
        %v314 = vld [vmem:[%s302 + $0xc] sm:$0xf]
        %v315 = vld [vmem:[%s302 + $0x10] sm:$0xf]
        %v316 = vld [vmem:[%s302 + $0x14] sm:$0xf]
        %v317 = vld [vmem:[%s302 + $0x18] sm:$0xf]
        %v318 = vld [vmem:[%s302 + $0x1c] sm:$0xf]
        %v319 = vunpack.c.l.bf16 %v311
        %v320 = vunpack.c.l.bf16 %v312
        %v321 = vunpack.c.l.bf16 %v313
        %v322 = vunpack.c.l.bf16 %v314
        %v323 = vunpack.c.l.bf16 %v315
        %v324 = vunpack.c.l.bf16 %v316
        %v325 = vunpack.c.l.bf16 %v317
        %v326 = vunpack.c.l.bf16 %v318
        %v327 = vld [vmem:[%s1] sm:$0x1]
        %v329 = vperm.slane %v327, 0
        %v331 = vmul.f32 %v319, %v329
        %v332 = vmul.f32 %v320, %v329
        %v333 = vmul.f32 %v321, %v329
        %v334 = vmul.f32 %v322, %v329
        %v335 = vmul.f32 %v323, %v329
        %v336 = vmul.f32 %v324, %v329
        %v337 = vmul.f32 %v325, %v329
        %v338 = vmul.f32 %v326, %v329
        %v339 = vld [vmem:[%s2] sm:$0x1]
        %v341 = vperm.slane %v339, 0
        %v343 = vadd.f32 %v331, %v341
        %v344 = vadd.f32 %v332, %v341
        %v345 = vadd.f32 %v333, %v341
        %v346 = vadd.f32 %v334, %v341
        %v347 = vadd.f32 %v335, %v341
        %v348 = vadd.f32 %v336, %v341
        %v349 = vadd.f32 %v337, %v341
        %v350 = vadd.f32 %v338, %v341
        %v351 = vld [vmem:[%s305] sm:$0x1]
        %v353 = vperm.slane %v351, 0
        %v355 = vmul.f32 %v343, %v353
        %v356 = vmul.f32 %v344, %v353
        %v357 = vmul.f32 %v345, %v353
        %v358 = vmul.f32 %v346, %v353
        %v359 = vmul.f32 %v347, %v353
        %v360 = vmul.f32 %v348, %v353
        %v361 = vmul.f32 %v349, %v353
        %v362 = vmul.f32 %v350, %v353
        %v363 = vld [vmem:[%s310] sm:$0xf]
        %v364 = vld [vmem:[%s310 + $0x4] sm:$0xf]
        %v365 = vld [vmem:[%s310 + $0x8] sm:$0xf]
        %v366 = vld [vmem:[%s310 + $0xc] sm:$0xf]
        %v367 = vld [vmem:[%s310 + $0x10] sm:$0xf]
        %v368 = vld [vmem:[%s310 + $0x14] sm:$0xf]
        %v369 = vld [vmem:[%s310 + $0x18] sm:$0xf]
        %v370 = vld [vmem:[%s310 + $0x1c] sm:$0xf]
        %v371 = vunpack.c.l.bf16 %v363
        %v372 = vunpack.c.l.bf16 %v364
        %v373 = vunpack.c.l.bf16 %v365
        %v374 = vunpack.c.l.bf16 %v366
        %v375 = vunpack.c.l.bf16 %v367
        %v376 = vunpack.c.l.bf16 %v368
        %v377 = vunpack.c.l.bf16 %v369
        %v378 = vunpack.c.l.bf16 %v370
        %v379 = vld [vmem:[%s5] sm:$0x1]
        %v381 = vperm.slane %v379, 0
        %v383 = vmul.f32 %v371, %v381
        %v384 = vmul.f32 %v372, %v381
        %v385 = vmul.f32 %v373, %v381
        %v386 = vmul.f32 %v374, %v381
        %v387 = vmul.f32 %v375, %v381
        %v388 = vmul.f32 %v376, %v381
        %v389 = vmul.f32 %v377, %v381
        %v390 = vmul.f32 %v378, %v381
        %v391 = vld [vmem:[%s6] sm:$0x1]
        %v393 = vperm.slane %v391, 0
        %v395 = vadd.f32 %v383, %v393
        %v396 = vadd.f32 %v384, %v393
        %v397 = vadd.f32 %v385, %v393
        %v398 = vadd.f32 %v386, %v393
        %v399 = vadd.f32 %v387, %v393
        %v400 = vadd.f32 %v388, %v393
        %v401 = vadd.f32 %v389, %v393
        %v402 = vadd.f32 %v390, %v393
        %v403 = vadd.f32 %v355, %v395
        %v404 = vadd.f32 %v356, %v396
        %v405 = vadd.f32 %v357, %v397
        %v406 = vadd.f32 %v358, %v398
        %v407 = vadd.f32 %v359, %v399
        %v408 = vadd.f32 %v360, %v400
        %v409 = vadd.f32 %v361, %v401
        %v410 = vadd.f32 %v362, %v402
        %v411 = vmax.f32 %v403, 0.0
        %v412 = vmax.f32 %v404, 0.0
        %v413 = vmax.f32 %v405, 0.0
        %v414 = vmax.f32 %v406, 0.0
        %v415 = vmax.f32 %v407, 0.0
        %v416 = vmax.f32 %v408, 0.0
        %v417 = vmax.f32 %v409, 0.0
        %v418 = vmax.f32 %v410, 0.0
        %vm419 = vcmask 261120
        %420 = vst.msk [vmem:[%s297] sm:$0xff] %vm419, %v411
        %421 = vst.msk [vmem:[%s297 + $0x8] sm:$0xff] %vm419, %v412
        %422 = vst.msk [vmem:[%s297 + $0x10] sm:$0xff] %vm419, %v413
        %423 = vst.msk [vmem:[%s297 + $0x18] sm:$0xff] %vm419, %v414
        %424 = vst.msk [vmem:[%s297 + $0x20] sm:$0xff] %vm419, %v415
        %425 = vst.msk [vmem:[%s297 + $0x28] sm:$0xff] %vm419, %v416
        %426 = vst.msk [vmem:[%s297 + $0x30] sm:$0xff] %vm419, %v417
        %427 = vst.msk [vmem:[%s297 + $0x38] sm:$0xff] %vm419, %v418
        %s428 = sand.u32 %s191, 1
        %s429 = scalar_lea.sflag [#allocation3], %s428
        %s430 = sand.u32 %s191, 1
        %s431 = smul.addr %s430, 64
        %s432 = scalar_lea.vmem [#allocation2], %s431
        // Predicated region
        $region49: #{basic_block_forward.7} parent=47 // pred_check
          %p433 = pneg %p201
        $region50: #{basic_block_forward.7} parent=47 // pred_check_branch
          %435 = sbr.rel (%p433) target = $region52
        $region51: #{basic_block_forward.7} parent=47 // pred_region
          %437 = vsyncadd %s429, 0
          %s438 = smul.addr %s21, 8
          %s439 = smul.addr %s438, 8
          %s440 = scalar_lea.hbm %s7, %s439
          %s441 = sshll.u32 %s432, 4
          %s442 = int_to_ptr.vmem [resolvable:$true] %s441
          %s443 = sshll.u32 %s440, 4
          %s444 = int_to_ptr.hbm [resolvable:$true] %s443
          %449 = dma.vmem_to_hbm [thread:$0]  %s442, 1024, %s444, %s429, 128, 128, 8
        $region52: #{basic_block_forward.7} parent=47 // pred_fallthru
          _
      $region48: #{basic_block_forward.7} parent=5 // pred_fallthru
        _
      %p450 = scmp.le.s32.totalorder 2, %s16
      // Predicated region
      $region53: #{basic_block_forward.7} parent=5 // pred_check
        %p451 = pneg %p450
      $region54: #{basic_block_forward.7} parent=5 // pred_check_branch
        %453 = sbr.rel (%p451) target = $region56
      $region55: #{basic_block_forward.7} parent=5 // pred_region
        %s454 = ssub.s32 %s16, 2
        // Predicated region
        $region57: #{basic_block_forward.7} parent=55 // pred_check
          %p455 = pneg %p207
        $region58: #{basic_block_forward.7} parent=55 // pred_check_branch
          %457 = sbr.rel (%p455) target = $region60
        $region59: #{basic_block_forward.7} parent=55 // pred_region
          %s458 = sand.u32 %s192, 1
          %s459 = scalar_lea.sflag [#allocation3], %s458
          %s460 = sand.u32 %s192, 1
          %s461 = smul.addr %s460, 64
          %s462 = scalar_lea.vmem [#allocation2], %s461
          %464 = dma.done %s459, 1024
        $region60: #{basic_block_forward.7} parent=55 // pred_fallthru
          _
      $region56: #{basic_block_forward.7} parent=5 // pred_fallthru
        _
    $region6: #{basic_block_forward.7} parent=1 // loop_footer
      %s20 = sadd.s32 1, %s16
    $region7: #{basic_block_forward.7} parent=1 // loop_footer_branch
      %15 = sbr.rel target = $region3
    $region8: #{basic_block_forward.7} parent=1 // loop_exit
      _
    %465 = vsyncpa [#allocation3], 1
    %s466 = scalar_lea.sflag [#allocation3], 1
    %467 = vsyncpa %s466, 1

// kernel: basic_block_forward.4
$region0: #{basic_block_forward.4}
  #allocation0 [shape = 'u32[]', space=smem, size = 0x4, offset = 0x4, fixed_abs, tag = 'smem constant byte address 0x4 - core index']
  #allocation1 [shape = 'u32[72,128]{1,0:T(1,128)}', space=vmem, size = 0x9000, scoped, tag = 'internal scratch']
  %s0 = inlined_call_operand.vmem [shape: bf16[2,4,9,9,32], index: 0, kind: input, shape index: {}]
  %s1 = inlined_call_operand.vmem [shape: bf16[3,3,32,32], index: 1, kind: input, shape index: {}]
  %s2 = inlined_call_operand.vmem [shape: bf16[32,32], index: 2, kind: input, shape index: {}]
  %s3 = inlined_call_operand.vmem [shape: bf16[2,64,32], index: 3, kind: output, shape index: {0}]
  %s4 = inlined_call_operand.vmem [shape: bf16[2,64,32], index: 4, kind: output, shape index: {1}]
  %s5 = inlined_call_operand.vmem [shape: f32[2,32], index: 5, kind: output, shape index: {2}]
  %s6 = inlined_call_operand.vmem [shape: f32[2,32], index: 6, kind: output, shape index: {3}]
  %7 = xla_tuple %s3, %s4, %s5, %s6
  %s8 = sld [smem:[#allocation0]]
  $region85: #{basic_block_forward.4} parent=0
    _
  %s10 = ssub.s32 1, %s8
  %s11 = scalar_select 0, %s10, %s8
  loop: start=0, step=1, limit=4
  $region2: #{basic_block_forward.4} parent=0 // loop_pre_header
    _
  $region3: #{basic_block_forward.4} parent=0 // loop_header
    %s13 = sphi 0, %s17
    %p14 = scmp.ge.s32.totalorder %s13, 4
    %s23 = sphi 0, %s25
    %s26 = sphi 0, %s23
    %s27 = sphi 0, %s26
    %s43 = sphi 0, %s27
    %s47 = sphi 0, %s47
    %s49 = sphi 0, %s47
    %s50 = sphi 0, %s49
    %s64 = sphi 0, %s50
    %s68 = sphi 0, %s68
    %s70 = sphi 0, %s68
    %s71 = sphi 0, %s70
    %s85 = sphi 0, %s71
    %s91 = sphi 0, %s93
    %s94 = sphi 0, %s91
    %s95 = sphi 0, %s94
    %s111 = sphi 0, %s95
    %s117 = sphi 0, %s119
    %s120 = sphi 0, %s117
    %s121 = sphi 0, %s120
    %s137 = sphi 0, %s121
    %s141 = sphi 0, %s141
    %s143 = sphi 0, %s141
    %s144 = sphi 0, %s143
    %s158 = sphi 0, %s144
    %s162 = sphi 0, %s162
    %s164 = sphi 0, %s162
    %s165 = sphi 0, %s164
    %s179 = sphi 0, %s165
  $region4: #{basic_block_forward.4} parent=0 // loop_header_branch
    %16 = sbr.rel (%p14) target = $region8
  $region5: #{basic_block_forward.4} parent=0 // loop_body
    %s18 = ssub.s32 %s13, 1
    %s19 = ssub.s32 %s13, 2
    %s20 = sadd.s32 %s13, 1
    %s21 = ssub.s32 %s13, %s20
    %p22 = scmp.eq.s32.totalorder %s21, 0
    %s24 = sadd.s32 %s23, 1
    %s25 = scalar_select %p22, %s23, %s24
    %p28 = pneg %p22
    %p29 = scmp.eq.s32.totalorder %s13, 1
    %p30 = por %p28, %p29
    %p31 = scmp.ne.s32.totalorder %s23, %s26
    %p32 = scmp.eq.s32.totalorder %s13, 0
    %p33 = por %p31, %p32
    %p34 = scmp.ne.s32.totalorder %s23, %s26
    %p35 = scmp.eq.s32.totalorder %s18, 1
    %p36 = por %p34, %p35
    %p37 = scmp.ne.s32.totalorder %s26, %s27
    %p38 = scmp.eq.s32.totalorder %s18, 0
    %p39 = por %p37, %p38
    %p40 = scmp.ne.s32.totalorder %s26, %s27
    %p41 = scmp.eq.s32.totalorder %s19, 1
    %p42 = por %p40, %p41
    %p44 = scmp.ne.s32.totalorder %s27, %s43
    %p45 = scmp.eq.s32.totalorder %s19, 0
    %p46 = por %p44, %p45
    %s48 = sadd.s32 %s47, 1
    %p51 = scmp.eq.s32.totalorder %s13, 1
    %p52 = scmp.ne.s32.totalorder %s47, %s49
    %p53 = scmp.eq.s32.totalorder %s13, 0
    %p54 = por %p52, %p53
    %p55 = scmp.ne.s32.totalorder %s47, %s49
    %p56 = scmp.eq.s32.totalorder %s18, 1
    %p57 = por %p55, %p56
    %p58 = scmp.ne.s32.totalorder %s49, %s50
    %p59 = scmp.eq.s32.totalorder %s18, 0
    %p60 = por %p58, %p59
    %p61 = scmp.ne.s32.totalorder %s49, %s50
    %p62 = scmp.eq.s32.totalorder %s19, 1
    %p63 = por %p61, %p62
    %p65 = scmp.ne.s32.totalorder %s50, %s64
    %p66 = scmp.eq.s32.totalorder %s19, 0
    %p67 = por %p65, %p66
    %s69 = sadd.s32 %s68, 1
    %p72 = scmp.eq.s32.totalorder %s13, 1
    %p73 = scmp.ne.s32.totalorder %s68, %s70
    %p74 = scmp.eq.s32.totalorder %s13, 0
    %p75 = por %p73, %p74
    %p76 = scmp.ne.s32.totalorder %s68, %s70
    %p77 = scmp.eq.s32.totalorder %s18, 1
    %p78 = por %p76, %p77
    %p79 = scmp.ne.s32.totalorder %s70, %s71
    %p80 = scmp.eq.s32.totalorder %s18, 0
    %p81 = por %p79, %p80
    %p82 = scmp.ne.s32.totalorder %s70, %s71
    %p83 = scmp.eq.s32.totalorder %s19, 1
    %p84 = por %p82, %p83
    %p86 = scmp.ne.s32.totalorder %s71, %s85
    %p87 = scmp.eq.s32.totalorder %s19, 0
    %p88 = por %p86, %p87
    %s89 = ssub.s32 %s13, %s20
    %p90 = scmp.eq.s32.totalorder %s89, 0
    %s92 = sadd.s32 %s91, 1
    %s93 = scalar_select %p90, %s91, %s92
    %p96 = pneg %p90
    %p97 = scmp.eq.s32.totalorder %s13, 1
    %p98 = por %p96, %p97
    %p99 = scmp.ne.s32.totalorder %s91, %s94
    %p100 = scmp.eq.s32.totalorder %s13, 0
    %p101 = por %p99, %p100
    %p102 = scmp.ne.s32.totalorder %s91, %s94
    %p103 = scmp.eq.s32.totalorder %s18, 1
    %p104 = por %p102, %p103
    %p105 = scmp.ne.s32.totalorder %s94, %s95
    %p106 = scmp.eq.s32.totalorder %s18, 0
    %p107 = por %p105, %p106
    %p108 = scmp.ne.s32.totalorder %s94, %s95
    %p109 = scmp.eq.s32.totalorder %s19, 1
    %p110 = por %p108, %p109
    %p112 = scmp.ne.s32.totalorder %s95, %s111
    %p113 = scmp.eq.s32.totalorder %s19, 0
    %p114 = por %p112, %p113
    %s115 = ssub.s32 %s13, %s20
    %p116 = scmp.eq.s32.totalorder %s115, 0
    %s118 = sadd.s32 %s117, 1
    %s119 = scalar_select %p116, %s117, %s118
    %p122 = pneg %p116
    %p123 = scmp.eq.s32.totalorder %s13, 1
    %p124 = por %p122, %p123
    %p125 = scmp.ne.s32.totalorder %s117, %s120
    %p126 = scmp.eq.s32.totalorder %s13, 0
    %p127 = por %p125, %p126
    %p128 = scmp.ne.s32.totalorder %s117, %s120
    %p129 = scmp.eq.s32.totalorder %s18, 1
    %p130 = por %p128, %p129
    %p131 = scmp.ne.s32.totalorder %s120, %s121
    %p132 = scmp.eq.s32.totalorder %s18, 0
    %p133 = por %p131, %p132
    %p134 = scmp.ne.s32.totalorder %s120, %s121
    %p135 = scmp.eq.s32.totalorder %s19, 1
    %p136 = por %p134, %p135
    %p138 = scmp.ne.s32.totalorder %s121, %s137
    %p139 = scmp.eq.s32.totalorder %s19, 0
    %p140 = por %p138, %p139
    %s142 = sadd.s32 %s141, 1
    %p145 = scmp.eq.s32.totalorder %s13, 1
    %p146 = scmp.ne.s32.totalorder %s141, %s143
    %p147 = scmp.eq.s32.totalorder %s13, 0
    %p148 = por %p146, %p147
    %p149 = scmp.ne.s32.totalorder %s141, %s143
    %p150 = scmp.eq.s32.totalorder %s18, 1
    %p151 = por %p149, %p150
    %p152 = scmp.ne.s32.totalorder %s143, %s144
    %p153 = scmp.eq.s32.totalorder %s18, 0
    %p154 = por %p152, %p153
    %p155 = scmp.ne.s32.totalorder %s143, %s144
    %p156 = scmp.eq.s32.totalorder %s19, 1
    %p157 = por %p155, %p156
    %p159 = scmp.ne.s32.totalorder %s144, %s158
    %p160 = scmp.eq.s32.totalorder %s19, 0
    %p161 = por %p159, %p160
    %s163 = sadd.s32 %s162, 1
    %p166 = scmp.eq.s32.totalorder %s13, 1
    %p167 = scmp.ne.s32.totalorder %s162, %s164
    %p168 = scmp.eq.s32.totalorder %s13, 0
    %p169 = por %p167, %p168
    %p170 = scmp.ne.s32.totalorder %s162, %s164
    %p171 = scmp.eq.s32.totalorder %s18, 1
    %p172 = por %p170, %p171
    %p173 = scmp.ne.s32.totalorder %s164, %s165
    %p174 = scmp.eq.s32.totalorder %s18, 0
    %p175 = por %p173, %p174
    %p176 = scmp.ne.s32.totalorder %s164, %s165
    %p177 = scmp.eq.s32.totalorder %s19, 1
    %p178 = por %p176, %p177
    %p180 = scmp.ne.s32.totalorder %s165, %s179
    %p181 = scmp.eq.s32.totalorder %s19, 0
    %p182 = por %p180, %p181
    %p183 = scmp.le.s32.totalorder 1, %s13
    %p184 = scmp.lt.s32.totalorder %s13, 3
    %p185 = pnand %p183, %p184
    %p186 = pneg %p185
    // Predicated region
    $region9: #{basic_block_forward.4} parent=5 // pred_check
      _
    $region10: #{basic_block_forward.4} parent=5 // pred_check_branch
      %188 = sbr.rel (%p185) target = $region12
    $region11: #{basic_block_forward.4} parent=5 // pred_region
      %s189 = ssub.s32 %s13, 1
      // Predicated region
      $region13: #{basic_block_forward.4} parent=11 // pred_check
        %p190 = pneg %p60
      $region14: #{basic_block_forward.4} parent=11 // pred_check_branch
        %192 = sbr.rel (%p190) target = $region16
      $region15: #{basic_block_forward.4} parent=11 // pred_region
        _
      $region16: #{basic_block_forward.4} parent=11 // pred_fallthru
        _
      // Predicated region
      $region17: #{basic_block_forward.4} parent=11 // pred_check
        %p193 = pneg %p81
      $region18: #{basic_block_forward.4} parent=11 // pred_check_branch
        %195 = sbr.rel (%p193) target = $region20
      $region19: #{basic_block_forward.4} parent=11 // pred_region
        _
      $region20: #{basic_block_forward.4} parent=11 // pred_fallthru
        _
    $region12: #{basic_block_forward.4} parent=5 // pred_fallthru
      _
    %p196 = scmp.lt.s32.totalorder %s13, 2
    // Predicated region
    $region21: #{basic_block_forward.4} parent=5 // pred_check
      %p197 = pneg %p196
    $region22: #{basic_block_forward.4} parent=5 // pred_check_branch
      %199 = sbr.rel (%p197) target = $region24
    $region23: #{basic_block_forward.4} parent=5 // pred_region
      // Predicated region
      $region25: #{basic_block_forward.4} parent=23 // pred_check
        %p200 = pneg %p33
      $region26: #{basic_block_forward.4} parent=23 // pred_check_branch
        %202 = sbr.rel (%p200) target = $region28
      $region27: #{basic_block_forward.4} parent=23 // pred_region
        %p203 = scmp.lt.s32.totalorder %s13, 1
        %s204 = scalar_select %p203, %s13, 1
        %s205 = smul.addr %s204, 72
        %s206 = smul.addr %s205, 4
        %s207 = scalar_lea.vmem %s0, %s206
      $region28: #{basic_block_forward.4} parent=23 // pred_fallthru
        _
    $region24: #{basic_block_forward.4} parent=5 // pred_fallthru
      _
    %p208 = scmp.le.s32.totalorder 1, %s13
    %p209 = scmp.lt.s32.totalorder %s13, 3
    %p210 = pnand %p208, %p209
    %p211 = pneg %p210
    // Predicated region
    $region29: #{basic_block_forward.4} parent=5 // pred_check
      _
    $region30: #{basic_block_forward.4} parent=5 // pred_check_branch
      %213 = sbr.rel (%p210) target = $region32
    $region31: #{basic_block_forward.4} parent=5 // pred_region
      %s214 = ssub.s32 %s13, 1
      %p215 = scmp.lt.s32.totalorder %s18, 1
      %s216 = scalar_select %p215, %s18, 1
      %s217 = smul.addr %s216, 72
      %s218 = smul.addr %s217, 4
      %s219 = scalar_lea.vmem %s0, %s218
      %p220 = pneg %p39
      %p221 = pneg %p36
      %p222 = pneg %p60
      %p223 = pneg %p57
      %p224 = pneg %p81
      %p225 = pneg %p78
      %p226 = pneg %p107
      %p227 = pneg %p104
      %p228 = scmp.lt.s32.totalorder %s18, 1
      %s229 = scalar_select %p228, %s18, 1
      %s230 = smul.addr %s229, 8
      %s231 = smul.addr %s230, 4
      %s232 = scalar_lea.vmem %s3, %s231
      %p233 = pneg %p133
      %p234 = pneg %p130
      %p235 = scmp.lt.s32.totalorder %s18, 1
      %s236 = scalar_select %p235, %s18, 1
      %s237 = smul.addr %s236, 8
      %s238 = smul.addr %s237, 4
      %s239 = scalar_lea.vmem %s4, %s238
      %p240 = pneg %p154
      %p241 = pneg %p151
      %p242 = pneg %p175
      %p243 = pneg %p172
      %p244 = scmp.lt.s32.totalorder %s18, 1
      %s245 = scalar_select %p244, %s18, 1
      %s246 = smul.addr %s245, 72
      %s247 = smul.addr %s246, 4
      %s248 = scalar_lea.vmem %s0, %s247
      %p249 = scmp.lt.s32.totalorder %s18, 1
      %s250 = scalar_select %p249, %s18, 1
      %s251 = smul.addr %s250, 8
      %s252 = smul.addr %s251, 4
      %s253 = scalar_lea.vmem %s3, %s252
      %p254 = scmp.lt.s32.totalorder %s18, 1
      %s255 = scalar_select %p254, %s18, 1
      %s256 = smul.addr %s255, 8
      %s257 = smul.addr %s256, 4
      %s258 = scalar_lea.vmem %s4, %s257
      %p260 = scmp.eq.s32.totalorder %s18, 0
      %v261 = vld [vmem:[%s248] sm:$0xf]
      %v262 = vld [vmem:[%s248 + $0x8] sm:$0xf]
      %v263 = vld [vmem:[%s248 + $0x10] sm:$0xf]
      %v264 = vld [vmem:[%s248 + $0x18] sm:$0xf]
      %v265 = vld [vmem:[%s248 + $0x20] sm:$0xf]
      %v266 = vld [vmem:[%s248 + $0x28] sm:$0xf]
      %v267 = vld [vmem:[%s248 + $0x30] sm:$0xf]
      %v268 = vld [vmem:[%s248 + $0x38] sm:$0xf]
      %v269 = vld [vmem:[%s1] sm:$0xf]
      %v270 = vld [vmem:[%s1 + $0x4] sm:$0xf]
      %v271 = vld [vmem:[%s1 + $0x8] sm:$0xf]
      %v272 = vld [vmem:[%s1 + $0xc] sm:$0xf]
      %s273 = scalar_lea.vmem %s248, 72
      %v274 = vld [vmem:[%s273] sm:$0xf]
      %v275 = vld [vmem:[%s273 + $0x8] sm:$0xf]
      %v276 = vld [vmem:[%s273 + $0x10] sm:$0xf]
      %v277 = vld [vmem:[%s273 + $0x18] sm:$0xf]
      %v278 = vld [vmem:[%s273 + $0x20] sm:$0xf]
      %v279 = vld [vmem:[%s273 + $0x28] sm:$0xf]
      %v280 = vld [vmem:[%s273 + $0x30] sm:$0xf]
      %v281 = vld [vmem:[%s273 + $0x38] sm:$0xf]
      %s282 = scalar_lea.vmem %s1, 16
      %v283 = vld [vmem:[%s282] sm:$0xf]
      %v284 = vld [vmem:[%s282 + $0x4] sm:$0xf]
      %v285 = vld [vmem:[%s282 + $0x8] sm:$0xf]
      %v286 = vld [vmem:[%s282 + $0xc] sm:$0xf]
      %v295 = vunpack.c.l.b16 %v274
      %v296 = vunpack.c.l.b16 %v275
      %v297 = vunpack.c.l.b16 %v276
      %v298 = vunpack.c.l.b16 %v277
      %v299 = vunpack.c.l.b16 %v278
      %v300 = vunpack.c.l.b16 %v279
      %v301 = vunpack.c.l.b16 %v280
      %v302 = vunpack.c.l.b16 %v281
      %v303 = vpack.c.b16 %v296, %v295
      %v304 = vpack.c.b16 %v298, %v297
      %v305 = vpack.c.b16 %v300, %v299
      %v306 = vpack.c.b16 %v302, %v301
      %v311 = vunpack.c.l.b16 %v283
      %v312 = vunpack.c.l.b16 %v284
      %v313 = vunpack.c.l.b16 %v285
      %v314 = vunpack.c.l.b16 %v286
      %v315 = vpack.c.b16 %v312, %v311
      %v316 = vpack.c.b16 %v314, %v313
      %vm319 = vcmask 261120
      %v321 = vsel %vm319, %v303, 0
      %v324 = vsel %vm319, %v304, 0
      %v327 = vsel %vm319, %v305, 0
      %v330 = vsel %vm319, %v306, 0
      %332 = vmatpush.bf16.msra.mxu0 0
      %333 = vmatpush.bf16.msra.mxu0 0
      %334 = vmatpush.bf16.msra.mxu0 0
      %335 = vmatpush.bf16.msra.mxu0 0
      %336 = vmatpush.bf16.msra.mxu0 0
      %337 = vmatpush.bf16.msra.mxu0 0
      %338 = vmatpush.bf16.msra.mxu0 %v316
      %339 = vmatpush.bf16.msra.mxu0 %v315
      %340 = vmatmul.bf16.gmra.mxu0 %v321
      %v341 = vpop.f32.mrf.mxu0
      %v342 = vadd.f32 0.0, %v341
      %v343 = vpop.f32.mrf.mxu0
      %v344 = vadd.f32 0.0, %v343
      %345 = vmatmul.bf16.gmra.mxu0 %v324
      %v346 = vpop.f32.mrf.mxu0
      %v347 = vadd.f32 0.0, %v346
      %v348 = vpop.f32.mrf.mxu0
      %v349 = vadd.f32 0.0, %v348
      %350 = vmatmul.bf16.gmra.mxu0 %v327
      %v351 = vpop.f32.mrf.mxu0
      %v352 = vadd.f32 0.0, %v351
      %v353 = vpop.f32.mrf.mxu0
      %v354 = vadd.f32 0.0, %v353
      %355 = vmatmul.bf16.gmra.mxu0 %v330
      %v356 = vpop.f32.mrf.mxu0
      %v357 = vadd.f32 0.0, %v356
      %v358 = vpop.f32.mrf.mxu0
      %v359 = vadd.f32 0.0, %v358
      %360 = vdwg.mxu0
      %v369 = vunpack.c.l.b16 %v261
      %v370 = vunpack.c.l.b16 %v262
      %v371 = vunpack.c.l.b16 %v263
      %v372 = vunpack.c.l.b16 %v264
      %v373 = vunpack.c.l.b16 %v265
      %v374 = vunpack.c.l.b16 %v266
      %v375 = vunpack.c.l.b16 %v267
      %v376 = vunpack.c.l.b16 %v268
      %v377 = vpack.c.b16 %v370, %v369
      %v378 = vpack.c.b16 %v372, %v371
      %v379 = vpack.c.b16 %v374, %v373
      %v380 = vpack.c.b16 %v376, %v375
      %v385 = vunpack.c.l.b16 %v269
      %v386 = vunpack.c.l.b16 %v270
      %v387 = vunpack.c.l.b16 %v271
      %v388 = vunpack.c.l.b16 %v272
      %v389 = vpack.c.b16 %v386, %v385
      %v390 = vpack.c.b16 %v388, %v387
      %v394 = vsel %vm319, %v377, 0
      %v397 = vsel %vm319, %v378, 0
      %v400 = vsel %vm319, %v379, 0
      %v403 = vsel %vm319, %v380, 0
      %405 = vmatpush.bf16.msra.mxu0 0
      %406 = vmatpush.bf16.msra.mxu0 0
      %407 = vmatpush.bf16.msra.mxu0 0
      %408 = vmatpush.bf16.msra.mxu0 0
      %409 = vmatpush.bf16.msra.mxu0 0
      %410 = vmatpush.bf16.msra.mxu0 0
      %411 = vmatpush.bf16.msra.mxu0 %v390
      %412 = vmatpush.bf16.msra.mxu0 %v389
      %413 = vmatmul.bf16.gmra.mxu0 %v394
      %v414 = vpop.f32.mrf.mxu0
      %v415 = vadd.f32 %v342, %v414
      %v416 = vpop.f32.mrf.mxu0
      %v417 = vadd.f32 %v344, %v416
      %418 = vmatmul.bf16.gmra.mxu0 %v397
      %v419 = vpop.f32.mrf.mxu0
      %v420 = vadd.f32 %v347, %v419
      %v421 = vpop.f32.mrf.mxu0
      %v422 = vadd.f32 %v349, %v421
      %423 = vmatmul.bf16.gmra.mxu0 %v400
      %v424 = vpop.f32.mrf.mxu0
      %v425 = vadd.f32 %v352, %v424
      %v426 = vpop.f32.mrf.mxu0
      %v427 = vadd.f32 %v354, %v426
      %428 = vmatmul.bf16.gmra.mxu0 %v403
      %v429 = vpop.f32.mrf.mxu0
      %v430 = vadd.f32 %v357, %v429
      %v431 = vpop.f32.mrf.mxu0
      %v432 = vadd.f32 %v359, %v431
      %433 = vdwg.mxu0
      %v434 = vld [vmem:[%s248] sm:$0xf]
      %v435 = vld [vmem:[%s248 + $0x4] sm:$0x1]
      %v436 = vld [vmem:[%s248 + $0x8] sm:$0xf]
      %v437 = vld [vmem:[%s248 + $0xc] sm:$0x1]
      %v438 = vld [vmem:[%s248 + $0x10] sm:$0xf]
      %v439 = vld [vmem:[%s248 + $0x14] sm:$0x1]
      %v440 = vld [vmem:[%s248 + $0x18] sm:$0xf]
      %v441 = vld [vmem:[%s248 + $0x1c] sm:$0x1]
      %v442 = vld [vmem:[%s248 + $0x20] sm:$0xf]
      %v443 = vld [vmem:[%s248 + $0x24] sm:$0x1]
      %v444 = vld [vmem:[%s248 + $0x28] sm:$0xf]
      %v445 = vld [vmem:[%s248 + $0x2c] sm:$0x1]
      %v446 = vld [vmem:[%s248 + $0x30] sm:$0xf]
      %v447 = vld [vmem:[%s248 + $0x34] sm:$0x1]
      %v448 = vld [vmem:[%s248 + $0x38] sm:$0xf]
      %v449 = vld [vmem:[%s248 + $0x3c] sm:$0x1]
      %vm450 = vsmask.f32 3328
      %vm451 = vsmask.f32 7440
      %vm452 = vmor %vm450, %vm451
      %v454 = vshrl.u32 %v434, 16
      %v456 = vrot.slane %v454, 4
      %v457 = vshll.u32 %v434, 16
      %v459 = vrot.slane %v457, 5
      %v460 = vor.u32 %v456, %v459
      %v461 = vrot.slane %v460, 4
      %v463 = vshll.u32 %v435, 16
      %v465 = vrot.slane %v463, 5
      %v466 = vsel %vm452, %v461, %v465
      %v468 = vshrl.u32 %v436, 16
      %v470 = vrot.slane %v468, 4
      %v471 = vshll.u32 %v436, 16
      %v473 = vrot.slane %v471, 5
      %v474 = vor.u32 %v470, %v473
      %v475 = vrot.slane %v474, 4
      %v477 = vshll.u32 %v437, 16
      %v479 = vrot.slane %v477, 5
      %v480 = vsel %vm452, %v475, %v479
      %v482 = vshrl.u32 %v438, 16
      %v484 = vrot.slane %v482, 4
      %v485 = vshll.u32 %v438, 16
      %v487 = vrot.slane %v485, 5
      %v488 = vor.u32 %v484, %v487
      %v489 = vrot.slane %v488, 4
      %v491 = vshll.u32 %v439, 16
      %v493 = vrot.slane %v491, 5
      %v494 = vsel %vm452, %v489, %v493
      %v496 = vshrl.u32 %v440, 16
      %v498 = vrot.slane %v496, 4
      %v499 = vshll.u32 %v440, 16
      %v501 = vrot.slane %v499, 5
      %v502 = vor.u32 %v498, %v501
      %v503 = vrot.slane %v502, 4
      %v505 = vshll.u32 %v441, 16
      %v507 = vrot.slane %v505, 5
      %v508 = vsel %vm452, %v503, %v507
      %v510 = vshrl.u32 %v442, 16
      %v512 = vrot.slane %v510, 4
      %v513 = vshll.u32 %v442, 16
      %v515 = vrot.slane %v513, 5
      %v516 = vor.u32 %v512, %v515
      %v517 = vrot.slane %v516, 4
      %v519 = vshll.u32 %v443, 16
      %v521 = vrot.slane %v519, 5
      %v522 = vsel %vm452, %v517, %v521
      %v524 = vshrl.u32 %v444, 16
      %v526 = vrot.slane %v524, 4
      %v527 = vshll.u32 %v444, 16
      %v529 = vrot.slane %v527, 5
      %v530 = vor.u32 %v526, %v529
      %v531 = vrot.slane %v530, 4
      %v533 = vshll.u32 %v445, 16
      %v535 = vrot.slane %v533, 5
      %v536 = vsel %vm452, %v531, %v535
      %v538 = vshrl.u32 %v446, 16
      %v540 = vrot.slane %v538, 4
      %v541 = vshll.u32 %v446, 16
      %v543 = vrot.slane %v541, 5
      %v544 = vor.u32 %v540, %v543
      %v545 = vrot.slane %v544, 4
      %v547 = vshll.u32 %v447, 16
      %v549 = vrot.slane %v547, 5
      %v550 = vsel %vm452, %v545, %v549
      %v552 = vshrl.u32 %v448, 16
      %v554 = vrot.slane %v552, 4
      %v555 = vshll.u32 %v448, 16
      %v557 = vrot.slane %v555, 5
      %v558 = vor.u32 %v554, %v557
      %v559 = vrot.slane %v558, 4
      %v561 = vshll.u32 %v449, 16
      %v563 = vrot.slane %v561, 5
      %v564 = vsel %vm452, %v559, %v563
      %s565 = scalar_lea.vmem %s1, 32
      %v566 = vld [vmem:[%s565] sm:$0xf]
      %v567 = vld [vmem:[%s565 + $0x4] sm:$0xf]
      %v568 = vld [vmem:[%s565 + $0x8] sm:$0xf]
      %v569 = vld [vmem:[%s565 + $0xc] sm:$0xf]
      %v570 = vunpack.c.l.b16 %v466
      %v571 = vunpack.c.l.b16 %v480
      %v572 = vunpack.c.l.b16 %v494
      %v573 = vunpack.c.l.b16 %v508
      %v574 = vunpack.c.l.b16 %v522
      %v575 = vunpack.c.l.b16 %v536
      %v576 = vunpack.c.l.b16 %v550
      %v577 = vunpack.c.l.b16 %v564
      %v578 = vpack.c.b16 %v571, %v570
      %v579 = vpack.c.b16 %v573, %v572
      %v580 = vpack.c.b16 %v575, %v574
      %v581 = vpack.c.b16 %v577, %v576
      %v586 = vunpack.c.l.b16 %v566
      %v587 = vunpack.c.l.b16 %v567
      %v588 = vunpack.c.l.b16 %v568
      %v589 = vunpack.c.l.b16 %v569
      %v590 = vpack.c.b16 %v587, %v586
      %v591 = vpack.c.b16 %v589, %v588
      %v595 = vsel %vm319, %v578, 0
      %v598 = vsel %vm319, %v579, 0
      %v601 = vsel %vm319, %v580, 0
      %v604 = vsel %vm319, %v581, 0
      %606 = vmatpush.bf16.msra.mxu0 0
      %607 = vmatpush.bf16.msra.mxu0 0
      %608 = vmatpush.bf16.msra.mxu0 0
      %609 = vmatpush.bf16.msra.mxu0 0
      %610 = vmatpush.bf16.msra.mxu0 0
      %611 = vmatpush.bf16.msra.mxu0 0
      %612 = vmatpush.bf16.msra.mxu0 %v591
      %613 = vmatpush.bf16.msra.mxu0 %v590
      %614 = vmatmul.bf16.gmra.mxu0 %v595
      %v615 = vpop.f32.mrf.mxu0
      %v616 = vadd.f32 0.0, %v615
      %v617 = vpop.f32.mrf.mxu0
      %v618 = vadd.f32 0.0, %v617
      %619 = vmatmul.bf16.gmra.mxu0 %v598
      %v620 = vpop.f32.mrf.mxu0
      %v621 = vadd.f32 0.0, %v620
      %v622 = vpop.f32.mrf.mxu0
      %v623 = vadd.f32 0.0, %v622
      %624 = vmatmul.bf16.gmra.mxu0 %v601
      %v625 = vpop.f32.mrf.mxu0
      %v626 = vadd.f32 0.0, %v625
      %v627 = vpop.f32.mrf.mxu0
      %v628 = vadd.f32 0.0, %v627
      %629 = vmatmul.bf16.gmra.mxu0 %v604
      %v630 = vpop.f32.mrf.mxu0
      %v631 = vadd.f32 0.0, %v630
      %v632 = vpop.f32.mrf.mxu0
      %v633 = vadd.f32 0.0, %v632
      %634 = vdwg.mxu0
      %v635 = vadd.f32 %v415, %v616
      %v636 = vadd.f32 %v417, %v618
      %v637 = vadd.f32 %v420, %v621
      %v638 = vadd.f32 %v422, %v623
      %v639 = vadd.f32 %v425, %v626
      %v640 = vadd.f32 %v427, %v628
      %v641 = vadd.f32 %v430, %v631
      %v642 = vadd.f32 %v432, %v633
      %s643 = scalar_lea.vmem %s248, 144
      %v644 = vld [vmem:[%s643] sm:$0xf]
      %v645 = vld [vmem:[%s643 + $0x8] sm:$0xf]
      %v646 = vld [vmem:[%s643 + $0x10] sm:$0xf]
      %v647 = vld [vmem:[%s643 + $0x18] sm:$0xf]
      %v648 = vld [vmem:[%s643 + $0x20] sm:$0xf]
      %v649 = vld [vmem:[%s643 + $0x28] sm:$0xf]
      %v650 = vld [vmem:[%s643 + $0x30] sm:$0xf]
      %v651 = vld [vmem:[%s643 + $0x38] sm:$0xf]
      %s652 = scalar_lea.vmem %s1, 48
      %v653 = vld [vmem:[%s652] sm:$0xf]
      %v654 = vld [vmem:[%s652 + $0x4] sm:$0xf]
      %v655 = vld [vmem:[%s652 + $0x8] sm:$0xf]
      %v656 = vld [vmem:[%s652 + $0xc] sm:$0xf]
      %v665 = vunpack.c.l.b16 %v644
      %v666 = vunpack.c.l.b16 %v645
      %v667 = vunpack.c.l.b16 %v646
      %v668 = vunpack.c.l.b16 %v647
      %v669 = vunpack.c.l.b16 %v648
      %v670 = vunpack.c.l.b16 %v649
      %v671 = vunpack.c.l.b16 %v650
      %v672 = vunpack.c.l.b16 %v651
      %v673 = vpack.c.b16 %v666, %v665
      %v674 = vpack.c.b16 %v668, %v667
      %v675 = vpack.c.b16 %v670, %v669
      %v676 = vpack.c.b16 %v672, %v671
      %v681 = vunpack.c.l.b16 %v653
      %v682 = vunpack.c.l.b16 %v654
      %v683 = vunpack.c.l.b16 %v655
      %v684 = vunpack.c.l.b16 %v656
      %v685 = vpack.c.b16 %v682, %v681
      %v686 = vpack.c.b16 %v684, %v683
      %v690 = vsel %vm319, %v673, 0
      %v693 = vsel %vm319, %v674, 0
      %v696 = vsel %vm319, %v675, 0
      %v699 = vsel %vm319, %v676, 0
      %701 = vmatpush.bf16.msra.mxu0 0
      %702 = vmatpush.bf16.msra.mxu0 0
      %703 = vmatpush.bf16.msra.mxu0 0
      %704 = vmatpush.bf16.msra.mxu0 0
      %705 = vmatpush.bf16.msra.mxu0 0
      %706 = vmatpush.bf16.msra.mxu0 0
      %707 = vmatpush.bf16.msra.mxu0 %v686
      %708 = vmatpush.bf16.msra.mxu0 %v685
      %709 = vmatmul.bf16.gmra.mxu0 %v690
      %v710 = vpop.f32.mrf.mxu0
      %v711 = vadd.f32 0.0, %v710
      %v712 = vpop.f32.mrf.mxu0
      %v713 = vadd.f32 0.0, %v712
      %714 = vmatmul.bf16.gmra.mxu0 %v693
      %v715 = vpop.f32.mrf.mxu0
      %v716 = vadd.f32 0.0, %v715
      %v717 = vpop.f32.mrf.mxu0
      %v718 = vadd.f32 0.0, %v717
      %719 = vmatmul.bf16.gmra.mxu0 %v696
      %v720 = vpop.f32.mrf.mxu0
      %v721 = vadd.f32 0.0, %v720
      %v722 = vpop.f32.mrf.mxu0
      %v723 = vadd.f32 0.0, %v722
      %724 = vmatmul.bf16.gmra.mxu0 %v699
      %v725 = vpop.f32.mrf.mxu0
      %v726 = vadd.f32 0.0, %v725
      %v727 = vpop.f32.mrf.mxu0
      %v728 = vadd.f32 0.0, %v727
      %729 = vdwg.mxu0
      %v730 = vadd.f32 %v635, %v711
      %v731 = vadd.f32 %v636, %v713
      %v732 = vadd.f32 %v637, %v716
      %v733 = vadd.f32 %v638, %v718
      %v734 = vadd.f32 %v639, %v721
      %v735 = vadd.f32 %v640, %v723
      %v736 = vadd.f32 %v641, %v726
      %v737 = vadd.f32 %v642, %v728
      %s738 = scalar_lea.vmem %s248, 216
      %v739 = vld [vmem:[%s738] sm:$0xf]
      %v740 = vld [vmem:[%s738 + $0x8] sm:$0xf]
      %v741 = vld [vmem:[%s738 + $0x10] sm:$0xf]
      %v742 = vld [vmem:[%s738 + $0x18] sm:$0xf]
      %v743 = vld [vmem:[%s738 + $0x20] sm:$0xf]
      %v744 = vld [vmem:[%s738 + $0x28] sm:$0xf]
      %v745 = vld [vmem:[%s738 + $0x30] sm:$0xf]
      %v746 = vld [vmem:[%s738 + $0x38] sm:$0xf]
      %s747 = scalar_lea.vmem %s1, 64
      %v748 = vld [vmem:[%s747] sm:$0xf]
      %v749 = vld [vmem:[%s747 + $0x4] sm:$0xf]
      %v750 = vld [vmem:[%s747 + $0x8] sm:$0xf]
      %v751 = vld [vmem:[%s747 + $0xc] sm:$0xf]
      %v760 = vunpack.c.l.b16 %v739
      %v761 = vunpack.c.l.b16 %v740
      %v762 = vunpack.c.l.b16 %v741
      %v763 = vunpack.c.l.b16 %v742
      %v764 = vunpack.c.l.b16 %v743
      %v765 = vunpack.c.l.b16 %v744
      %v766 = vunpack.c.l.b16 %v745
      %v767 = vunpack.c.l.b16 %v746
      %v768 = vpack.c.b16 %v761, %v760
      %v769 = vpack.c.b16 %v763, %v762
      %v770 = vpack.c.b16 %v765, %v764
      %v771 = vpack.c.b16 %v767, %v766
      %v776 = vunpack.c.l.b16 %v748
      %v777 = vunpack.c.l.b16 %v749
      %v778 = vunpack.c.l.b16 %v750
      %v779 = vunpack.c.l.b16 %v751
      %v780 = vpack.c.b16 %v777, %v776
      %v781 = vpack.c.b16 %v779, %v778
      %v785 = vsel %vm319, %v768, 0
      %v788 = vsel %vm319, %v769, 0
      %v791 = vsel %vm319, %v770, 0
      %v794 = vsel %vm319, %v771, 0
      %796 = vmatpush.bf16.msra.mxu0 0
      %797 = vmatpush.bf16.msra.mxu0 0
      %798 = vmatpush.bf16.msra.mxu0 0
      %799 = vmatpush.bf16.msra.mxu0 0
      %800 = vmatpush.bf16.msra.mxu0 0
      %801 = vmatpush.bf16.msra.mxu0 0
      %802 = vmatpush.bf16.msra.mxu0 %v781
      %803 = vmatpush.bf16.msra.mxu0 %v780
      %804 = vmatmul.bf16.gmra.mxu0 %v785
      %v805 = vpop.f32.mrf.mxu0
      %v806 = vadd.f32 0.0, %v805
      %v807 = vpop.f32.mrf.mxu0
      %v808 = vadd.f32 0.0, %v807
      %809 = vmatmul.bf16.gmra.mxu0 %v788
      %v810 = vpop.f32.mrf.mxu0
      %v811 = vadd.f32 0.0, %v810
      %v812 = vpop.f32.mrf.mxu0
      %v813 = vadd.f32 0.0, %v812
      %814 = vmatmul.bf16.gmra.mxu0 %v791
      %v815 = vpop.f32.mrf.mxu0
      %v816 = vadd.f32 0.0, %v815
      %v817 = vpop.f32.mrf.mxu0
      %v818 = vadd.f32 0.0, %v817
      %819 = vmatmul.bf16.gmra.mxu0 %v794
      %v820 = vpop.f32.mrf.mxu0
      %v821 = vadd.f32 0.0, %v820
      %v822 = vpop.f32.mrf.mxu0
      %v823 = vadd.f32 0.0, %v822
      %824 = vdwg.mxu0
      %v825 = vadd.f32 %v730, %v806
      %v826 = vadd.f32 %v731, %v808
      %v827 = vadd.f32 %v732, %v811
      %v828 = vadd.f32 %v733, %v813
      %v829 = vadd.f32 %v734, %v816
      %v830 = vadd.f32 %v735, %v818
      %v831 = vadd.f32 %v736, %v821
      %v832 = vadd.f32 %v737, %v823
      %v833 = vld [vmem:[%s2] sm:$0xf]
      %v834 = vld [vmem:[%s2 + $0x4] sm:$0xf]
      %v835 = vld [vmem:[%s2 + $0x8] sm:$0xf]
      %v836 = vld [vmem:[%s2 + $0xc] sm:$0xf]
      %v841 = vunpack.c.l.b16 %v833
      %v842 = vunpack.c.l.b16 %v834
      %v843 = vunpack.c.l.b16 %v835
      %v844 = vunpack.c.l.b16 %v836
      %v845 = vpack.c.b16 %v842, %v841
      %v846 = vpack.c.b16 %v844, %v843
      %849 = vmatpush.bf16.msra.mxu0 0
      %850 = vmatpush.bf16.msra.mxu0 0
      %851 = vmatpush.bf16.msra.mxu0 0
      %852 = vmatpush.bf16.msra.mxu0 0
      %853 = vmatpush.bf16.msra.mxu0 0
      %854 = vmatpush.bf16.msra.mxu0 0
      %855 = vmatpush.bf16.msra.mxu0 %v846
      %856 = vmatpush.bf16.msra.mxu0 %v845
      %857 = vmatmul.bf16.gmra.mxu0 %v785
      %v858 = vpop.f32.mrf.mxu0
      %v859 = vadd.f32 0.0, %v858
      %v860 = vpop.f32.mrf.mxu0
      %v861 = vadd.f32 0.0, %v860
      %862 = vmatmul.bf16.gmra.mxu0 %v788
      %v863 = vpop.f32.mrf.mxu0
      %v864 = vadd.f32 0.0, %v863
      %v865 = vpop.f32.mrf.mxu0
      %v866 = vadd.f32 0.0, %v865
      %867 = vmatmul.bf16.gmra.mxu0 %v791
      %v868 = vpop.f32.mrf.mxu0
      %v869 = vadd.f32 0.0, %v868
      %v870 = vpop.f32.mrf.mxu0
      %v871 = vadd.f32 0.0, %v870
      %872 = vmatmul.bf16.gmra.mxu0 %v794
      %v873 = vpop.f32.mrf.mxu0
      %v874 = vadd.f32 0.0, %v873
      %v875 = vpop.f32.mrf.mxu0
      %v876 = vadd.f32 0.0, %v875
      %877 = vdwg.mxu0
      %v878 = vld [vmem:[%s643] sm:$0xf]
      %v879 = vld [vmem:[%s643 + $0x4] sm:$0x1]
      %v880 = vld [vmem:[%s643 + $0x8] sm:$0xf]
      %v881 = vld [vmem:[%s643 + $0xc] sm:$0x1]
      %v882 = vld [vmem:[%s643 + $0x10] sm:$0xf]
      %v883 = vld [vmem:[%s643 + $0x14] sm:$0x1]
      %v884 = vld [vmem:[%s643 + $0x18] sm:$0xf]
      %v885 = vld [vmem:[%s643 + $0x1c] sm:$0x1]
      %v886 = vld [vmem:[%s643 + $0x20] sm:$0xf]
      %v887 = vld [vmem:[%s643 + $0x24] sm:$0x1]
      %v888 = vld [vmem:[%s643 + $0x28] sm:$0xf]
      %v889 = vld [vmem:[%s643 + $0x2c] sm:$0x1]
      %v890 = vld [vmem:[%s643 + $0x30] sm:$0xf]
      %v891 = vld [vmem:[%s643 + $0x34] sm:$0x1]
      %v892 = vld [vmem:[%s643 + $0x38] sm:$0xf]
      %v893 = vld [vmem:[%s643 + $0x3c] sm:$0x1]
      %v895 = vshrl.u32 %v878, 16
      %v897 = vrot.slane %v895, 4
      %v898 = vshll.u32 %v878, 16
      %v900 = vrot.slane %v898, 5
      %v901 = vor.u32 %v897, %v900
      %v902 = vrot.slane %v901, 4
      %v904 = vshll.u32 %v879, 16
      %v906 = vrot.slane %v904, 5
      %v907 = vsel %vm452, %v902, %v906
      %v909 = vshrl.u32 %v880, 16
      %v911 = vrot.slane %v909, 4
      %v912 = vshll.u32 %v880, 16
      %v914 = vrot.slane %v912, 5
      %v915 = vor.u32 %v911, %v914
      %v916 = vrot.slane %v915, 4
      %v918 = vshll.u32 %v881, 16
      %v920 = vrot.slane %v918, 5
      %v921 = vsel %vm452, %v916, %v920
      %v923 = vshrl.u32 %v882, 16
      %v925 = vrot.slane %v923, 4
      %v926 = vshll.u32 %v882, 16
      %v928 = vrot.slane %v926, 5
      %v929 = vor.u32 %v925, %v928
      %v930 = vrot.slane %v929, 4
      %v932 = vshll.u32 %v883, 16
      %v934 = vrot.slane %v932, 5
      %v935 = vsel %vm452, %v930, %v934
      %v937 = vshrl.u32 %v884, 16
      %v939 = vrot.slane %v937, 4
      %v940 = vshll.u32 %v884, 16
      %v942 = vrot.slane %v940, 5
      %v943 = vor.u32 %v939, %v942
      %v944 = vrot.slane %v943, 4
      %v946 = vshll.u32 %v885, 16
      %v948 = vrot.slane %v946, 5
      %v949 = vsel %vm452, %v944, %v948
      %v951 = vshrl.u32 %v886, 16
      %v953 = vrot.slane %v951, 4
      %v954 = vshll.u32 %v886, 16
      %v956 = vrot.slane %v954, 5
      %v957 = vor.u32 %v953, %v956
      %v958 = vrot.slane %v957, 4
      %v960 = vshll.u32 %v887, 16
      %v962 = vrot.slane %v960, 5
      %v963 = vsel %vm452, %v958, %v962
      %v965 = vshrl.u32 %v888, 16
      %v967 = vrot.slane %v965, 4
      %v968 = vshll.u32 %v888, 16
      %v970 = vrot.slane %v968, 5
      %v971 = vor.u32 %v967, %v970
      %v972 = vrot.slane %v971, 4
      %v974 = vshll.u32 %v889, 16
      %v976 = vrot.slane %v974, 5
      %v977 = vsel %vm452, %v972, %v976
      %v979 = vshrl.u32 %v890, 16
      %v981 = vrot.slane %v979, 4
      %v982 = vshll.u32 %v890, 16
      %v984 = vrot.slane %v982, 5
      %v985 = vor.u32 %v981, %v984
      %v986 = vrot.slane %v985, 4
      %v988 = vshll.u32 %v891, 16
      %v990 = vrot.slane %v988, 5
      %v991 = vsel %vm452, %v986, %v990
      %v993 = vshrl.u32 %v892, 16
      %v995 = vrot.slane %v993, 4
      %v996 = vshll.u32 %v892, 16
      %v998 = vrot.slane %v996, 5
      %v999 = vor.u32 %v995, %v998
      %v1000 = vrot.slane %v999, 4
      %v1002 = vshll.u32 %v893, 16
      %v1004 = vrot.slane %v1002, 5
      %v1005 = vsel %vm452, %v1000, %v1004
      %s1006 = scalar_lea.vmem %s1, 80
      %v1007 = vld [vmem:[%s1006] sm:$0xf]
      %v1008 = vld [vmem:[%s1006 + $0x4] sm:$0xf]
      %v1009 = vld [vmem:[%s1006 + $0x8] sm:$0xf]
      %v1010 = vld [vmem:[%s1006 + $0xc] sm:$0xf]
      %v1011 = vunpack.c.l.b16 %v907
      %v1012 = vunpack.c.l.b16 %v921
      %v1013 = vunpack.c.l.b16 %v935
      %v1014 = vunpack.c.l.b16 %v949
      %v1015 = vunpack.c.l.b16 %v963
      %v1016 = vunpack.c.l.b16 %v977
      %v1017 = vunpack.c.l.b16 %v991
      %v1018 = vunpack.c.l.b16 %v1005
      %v1019 = vpack.c.b16 %v1012, %v1011
      %v1020 = vpack.c.b16 %v1014, %v1013
      %v1021 = vpack.c.b16 %v1016, %v1015
      %v1022 = vpack.c.b16 %v1018, %v1017
      %v1027 = vunpack.c.l.b16 %v1007
      %v1028 = vunpack.c.l.b16 %v1008
      %v1029 = vunpack.c.l.b16 %v1009
      %v1030 = vunpack.c.l.b16 %v1010
      %v1031 = vpack.c.b16 %v1028, %v1027
      %v1032 = vpack.c.b16 %v1030, %v1029
      %v1036 = vsel %vm319, %v1019, 0
      %v1039 = vsel %vm319, %v1020, 0
      %v1042 = vsel %vm319, %v1021, 0
      %v1045 = vsel %vm319, %v1022, 0
      %1047 = vmatpush.bf16.msra.mxu0 0
      %1048 = vmatpush.bf16.msra.mxu0 0
      %1049 = vmatpush.bf16.msra.mxu0 0
      %1050 = vmatpush.bf16.msra.mxu0 0
      %1051 = vmatpush.bf16.msra.mxu0 0
      %1052 = vmatpush.bf16.msra.mxu0 0
      %1053 = vmatpush.bf16.msra.mxu0 %v1032
      %1054 = vmatpush.bf16.msra.mxu0 %v1031
      %1055 = vmatmul.bf16.gmra.mxu0 %v1036
      %v1056 = vpop.f32.mrf.mxu0
      %v1057 = vadd.f32 0.0, %v1056
      %v1058 = vpop.f32.mrf.mxu0
      %v1059 = vadd.f32 0.0, %v1058
      %1060 = vmatmul.bf16.gmra.mxu0 %v1039
      %v1061 = vpop.f32.mrf.mxu0
      %v1062 = vadd.f32 0.0, %v1061
      %v1063 = vpop.f32.mrf.mxu0
      %v1064 = vadd.f32 0.0, %v1063
      %1065 = vmatmul.bf16.gmra.mxu0 %v1042
      %v1066 = vpop.f32.mrf.mxu0
      %v1067 = vadd.f32 0.0, %v1066
      %v1068 = vpop.f32.mrf.mxu0
      %v1069 = vadd.f32 0.0, %v1068
      %1070 = vmatmul.bf16.gmra.mxu0 %v1045
      %v1071 = vpop.f32.mrf.mxu0
      %v1072 = vadd.f32 0.0, %v1071
      %v1073 = vpop.f32.mrf.mxu0
      %v1074 = vadd.f32 0.0, %v1073
      %1075 = vdwg.mxu0
      %v1076 = vadd.f32 %v825, %v1057
      %v1077 = vadd.f32 %v826, %v1059
      %v1078 = vadd.f32 %v827, %v1062
      %v1079 = vadd.f32 %v828, %v1064
      %v1080 = vadd.f32 %v829, %v1067
      %v1081 = vadd.f32 %v830, %v1069
      %v1082 = vadd.f32 %v831, %v1072
      %v1083 = vadd.f32 %v832, %v1074
      %s1084 = scalar_lea.vmem %s248, 8
      %v1085 = vld [vmem:[%s1084] sm:$0xf]
      %v1086 = vld [vmem:[%s1084 + $0x8] sm:$0xf]
      %v1087 = vld [vmem:[%s1084 + $0x10] sm:$0xf]
      %v1088 = vld [vmem:[%s1084 + $0x18] sm:$0xf]
      %v1089 = vld [vmem:[%s1084 + $0x20] sm:$0xf]
      %v1090 = vld [vmem:[%s1084 + $0x28] sm:$0xf]
      %v1091 = vld [vmem:[%s1084 + $0x30] sm:$0xf]
      %v1092 = vld [vmem:[%s1084 + $0x38] sm:$0xf]
      %s1093 = scalar_lea.vmem %s1, 96
      %v1094 = vld [vmem:[%s1093] sm:$0xf]
      %v1095 = vld [vmem:[%s1093 + $0x4] sm:$0xf]
      %v1096 = vld [vmem:[%s1093 + $0x8] sm:$0xf]
      %v1097 = vld [vmem:[%s1093 + $0xc] sm:$0xf]
      %v1106 = vunpack.c.l.b16 %v1085
      %v1107 = vunpack.c.l.b16 %v1086
      %v1108 = vunpack.c.l.b16 %v1087
      %v1109 = vunpack.c.l.b16 %v1088
      %v1110 = vunpack.c.l.b16 %v1089
      %v1111 = vunpack.c.l.b16 %v1090
      %v1112 = vunpack.c.l.b16 %v1091
      %v1113 = vunpack.c.l.b16 %v1092
      %v1114 = vpack.c.b16 %v1107, %v1106
      %v1115 = vpack.c.b16 %v1109, %v1108
      %v1116 = vpack.c.b16 %v1111, %v1110
      %v1117 = vpack.c.b16 %v1113, %v1112
      %v1122 = vunpack.c.l.b16 %v1094
      %v1123 = vunpack.c.l.b16 %v1095
      %v1124 = vunpack.c.l.b16 %v1096
      %v1125 = vunpack.c.l.b16 %v1097
      %v1126 = vpack.c.b16 %v1123, %v1122
      %v1127 = vpack.c.b16 %v1125, %v1124
      %v1131 = vsel %vm319, %v1114, 0
      %v1134 = vsel %vm319, %v1115, 0
      %v1137 = vsel %vm319, %v1116, 0
      %v1140 = vsel %vm319, %v1117, 0
      %1142 = vmatpush.bf16.msra.mxu0 0
      %1143 = vmatpush.bf16.msra.mxu0 0
      %1144 = vmatpush.bf16.msra.mxu0 0
      %1145 = vmatpush.bf16.msra.mxu0 0
      %1146 = vmatpush.bf16.msra.mxu0 0
      %1147 = vmatpush.bf16.msra.mxu0 0
      %1148 = vmatpush.bf16.msra.mxu0 %v1127
      %1149 = vmatpush.bf16.msra.mxu0 %v1126
      %1150 = vmatmul.bf16.gmra.mxu0 %v1131
      %v1151 = vpop.f32.mrf.mxu0
      %v1152 = vadd.f32 0.0, %v1151
      %v1153 = vpop.f32.mrf.mxu0
      %v1154 = vadd.f32 0.0, %v1153
      %1155 = vmatmul.bf16.gmra.mxu0 %v1134
      %v1156 = vpop.f32.mrf.mxu0
      %v1157 = vadd.f32 0.0, %v1156
      %v1158 = vpop.f32.mrf.mxu0
      %v1159 = vadd.f32 0.0, %v1158
      %1160 = vmatmul.bf16.gmra.mxu0 %v1137
      %v1161 = vpop.f32.mrf.mxu0
      %v1162 = vadd.f32 0.0, %v1161
      %v1163 = vpop.f32.mrf.mxu0
      %v1164 = vadd.f32 0.0, %v1163
      %1165 = vmatmul.bf16.gmra.mxu0 %v1140
      %v1166 = vpop.f32.mrf.mxu0
      %v1167 = vadd.f32 0.0, %v1166
      %v1168 = vpop.f32.mrf.mxu0
      %v1169 = vadd.f32 0.0, %v1168
      %1170 = vdwg.mxu0
      %v1171 = vadd.f32 %v1076, %v1152
      %v1172 = vadd.f32 %v1077, %v1154
      %v1173 = vadd.f32 %v1078, %v1157
      %v1174 = vadd.f32 %v1079, %v1159
      %v1175 = vadd.f32 %v1080, %v1162
      %v1176 = vadd.f32 %v1081, %v1164
      %v1177 = vadd.f32 %v1082, %v1167
      %v1178 = vadd.f32 %v1083, %v1169
      %s1179 = scalar_lea.vmem %s248, 80
      %v1180 = vld [vmem:[%s1179] sm:$0xf]
      %v1181 = vld [vmem:[%s1179 + $0x8] sm:$0xf]
      %v1182 = vld [vmem:[%s1179 + $0x10] sm:$0xf]
      %v1183 = vld [vmem:[%s1179 + $0x18] sm:$0xf]
      %v1184 = vld [vmem:[%s1179 + $0x20] sm:$0xf]
      %v1185 = vld [vmem:[%s1179 + $0x28] sm:$0xf]
      %v1186 = vld [vmem:[%s1179 + $0x30] sm:$0xf]
      %v1187 = vld [vmem:[%s1179 + $0x38] sm:$0xf]
      %s1188 = scalar_lea.vmem %s1, 112
      %v1189 = vld [vmem:[%s1188] sm:$0xf]
      %v1190 = vld [vmem:[%s1188 + $0x4] sm:$0xf]
      %v1191 = vld [vmem:[%s1188 + $0x8] sm:$0xf]
      %v1192 = vld [vmem:[%s1188 + $0xc] sm:$0xf]
      %v1201 = vunpack.c.l.b16 %v1180
      %v1202 = vunpack.c.l.b16 %v1181
      %v1203 = vunpack.c.l.b16 %v1182
      %v1204 = vunpack.c.l.b16 %v1183
      %v1205 = vunpack.c.l.b16 %v1184
      %v1206 = vunpack.c.l.b16 %v1185
      %v1207 = vunpack.c.l.b16 %v1186
      %v1208 = vunpack.c.l.b16 %v1187
      %v1209 = vpack.c.b16 %v1202, %v1201
      %v1210 = vpack.c.b16 %v1204, %v1203
      %v1211 = vpack.c.b16 %v1206, %v1205
      %v1212 = vpack.c.b16 %v1208, %v1207
      %v1217 = vunpack.c.l.b16 %v1189
      %v1218 = vunpack.c.l.b16 %v1190
      %v1219 = vunpack.c.l.b16 %v1191
      %v1220 = vunpack.c.l.b16 %v1192
      %v1221 = vpack.c.b16 %v1218, %v1217
      %v1222 = vpack.c.b16 %v1220, %v1219
      %v1226 = vsel %vm319, %v1209, 0
      %v1229 = vsel %vm319, %v1210, 0
      %v1232 = vsel %vm319, %v1211, 0
      %v1235 = vsel %vm319, %v1212, 0
      %1237 = vmatpush.bf16.msra.mxu0 0
      %1238 = vmatpush.bf16.msra.mxu0 0
      %1239 = vmatpush.bf16.msra.mxu0 0
      %1240 = vmatpush.bf16.msra.mxu0 0
      %1241 = vmatpush.bf16.msra.mxu0 0
      %1242 = vmatpush.bf16.msra.mxu0 0
      %1243 = vmatpush.bf16.msra.mxu0 %v1222
      %1244 = vmatpush.bf16.msra.mxu0 %v1221
      %1245 = vmatmul.bf16.gmra.mxu0 %v1226
      %v1246 = vpop.f32.mrf.mxu0
      %v1247 = vadd.f32 0.0, %v1246
      %v1248 = vpop.f32.mrf.mxu0
      %v1249 = vadd.f32 0.0, %v1248
      %1250 = vmatmul.bf16.gmra.mxu0 %v1229
      %v1251 = vpop.f32.mrf.mxu0
      %v1252 = vadd.f32 0.0, %v1251
      %v1253 = vpop.f32.mrf.mxu0
      %v1254 = vadd.f32 0.0, %v1253
      %1255 = vmatmul.bf16.gmra.mxu0 %v1232
      %v1256 = vpop.f32.mrf.mxu0
      %v1257 = vadd.f32 0.0, %v1256
      %v1258 = vpop.f32.mrf.mxu0
      %v1259 = vadd.f32 0.0, %v1258
      %1260 = vmatmul.bf16.gmra.mxu0 %v1235
      %v1261 = vpop.f32.mrf.mxu0
      %v1262 = vadd.f32 0.0, %v1261
      %v1263 = vpop.f32.mrf.mxu0
      %v1264 = vadd.f32 0.0, %v1263
      %1265 = vdwg.mxu0
      %v1266 = vadd.f32 %v1171, %v1247
      %v1267 = vadd.f32 %v1172, %v1249
      %v1268 = vadd.f32 %v1173, %v1252
      %v1269 = vadd.f32 %v1174, %v1254
      %v1270 = vadd.f32 %v1175, %v1257
      %v1271 = vadd.f32 %v1176, %v1259
      %v1272 = vadd.f32 %v1177, %v1262
      %v1273 = vadd.f32 %v1178, %v1264
      %v1274 = vld [vmem:[%s1084] sm:$0xf]
      %v1275 = vld [vmem:[%s1084 + $0x4] sm:$0x1]
      %v1276 = vld [vmem:[%s1084 + $0x8] sm:$0xf]
      %v1277 = vld [vmem:[%s1084 + $0xc] sm:$0x1]
      %v1278 = vld [vmem:[%s1084 + $0x10] sm:$0xf]
      %v1279 = vld [vmem:[%s1084 + $0x14] sm:$0x1]
      %v1280 = vld [vmem:[%s1084 + $0x18] sm:$0xf]
      %v1281 = vld [vmem:[%s1084 + $0x1c] sm:$0x1]
      %v1282 = vld [vmem:[%s1084 + $0x20] sm:$0xf]
      %v1283 = vld [vmem:[%s1084 + $0x24] sm:$0x1]
      %v1284 = vld [vmem:[%s1084 + $0x28] sm:$0xf]
      %v1285 = vld [vmem:[%s1084 + $0x2c] sm:$0x1]
      %v1286 = vld [vmem:[%s1084 + $0x30] sm:$0xf]
      %v1287 = vld [vmem:[%s1084 + $0x34] sm:$0x1]
      %v1288 = vld [vmem:[%s1084 + $0x38] sm:$0xf]
      %v1289 = vld [vmem:[%s1084 + $0x3c] sm:$0x1]
      %v1291 = vshrl.u32 %v1274, 16
      %v1293 = vrot.slane %v1291, 4
      %v1294 = vshll.u32 %v1274, 16
      %v1296 = vrot.slane %v1294, 5
      %v1297 = vor.u32 %v1293, %v1296
      %v1298 = vrot.slane %v1297, 4
      %v1300 = vshll.u32 %v1275, 16
      %v1302 = vrot.slane %v1300, 5
      %v1303 = vsel %vm452, %v1298, %v1302
      %v1305 = vshrl.u32 %v1276, 16
      %v1307 = vrot.slane %v1305, 4
      %v1308 = vshll.u32 %v1276, 16
      %v1310 = vrot.slane %v1308, 5
      %v1311 = vor.u32 %v1307, %v1310
      %v1312 = vrot.slane %v1311, 4
      %v1314 = vshll.u32 %v1277, 16
      %v1316 = vrot.slane %v1314, 5
      %v1317 = vsel %vm452, %v1312, %v1316
      %v1319 = vshrl.u32 %v1278, 16
      %v1321 = vrot.slane %v1319, 4
      %v1322 = vshll.u32 %v1278, 16
      %v1324 = vrot.slane %v1322, 5
      %v1325 = vor.u32 %v1321, %v1324
      %v1326 = vrot.slane %v1325, 4
      %v1328 = vshll.u32 %v1279, 16
      %v1330 = vrot.slane %v1328, 5
      %v1331 = vsel %vm452, %v1326, %v1330
      %v1333 = vshrl.u32 %v1280, 16
      %v1335 = vrot.slane %v1333, 4
      %v1336 = vshll.u32 %v1280, 16
      %v1338 = vrot.slane %v1336, 5
      %v1339 = vor.u32 %v1335, %v1338
      %v1340 = vrot.slane %v1339, 4
      %v1342 = vshll.u32 %v1281, 16
      %v1344 = vrot.slane %v1342, 5
      %v1345 = vsel %vm452, %v1340, %v1344
      %v1347 = vshrl.u32 %v1282, 16
      %v1349 = vrot.slane %v1347, 4
      %v1350 = vshll.u32 %v1282, 16
      %v1352 = vrot.slane %v1350, 5
      %v1353 = vor.u32 %v1349, %v1352
      %v1354 = vrot.slane %v1353, 4
      %v1356 = vshll.u32 %v1283, 16
      %v1358 = vrot.slane %v1356, 5
      %v1359 = vsel %vm452, %v1354, %v1358
      %v1361 = vshrl.u32 %v1284, 16
      %v1363 = vrot.slane %v1361, 4
      %v1364 = vshll.u32 %v1284, 16
      %v1366 = vrot.slane %v1364, 5
      %v1367 = vor.u32 %v1363, %v1366
      %v1368 = vrot.slane %v1367, 4
      %v1370 = vshll.u32 %v1285, 16
      %v1372 = vrot.slane %v1370, 5
      %v1373 = vsel %vm452, %v1368, %v1372
      %v1375 = vshrl.u32 %v1286, 16
      %v1377 = vrot.slane %v1375, 4
      %v1378 = vshll.u32 %v1286, 16
      %v1380 = vrot.slane %v1378, 5
      %v1381 = vor.u32 %v1377, %v1380
      %v1382 = vrot.slane %v1381, 4
      %v1384 = vshll.u32 %v1287, 16
      %v1386 = vrot.slane %v1384, 5
      %v1387 = vsel %vm452, %v1382, %v1386
      %v1389 = vshrl.u32 %v1288, 16
      %v1391 = vrot.slane %v1389, 4
      %v1392 = vshll.u32 %v1288, 16
      %v1394 = vrot.slane %v1392, 5
      %v1395 = vor.u32 %v1391, %v1394
      %v1396 = vrot.slane %v1395, 4
      %v1398 = vshll.u32 %v1289, 16
      %v1400 = vrot.slane %v1398, 5
      %v1401 = vsel %vm452, %v1396, %v1400
      %s1402 = scalar_lea.vmem %s1, 128
      %v1403 = vld [vmem:[%s1402] sm:$0xf]
      %v1404 = vld [vmem:[%s1402 + $0x4] sm:$0xf]
      %v1405 = vld [vmem:[%s1402 + $0x8] sm:$0xf]
      %v1406 = vld [vmem:[%s1402 + $0xc] sm:$0xf]
      %v1407 = vunpack.c.l.b16 %v1303
      %v1408 = vunpack.c.l.b16 %v1317
      %v1409 = vunpack.c.l.b16 %v1331
      %v1410 = vunpack.c.l.b16 %v1345
      %v1411 = vunpack.c.l.b16 %v1359
      %v1412 = vunpack.c.l.b16 %v1373
      %v1413 = vunpack.c.l.b16 %v1387
      %v1414 = vunpack.c.l.b16 %v1401
      %v1415 = vpack.c.b16 %v1408, %v1407
      %v1416 = vpack.c.b16 %v1410, %v1409
      %v1417 = vpack.c.b16 %v1412, %v1411
      %v1418 = vpack.c.b16 %v1414, %v1413
      %v1423 = vunpack.c.l.b16 %v1403
      %v1424 = vunpack.c.l.b16 %v1404
      %v1425 = vunpack.c.l.b16 %v1405
      %v1426 = vunpack.c.l.b16 %v1406
      %v1427 = vpack.c.b16 %v1424, %v1423
      %v1428 = vpack.c.b16 %v1426, %v1425
      %v1432 = vsel %vm319, %v1415, 0
      %v1435 = vsel %vm319, %v1416, 0
      %v1438 = vsel %vm319, %v1417, 0
      %v1441 = vsel %vm319, %v1418, 0
      %1443 = vmatpush.bf16.msra.mxu0 0
      %1444 = vmatpush.bf16.msra.mxu0 0
      %1445 = vmatpush.bf16.msra.mxu0 0
      %1446 = vmatpush.bf16.msra.mxu0 0
      %1447 = vmatpush.bf16.msra.mxu0 0
      %1448 = vmatpush.bf16.msra.mxu0 0
      %1449 = vmatpush.bf16.msra.mxu0 %v1428
      %1450 = vmatpush.bf16.msra.mxu0 %v1427
      %1451 = vmatmul.bf16.gmra.mxu0 %v1432
      %v1452 = vpop.f32.mrf.mxu0
      %v1453 = vadd.f32 0.0, %v1452
      %v1454 = vpop.f32.mrf.mxu0
      %v1455 = vadd.f32 0.0, %v1454
      %1456 = vmatmul.bf16.gmra.mxu0 %v1435
      %v1457 = vpop.f32.mrf.mxu0
      %v1458 = vadd.f32 0.0, %v1457
      %v1459 = vpop.f32.mrf.mxu0
      %v1460 = vadd.f32 0.0, %v1459
      %1461 = vmatmul.bf16.gmra.mxu0 %v1438
      %v1462 = vpop.f32.mrf.mxu0
      %v1463 = vadd.f32 0.0, %v1462
      %v1464 = vpop.f32.mrf.mxu0
      %v1465 = vadd.f32 0.0, %v1464
      %1466 = vmatmul.bf16.gmra.mxu0 %v1441
      %v1467 = vpop.f32.mrf.mxu0
      %v1468 = vadd.f32 0.0, %v1467
      %v1469 = vpop.f32.mrf.mxu0
      %v1470 = vadd.f32 0.0, %v1469
      %1471 = vdwg.mxu0
      %v1472 = vadd.f32 %v1266, %v1453
      %v1473 = vadd.f32 %v1267, %v1455
      %v1474 = vadd.f32 %v1268, %v1458
      %v1475 = vadd.f32 %v1269, %v1460
      %v1476 = vadd.f32 %v1270, %v1463
      %v1477 = vadd.f32 %v1271, %v1465
      %v1478 = vadd.f32 %v1272, %v1468
      %v1479 = vadd.f32 %v1273, %v1470
      %v1480 = vpack.c.bf16 %v1472, %v1472
      %v1481 = vpack.c.bf16 %v1473, %v1473
      %v1482 = vpack.c.bf16 %v1474, %v1474
      %v1483 = vpack.c.bf16 %v1475, %v1475
      %v1484 = vpack.c.bf16 %v1476, %v1476
      %v1485 = vpack.c.bf16 %v1477, %v1477
      %v1486 = vpack.c.bf16 %v1478, %v1478
      %v1487 = vpack.c.bf16 %v1479, %v1479
      %vm1488 = vcmask 257024
      %1489 = vst.msk [vmem:[%s253] sm:$0xf] %vm1488, %v1480
      %1490 = vst.msk [vmem:[%s253 + $0x4] sm:$0xf] %vm1488, %v1481
      %1491 = vst.msk [vmem:[%s253 + $0x8] sm:$0xf] %vm1488, %v1482
      %1492 = vst.msk [vmem:[%s253 + $0xc] sm:$0xf] %vm1488, %v1483
      %1493 = vst.msk [vmem:[%s253 + $0x10] sm:$0xf] %vm1488, %v1484
      %1494 = vst.msk [vmem:[%s253 + $0x14] sm:$0xf] %vm1488, %v1485
      %1495 = vst.msk [vmem:[%s253 + $0x18] sm:$0xf] %vm1488, %v1486
      %1496 = vst.msk [vmem:[%s253 + $0x1c] sm:$0xf] %vm1488, %v1487
      %v1497 = vsel %vm319, %v1472, 0.0
      %v1498 = vsel %vm319, %v1473, 0.0
      %v1499 = vadd.f32 %v1497, %v1498
      %v1500 = vsel %vm319, %v1474, 0.0
      %v1501 = vadd.f32 %v1499, %v1500
      %v1502 = vsel %vm319, %v1475, 0.0
      %v1503 = vadd.f32 %v1501, %v1502
      %v1504 = vsel %vm319, %v1476, 0.0
      %v1505 = vadd.f32 %v1503, %v1504
      %v1506 = vsel %vm319, %v1477, 0.0
      %v1507 = vadd.f32 %v1505, %v1506
      %v1508 = vsel %vm319, %v1478, 0.0
      %v1509 = vadd.f32 %v1507, %v1508
      %v1510 = vsel %vm319, %v1479, 0.0
      %v1511 = vadd.f32 %v1509, %v1510
      %v1512 = vrot.slane %v1511, 4
      %v1513 = vadd.f32 %v1511, %v1512
      %v1514 = vrot.slane %v1513, 2
      %v1515 = vadd.f32 %v1513, %v1514
      %v1516 = vrot.slane %v1515, 1
      %v1517 = vadd.f32 %v1515, %v1516
      %v1518 = vmul.f32 %v1472, %v1472
      %v1519 = vmul.f32 %v1473, %v1473
      %v1520 = vmul.f32 %v1474, %v1474
      %v1521 = vmul.f32 %v1475, %v1475
      %v1522 = vmul.f32 %v1476, %v1476
      %v1523 = vmul.f32 %v1477, %v1477
      %v1524 = vmul.f32 %v1478, %v1478
      %v1525 = vmul.f32 %v1479, %v1479
      %v1526 = vsel %vm319, %v1518, 0.0
      %v1527 = vsel %vm319, %v1519, 0.0
      %v1528 = vadd.f32 %v1526, %v1527
      %v1529 = vsel %vm319, %v1520, 0.0
      %v1530 = vadd.f32 %v1528, %v1529
      %v1531 = vsel %vm319, %v1521, 0.0
      %v1532 = vadd.f32 %v1530, %v1531
      %v1533 = vsel %vm319, %v1522, 0.0
      %v1534 = vadd.f32 %v1532, %v1533
      %v1535 = vsel %vm319, %v1523, 0.0
      %v1536 = vadd.f32 %v1534, %v1535
      %v1537 = vsel %vm319, %v1524, 0.0
      %v1538 = vadd.f32 %v1536, %v1537
      %v1539 = vsel %vm319, %v1525, 0.0
      %v1540 = vadd.f32 %v1538, %v1539
      %v1541 = vrot.slane %v1540, 4
      %v1542 = vadd.f32 %v1540, %v1541
      %v1543 = vrot.slane %v1542, 2
      %v1544 = vadd.f32 %v1542, %v1543
      %v1545 = vrot.slane %v1544, 1
      %v1546 = vadd.f32 %v1544, %v1545
      %vm1547 = vcmask 1040384
      %v1548 = vsel %vm1547, %v1517, %v1546
      // Predicated region
      $region33: #{basic_block_forward.4} parent=31 // pred_check
        %p1549 = pneg %p260
      $region34: #{basic_block_forward.4} parent=31 // pred_check_branch
        %1551 = sbr.rel (%p1549) target = $region36
      $region35: #{basic_block_forward.4} parent=31 // pred_region
        %vm1552 = vcmask 254976
        %1553 = vst.msk [vmem:[%s5] sm:$0x3] %vm1552, %v1548
      $region36: #{basic_block_forward.4} parent=31 // pred_fallthru
        _
      %p1554 = scmp.ne.s32.totalorder %s18, 0
      // Predicated region
      $region37: #{basic_block_forward.4} parent=31 // pred_check
        %p1555 = pneg %p1554
      $region38: #{basic_block_forward.4} parent=31 // pred_check_branch
        %1557 = sbr.rel (%p1555) target = $region40
      $region39: #{basic_block_forward.4} parent=31 // pred_region
        %v1558 = vld [vmem:[%s5] sm:$0x3]
        %v1559 = vadd.f32 %v1558, %v1548
        %vm1560 = vcmask 254976
        %1561 = vst.msk [vmem:[%s5] sm:$0x3] %vm1560, %v1559
      $region40: #{basic_block_forward.4} parent=31 // pred_fallthru
        _
      %v1562 = vpack.c.bf16 %v859, %v859
      %v1563 = vpack.c.bf16 %v861, %v861
      %v1564 = vpack.c.bf16 %v864, %v864
      %v1565 = vpack.c.bf16 %v866, %v866
      %v1566 = vpack.c.bf16 %v869, %v869
      %v1567 = vpack.c.bf16 %v871, %v871
      %v1568 = vpack.c.bf16 %v874, %v874
      %v1569 = vpack.c.bf16 %v876, %v876
      %1570 = vst.msk [vmem:[%s258] sm:$0xf] %vm1488, %v1562
      %1571 = vst.msk [vmem:[%s258 + $0x4] sm:$0xf] %vm1488, %v1563
      %1572 = vst.msk [vmem:[%s258 + $0x8] sm:$0xf] %vm1488, %v1564
      %1573 = vst.msk [vmem:[%s258 + $0xc] sm:$0xf] %vm1488, %v1565
      %1574 = vst.msk [vmem:[%s258 + $0x10] sm:$0xf] %vm1488, %v1566
      %1575 = vst.msk [vmem:[%s258 + $0x14] sm:$0xf] %vm1488, %v1567
      %1576 = vst.msk [vmem:[%s258 + $0x18] sm:$0xf] %vm1488, %v1568
      %1577 = vst.msk [vmem:[%s258 + $0x1c] sm:$0xf] %vm1488, %v1569
      %v1578 = vsel %vm319, %v859, 0.0
      %v1579 = vsel %vm319, %v861, 0.0
      %v1580 = vadd.f32 %v1578, %v1579
      %v1581 = vsel %vm319, %v864, 0.0
      %v1582 = vadd.f32 %v1580, %v1581
      %v1583 = vsel %vm319, %v866, 0.0
      %v1584 = vadd.f32 %v1582, %v1583
      %v1585 = vsel %vm319, %v869, 0.0
      %v1586 = vadd.f32 %v1584, %v1585
      %v1587 = vsel %vm319, %v871, 0.0
      %v1588 = vadd.f32 %v1586, %v1587
      %v1589 = vsel %vm319, %v874, 0.0
      %v1590 = vadd.f32 %v1588, %v1589
      %v1591 = vsel %vm319, %v876, 0.0
      %v1592 = vadd.f32 %v1590, %v1591
      %v1593 = vrot.slane %v1592, 4
      %v1594 = vadd.f32 %v1592, %v1593
      %v1595 = vrot.slane %v1594, 2
      %v1596 = vadd.f32 %v1594, %v1595
      %v1597 = vrot.slane %v1596, 1
      %v1598 = vadd.f32 %v1596, %v1597
      %v1599 = vmul.f32 %v859, %v859
      %v1600 = vmul.f32 %v861, %v861
      %v1601 = vmul.f32 %v864, %v864
      %v1602 = vmul.f32 %v866, %v866
      %v1603 = vmul.f32 %v869, %v869
      %v1604 = vmul.f32 %v871, %v871
      %v1605 = vmul.f32 %v874, %v874
      %v1606 = vmul.f32 %v876, %v876
      %v1607 = vsel %vm319, %v1599, 0.0
      %v1608 = vsel %vm319, %v1600, 0.0
      %v1609 = vadd.f32 %v1607, %v1608
      %v1610 = vsel %vm319, %v1601, 0.0
      %v1611 = vadd.f32 %v1609, %v1610
      %v1612 = vsel %vm319, %v1602, 0.0
      %v1613 = vadd.f32 %v1611, %v1612
      %v1614 = vsel %vm319, %v1603, 0.0
      %v1615 = vadd.f32 %v1613, %v1614
      %v1616 = vsel %vm319, %v1604, 0.0
      %v1617 = vadd.f32 %v1615, %v1616
      %v1618 = vsel %vm319, %v1605, 0.0
      %v1619 = vadd.f32 %v1617, %v1618
      %v1620 = vsel %vm319, %v1606, 0.0
      %v1621 = vadd.f32 %v1619, %v1620
      %v1622 = vrot.slane %v1621, 4
      %v1623 = vadd.f32 %v1621, %v1622
      %v1624 = vrot.slane %v1623, 2
      %v1625 = vadd.f32 %v1623, %v1624
      %v1626 = vrot.slane %v1625, 1
      %v1627 = vadd.f32 %v1625, %v1626
      %v1628 = vsel %vm1547, %v1598, %v1627
      // Predicated region
      $region41: #{basic_block_forward.4} parent=31 // pred_check
        %p1629 = pneg %p260
      $region42: #{basic_block_forward.4} parent=31 // pred_check_branch
        %1631 = sbr.rel (%p1629) target = $region44
      $region43: #{basic_block_forward.4} parent=31 // pred_region
        %vm1632 = vcmask 254976
        %1633 = vst.msk [vmem:[%s6] sm:$0x3] %vm1632, %v1628
      $region44: #{basic_block_forward.4} parent=31 // pred_fallthru
        _
      // Predicated region
      $region45: #{basic_block_forward.4} parent=31 // pred_check
        %p1634 = pneg %p1554
      $region46: #{basic_block_forward.4} parent=31 // pred_check_branch
        %1636 = sbr.rel (%p1634) target = $region48
      $region47: #{basic_block_forward.4} parent=31 // pred_region
        %v1637 = vld [vmem:[%s6] sm:$0x3]
        %v1638 = vadd.f32 %v1637, %v1628
        %vm1639 = vcmask 254976
        %1640 = vst.msk [vmem:[%s6] sm:$0x3] %vm1639, %v1638
      $region48: #{basic_block_forward.4} parent=31 // pred_fallthru
        _
      %p1641 = scmp.lt.s32.totalorder %s18, 1
      %s1642 = scalar_select %p1641, %s18, 1
      %s1643 = smul.addr %s1642, 8
      %s1644 = smul.addr %s1643, 4
      %s1645 = scalar_lea.vmem %s3, %s1644
      %p1646 = scmp.lt.s32.totalorder %s18, 1
      %s1647 = scalar_select %p1646, %s18, 1
      %s1648 = smul.addr %s1647, 8
      %s1649 = smul.addr %s1648, 4
      %s1650 = scalar_lea.vmem %s4, %s1649
      // Predicated region
      $region49: #{basic_block_forward.4} parent=31 // pred_check
        %p1651 = pneg %p104
      $region50: #{basic_block_forward.4} parent=31 // pred_check_branch
        %1653 = sbr.rel (%p1651) target = $region52
      $region51: #{basic_block_forward.4} parent=31 // pred_region
        _
      $region52: #{basic_block_forward.4} parent=31 // pred_fallthru
        _
      // Predicated region
      $region53: #{basic_block_forward.4} parent=31 // pred_check
        %p1654 = pneg %p130
      $region54: #{basic_block_forward.4} parent=31 // pred_check_branch
        %1656 = sbr.rel (%p1654) target = $region56
      $region55: #{basic_block_forward.4} parent=31 // pred_region
        _
      $region56: #{basic_block_forward.4} parent=31 // pred_fallthru
        _
      // Predicated region
      $region57: #{basic_block_forward.4} parent=31 // pred_check
        %p1657 = pneg %p151
      $region58: #{basic_block_forward.4} parent=31 // pred_check_branch
        %1659 = sbr.rel (%p1657) target = $region60
      $region59: #{basic_block_forward.4} parent=31 // pred_region
        _
      $region60: #{basic_block_forward.4} parent=31 // pred_fallthru
        _
      // Predicated region
      $region61: #{basic_block_forward.4} parent=31 // pred_check
        %p1660 = pneg %p172
      $region62: #{basic_block_forward.4} parent=31 // pred_check_branch
        %1662 = sbr.rel (%p1660) target = $region64
      $region63: #{basic_block_forward.4} parent=31 // pred_region
        _
      $region64: #{basic_block_forward.4} parent=31 // pred_fallthru
        _
      // Predicated region
      $region65: #{basic_block_forward.4} parent=31 // pred_check
        %p1663 = pneg %p151
      $region66: #{basic_block_forward.4} parent=31 // pred_check_branch
        %1665 = sbr.rel (%p1663) target = $region68
      $region67: #{basic_block_forward.4} parent=31 // pred_region
        _
      $region68: #{basic_block_forward.4} parent=31 // pred_fallthru
        _
      // Predicated region
      $region69: #{basic_block_forward.4} parent=31 // pred_check
        %p1666 = pneg %p172
      $region70: #{basic_block_forward.4} parent=31 // pred_check_branch
        %1668 = sbr.rel (%p1666) target = $region72
      $region71: #{basic_block_forward.4} parent=31 // pred_region
        _
      $region72: #{basic_block_forward.4} parent=31 // pred_fallthru
        _
    $region32: #{basic_block_forward.4} parent=5 // pred_fallthru
      _
    %p1669 = scmp.le.s32.totalorder 2, %s13
    // Predicated region
    $region73: #{basic_block_forward.4} parent=5 // pred_check
      %p1670 = pneg %p1669
    $region74: #{basic_block_forward.4} parent=5 // pred_check_branch
      %1672 = sbr.rel (%p1670) target = $region76
    $region75: #{basic_block_forward.4} parent=5 // pred_region
      %s1673 = ssub.s32 %s13, 2
      // Predicated region
      $region77: #{basic_block_forward.4} parent=75 // pred_check
        %p1674 = pneg %p110
      $region78: #{basic_block_forward.4} parent=75 // pred_check_branch
        %1676 = sbr.rel (%p1674) target = $region80
      $region79: #{basic_block_forward.4} parent=75 // pred_region
        %p1677 = scmp.lt.s32.totalorder %s19, 1
        %s1678 = scalar_select %p1677, %s19, 1
        %s1679 = smul.addr %s1678, 8
        %s1680 = smul.addr %s1679, 4
        %s1681 = scalar_lea.vmem %s3, %s1680
      $region80: #{basic_block_forward.4} parent=75 // pred_fallthru
        _
      // Predicated region
      $region81: #{basic_block_forward.4} parent=75 // pred_check
        %p1682 = pneg %p136
      $region82: #{basic_block_forward.4} parent=75 // pred_check_branch
        %1684 = sbr.rel (%p1682) target = $region84
      $region83: #{basic_block_forward.4} parent=75 // pred_region
        %p1685 = scmp.lt.s32.totalorder %s19, 1
        %s1686 = scalar_select %p1685, %s19, 1
        %s1687 = smul.addr %s1686, 8
        %s1688 = smul.addr %s1687, 4
        %s1689 = scalar_lea.vmem %s4, %s1688
      $region84: #{basic_block_forward.4} parent=75 // pred_fallthru
        _
    $region76: #{basic_block_forward.4} parent=5 // pred_fallthru
      _
  $region6: #{basic_block_forward.4} parent=0 // loop_footer
    %s17 = sadd.s32 1, %s13
  $region7: #{basic_block_forward.4} parent=0 // loop_footer_branch
    %12 = sbr.rel target = $region3
  $region8: #{basic_block_forward.4} parent=0 // loop_exit
    _

// kernel: basic_block_forward.5
$region0: #{basic_block_forward.5}
  #allocation0 [shape = 'u32[]', space=smem, size = 0x4, offset = 0x4, fixed_abs, tag = 'smem constant byte address 0x4 - core index']
  #allocation1 [shape = 'u32[72,128]{1,0:T(1,128)}', space=vmem, size = 0x9000, scoped, tag = 'internal scratch']
  #allocation2 [shape = 'bf16[10,10,32]{2,1,0:T(8,128)(2,1)}', space=vmem, size = 0xa000, scoped, tag = 'scratch operand']
  %s0 = inlined_call_operand.vmem [shape: bf16[2,64,32], index: 0, kind: input, shape index: {}]
  %s1 = inlined_call_operand.vmem [shape: f32[1,32], index: 1, kind: input, shape index: {}]
  %s2 = inlined_call_operand.vmem [shape: f32[1,32], index: 2, kind: input, shape index: {}]
  %s3 = inlined_call_operand.vmem [shape: bf16[3,3,32,32], index: 3, kind: input, shape index: {}]
  %s4 = inlined_call_operand.vmem [shape: bf16[2,64,32], index: 4, kind: output, shape index: {0}]
  %s5 = inlined_call_operand.vmem [shape: f32[2,1,32], index: 5, kind: output, shape index: {1}]
  %s6 = inlined_call_operand.vmem [shape: f32[2,32], index: 6, kind: output, shape index: {2}]
  %7 = xla_tuple %s4, %s5, %s6
  %s8 = sld [smem:[#allocation0]]
  $region77: #{basic_block_forward.5} parent=0
    _
  %s10 = ssub.s32 1, %s8
  %s11 = scalar_select 0, %s10, %s8
  loop: start=0, step=1, limit=4
  $region2: #{basic_block_forward.5} parent=0 // loop_pre_header
    _
  $region3: #{basic_block_forward.5} parent=0 // loop_header
    %s13 = sphi 0, %s17
    %p14 = scmp.ge.s32.totalorder %s13, 4
    %s23 = sphi 0, %s25
    %s26 = sphi 0, %s23
    %s27 = sphi 0, %s26
    %s43 = sphi 0, %s27
    %s47 = sphi 0, %s47
    %s49 = sphi 0, %s47
    %s50 = sphi 0, %s49
    %s64 = sphi 0, %s50
    %s68 = sphi 0, %s68
    %s70 = sphi 0, %s68
    %s71 = sphi 0, %s70
    %s85 = sphi 0, %s71
    %s89 = sphi 0, %s89
    %s91 = sphi 0, %s89
    %s92 = sphi 0, %s91
    %s106 = sphi 0, %s92
    %s112 = sphi 0, %s114
    %s115 = sphi 0, %s112
    %s116 = sphi 0, %s115
    %s132 = sphi 0, %s116
    %s138 = sphi 0, %s140
    %s141 = sphi 0, %s138
    %s142 = sphi 0, %s141
    %s158 = sphi 0, %s142
    %s162 = sphi 0, %s162
    %s164 = sphi 0, %s162
    %s165 = sphi 0, %s164
    %s179 = sphi 0, %s165
  $region4: #{basic_block_forward.5} parent=0 // loop_header_branch
    %16 = sbr.rel (%p14) target = $region8
  $region5: #{basic_block_forward.5} parent=0 // loop_body
    %s18 = ssub.s32 %s13, 1
    %s19 = ssub.s32 %s13, 2
    %s20 = sadd.s32 %s13, 1
    %s21 = ssub.s32 %s13, %s20
    %p22 = scmp.eq.s32.totalorder %s21, 0
    %s24 = sadd.s32 %s23, 1
    %s25 = scalar_select %p22, %s23, %s24
    %p28 = pneg %p22
    %p29 = scmp.eq.s32.totalorder %s13, 1
    %p30 = por %p28, %p29
    %p31 = scmp.ne.s32.totalorder %s23, %s26
    %p32 = scmp.eq.s32.totalorder %s13, 0
    %p33 = por %p31, %p32
    %p34 = scmp.ne.s32.totalorder %s23, %s26
    %p35 = scmp.eq.s32.totalorder %s18, 1
    %p36 = por %p34, %p35
    %p37 = scmp.ne.s32.totalorder %s26, %s27
    %p38 = scmp.eq.s32.totalorder %s18, 0
    %p39 = por %p37, %p38
    %p40 = scmp.ne.s32.totalorder %s26, %s27
    %p41 = scmp.eq.s32.totalorder %s19, 1
    %p42 = por %p40, %p41
    %p44 = scmp.ne.s32.totalorder %s27, %s43
    %p45 = scmp.eq.s32.totalorder %s19, 0
    %p46 = por %p44, %p45
    %s48 = sadd.s32 %s47, 1
    %p51 = scmp.eq.s32.totalorder %s13, 1
    %p52 = scmp.ne.s32.totalorder %s47, %s49
    %p53 = scmp.eq.s32.totalorder %s13, 0
    %p54 = por %p52, %p53
    %p55 = scmp.ne.s32.totalorder %s47, %s49
    %p56 = scmp.eq.s32.totalorder %s18, 1
    %p57 = por %p55, %p56
    %p58 = scmp.ne.s32.totalorder %s49, %s50
    %p59 = scmp.eq.s32.totalorder %s18, 0
    %p60 = por %p58, %p59
    %p61 = scmp.ne.s32.totalorder %s49, %s50
    %p62 = scmp.eq.s32.totalorder %s19, 1
    %p63 = por %p61, %p62
    %p65 = scmp.ne.s32.totalorder %s50, %s64
    %p66 = scmp.eq.s32.totalorder %s19, 0
    %p67 = por %p65, %p66
    %s69 = sadd.s32 %s68, 1
    %p72 = scmp.eq.s32.totalorder %s13, 1
    %p73 = scmp.ne.s32.totalorder %s68, %s70
    %p74 = scmp.eq.s32.totalorder %s13, 0
    %p75 = por %p73, %p74
    %p76 = scmp.ne.s32.totalorder %s68, %s70
    %p77 = scmp.eq.s32.totalorder %s18, 1
    %p78 = por %p76, %p77
    %p79 = scmp.ne.s32.totalorder %s70, %s71
    %p80 = scmp.eq.s32.totalorder %s18, 0
    %p81 = por %p79, %p80
    %p82 = scmp.ne.s32.totalorder %s70, %s71
    %p83 = scmp.eq.s32.totalorder %s19, 1
    %p84 = por %p82, %p83
    %p86 = scmp.ne.s32.totalorder %s71, %s85
    %p87 = scmp.eq.s32.totalorder %s19, 0
    %p88 = por %p86, %p87
    %s90 = sadd.s32 %s89, 1
    %p93 = scmp.eq.s32.totalorder %s13, 1
    %p94 = scmp.ne.s32.totalorder %s89, %s91
    %p95 = scmp.eq.s32.totalorder %s13, 0
    %p96 = por %p94, %p95
    %p97 = scmp.ne.s32.totalorder %s89, %s91
    %p98 = scmp.eq.s32.totalorder %s18, 1
    %p99 = por %p97, %p98
    %p100 = scmp.ne.s32.totalorder %s91, %s92
    %p101 = scmp.eq.s32.totalorder %s18, 0
    %p102 = por %p100, %p101
    %p103 = scmp.ne.s32.totalorder %s91, %s92
    %p104 = scmp.eq.s32.totalorder %s19, 1
    %p105 = por %p103, %p104
    %p107 = scmp.ne.s32.totalorder %s92, %s106
    %p108 = scmp.eq.s32.totalorder %s19, 0
    %p109 = por %p107, %p108
    %s110 = ssub.s32 %s13, %s20
    %p111 = scmp.eq.s32.totalorder %s110, 0
    %s113 = sadd.s32 %s112, 1
    %s114 = scalar_select %p111, %s112, %s113
    %p117 = pneg %p111
    %p118 = scmp.eq.s32.totalorder %s13, 1
    %p119 = por %p117, %p118
    %p120 = scmp.ne.s32.totalorder %s112, %s115
    %p121 = scmp.eq.s32.totalorder %s13, 0
    %p122 = por %p120, %p121
    %p123 = scmp.ne.s32.totalorder %s112, %s115
    %p124 = scmp.eq.s32.totalorder %s18, 1
    %p125 = por %p123, %p124
    %p126 = scmp.ne.s32.totalorder %s115, %s116
    %p127 = scmp.eq.s32.totalorder %s18, 0
    %p128 = por %p126, %p127
    %p129 = scmp.ne.s32.totalorder %s115, %s116
    %p130 = scmp.eq.s32.totalorder %s19, 1
    %p131 = por %p129, %p130
    %p133 = scmp.ne.s32.totalorder %s116, %s132
    %p134 = scmp.eq.s32.totalorder %s19, 0
    %p135 = por %p133, %p134
    %s136 = ssub.s32 %s13, %s20
    %p137 = scmp.eq.s32.totalorder %s136, 0
    %s139 = sadd.s32 %s138, 1
    %s140 = scalar_select %p137, %s138, %s139
    %p143 = pneg %p137
    %p144 = scmp.eq.s32.totalorder %s13, 1
    %p145 = por %p143, %p144
    %p146 = scmp.ne.s32.totalorder %s138, %s141
    %p147 = scmp.eq.s32.totalorder %s13, 0
    %p148 = por %p146, %p147
    %p149 = scmp.ne.s32.totalorder %s138, %s141
    %p150 = scmp.eq.s32.totalorder %s18, 1
    %p151 = por %p149, %p150
    %p152 = scmp.ne.s32.totalorder %s141, %s142
    %p153 = scmp.eq.s32.totalorder %s18, 0
    %p154 = por %p152, %p153
    %p155 = scmp.ne.s32.totalorder %s141, %s142
    %p156 = scmp.eq.s32.totalorder %s19, 1
    %p157 = por %p155, %p156
    %p159 = scmp.ne.s32.totalorder %s142, %s158
    %p160 = scmp.eq.s32.totalorder %s19, 0
    %p161 = por %p159, %p160
    %s163 = sadd.s32 %s162, 1
    %p166 = scmp.eq.s32.totalorder %s13, 1
    %p167 = scmp.ne.s32.totalorder %s162, %s164
    %p168 = scmp.eq.s32.totalorder %s13, 0
    %p169 = por %p167, %p168
    %p170 = scmp.ne.s32.totalorder %s162, %s164
    %p171 = scmp.eq.s32.totalorder %s18, 1
    %p172 = por %p170, %p171
    %p173 = scmp.ne.s32.totalorder %s164, %s165
    %p174 = scmp.eq.s32.totalorder %s18, 0
    %p175 = por %p173, %p174
    %p176 = scmp.ne.s32.totalorder %s164, %s165
    %p177 = scmp.eq.s32.totalorder %s19, 1
    %p178 = por %p176, %p177
    %p180 = scmp.ne.s32.totalorder %s165, %s179
    %p181 = scmp.eq.s32.totalorder %s19, 0
    %p182 = por %p180, %p181
    %p183 = scmp.le.s32.totalorder 1, %s13
    %p184 = scmp.lt.s32.totalorder %s13, 3
    %p185 = pnand %p183, %p184
    %p186 = pneg %p185
    // Predicated region
    $region9: #{basic_block_forward.5} parent=5 // pred_check
      _
    $region10: #{basic_block_forward.5} parent=5 // pred_check_branch
      %188 = sbr.rel (%p185) target = $region12
    $region11: #{basic_block_forward.5} parent=5 // pred_region
      %s189 = ssub.s32 %s13, 1
      // Predicated region
      $region13: #{basic_block_forward.5} parent=11 // pred_check
        %p190 = pneg %p60
      $region14: #{basic_block_forward.5} parent=11 // pred_check_branch
        %192 = sbr.rel (%p190) target = $region16
      $region15: #{basic_block_forward.5} parent=11 // pred_region
        _
      $region16: #{basic_block_forward.5} parent=11 // pred_fallthru
        _
      // Predicated region
      $region17: #{basic_block_forward.5} parent=11 // pred_check
        %p193 = pneg %p81
      $region18: #{basic_block_forward.5} parent=11 // pred_check_branch
        %195 = sbr.rel (%p193) target = $region20
      $region19: #{basic_block_forward.5} parent=11 // pred_region
        _
      $region20: #{basic_block_forward.5} parent=11 // pred_fallthru
        _
      // Predicated region
      $region21: #{basic_block_forward.5} parent=11 // pred_check
        %p196 = pneg %p102
      $region22: #{basic_block_forward.5} parent=11 // pred_check_branch
        %198 = sbr.rel (%p196) target = $region24
      $region23: #{basic_block_forward.5} parent=11 // pred_region
        _
      $region24: #{basic_block_forward.5} parent=11 // pred_fallthru
        _
    $region12: #{basic_block_forward.5} parent=5 // pred_fallthru
      _
    %p199 = scmp.lt.s32.totalorder %s13, 2
    // Predicated region
    $region25: #{basic_block_forward.5} parent=5 // pred_check
      %p200 = pneg %p199
    $region26: #{basic_block_forward.5} parent=5 // pred_check_branch
      %202 = sbr.rel (%p200) target = $region28
    $region27: #{basic_block_forward.5} parent=5 // pred_region
      // Predicated region
      $region29: #{basic_block_forward.5} parent=27 // pred_check
        %p203 = pneg %p33
      $region30: #{basic_block_forward.5} parent=27 // pred_check_branch
        %205 = sbr.rel (%p203) target = $region32
      $region31: #{basic_block_forward.5} parent=27 // pred_region
        %p206 = scmp.lt.s32.totalorder %s13, 1
        %s207 = scalar_select %p206, %s13, 1
        %s208 = smul.addr %s207, 8
        %s209 = smul.addr %s208, 4
        %s210 = scalar_lea.vmem %s0, %s209
      $region32: #{basic_block_forward.5} parent=27 // pred_fallthru
        _
    $region28: #{basic_block_forward.5} parent=5 // pred_fallthru
      _
    %p211 = scmp.le.s32.totalorder 1, %s13
    %p212 = scmp.lt.s32.totalorder %s13, 3
    %p213 = pnand %p211, %p212
    %p214 = pneg %p213
    // Predicated region
    $region33: #{basic_block_forward.5} parent=5 // pred_check
      _
    $region34: #{basic_block_forward.5} parent=5 // pred_check_branch
      %216 = sbr.rel (%p213) target = $region36
    $region35: #{basic_block_forward.5} parent=5 // pred_region
      %s217 = ssub.s32 %s13, 1
      %p218 = scmp.lt.s32.totalorder %s18, 1
      %s219 = scalar_select %p218, %s18, 1
      %s220 = smul.addr %s219, 8
      %s221 = smul.addr %s220, 4
      %s222 = scalar_lea.vmem %s0, %s221
      %p223 = pneg %p39
      %p224 = pneg %p36
      %p225 = pneg %p60
      %p226 = pneg %p57
      %p227 = pneg %p81
      %p228 = pneg %p78
      %p229 = pneg %p102
      %p230 = pneg %p99
      %p231 = pneg %p128
      %p232 = pneg %p125
      %p233 = scmp.lt.s32.totalorder %s18, 1
      %s234 = scalar_select %p233, %s18, 1
      %s235 = smul.addr %s234, 8
      %s236 = smul.addr %s235, 4
      %s237 = scalar_lea.vmem %s4, %s236
      %p238 = pneg %p154
      %p239 = pneg %p151
      %p240 = scmp.lt.s32.totalorder %s18, 1
      %s241 = scalar_select %p240, %s18, 1
      %s242 = scalar_lea.vmem %s5, %s241
      %p243 = pneg %p175
      %p244 = pneg %p172
      %p245 = scmp.lt.s32.totalorder %s18, 1
      %s246 = scalar_select %p245, %s18, 1
      %s247 = smul.addr %s246, 8
      %s248 = smul.addr %s247, 4
      %s249 = scalar_lea.vmem %s0, %s248
      %p250 = scmp.lt.s32.totalorder %s18, 1
      %s251 = scalar_select %p250, %s18, 1
      %s252 = smul.addr %s251, 8
      %s253 = smul.addr %s252, 4
      %s254 = scalar_lea.vmem %s4, %s253
      %p255 = scmp.lt.s32.totalorder %s18, 1
      %s256 = scalar_select %p255, %s18, 1
      %s257 = scalar_lea.vmem %s5, %s256
      %p259 = scmp.eq.s32.totalorder %s18, 0
      // Predicated region
      $region37: #{basic_block_forward.5} parent=35 // pred_check
        %p260 = pneg %p259
      $region38: #{basic_block_forward.5} parent=35 // pred_check_branch
        %262 = sbr.rel (%p260) target = $region40
      $region39: #{basic_block_forward.5} parent=35 // pred_region
        %vm263 = vcmask 257024
        %264 = vst.msk [vmem:[#allocation2] sm:$0xf] %vm263, 0
        %vm265 = vcmask 253952
        %266 = vst.msk [vmem:[#allocation2 + $0x4] sm:$0x1] %vm265, 0
        %267 = vst.msk [vmem:[#allocation2 + $0x8] sm:$0xf] %vm263, 0
        %268 = vst.msk [vmem:[#allocation2 + $0xc] sm:$0x1] %vm265, 0
        %269 = vst.msk [vmem:[#allocation2 + $0x10] sm:$0xf] %vm263, 0
        %270 = vst.msk [vmem:[#allocation2 + $0x14] sm:$0x1] %vm265, 0
        %271 = vst.msk [vmem:[#allocation2 + $0x18] sm:$0xf] %vm263, 0
        %272 = vst.msk [vmem:[#allocation2 + $0x1c] sm:$0x1] %vm265, 0
        %273 = vst.msk [vmem:[#allocation2 + $0x20] sm:$0xf] %vm263, 0
        %274 = vst.msk [vmem:[#allocation2 + $0x24] sm:$0x1] %vm265, 0
        %275 = vst.msk [vmem:[#allocation2 + $0x28] sm:$0xf] %vm263, 0
        %276 = vst.msk [vmem:[#allocation2 + $0x2c] sm:$0x1] %vm265, 0
        %277 = vst.msk [vmem:[#allocation2 + $0x30] sm:$0xf] %vm263, 0
        %278 = vst.msk [vmem:[#allocation2 + $0x34] sm:$0x1] %vm265, 0
        %279 = vst.msk [vmem:[#allocation2 + $0x38] sm:$0xf] %vm263, 0
        %280 = vst.msk [vmem:[#allocation2 + $0x3c] sm:$0x1] %vm265, 0
        %281 = vst.msk [vmem:[#allocation2 + $0x40] sm:$0xf] %vm263, 0
        %282 = vst.msk [vmem:[#allocation2 + $0x44] sm:$0x1] %vm265, 0
        %283 = vst.msk [vmem:[#allocation2 + $0x48] sm:$0xf] %vm263, 0
        %284 = vst.msk [vmem:[#allocation2 + $0x4c] sm:$0x1] %vm265, 0
      $region40: #{basic_block_forward.5} parent=35 // pred_fallthru
        _
      %v285 = vld [vmem:[%s249] sm:$0xf]
      %v286 = vld [vmem:[%s249 + $0x4] sm:$0xf]
      %v287 = vld [vmem:[%s249 + $0x8] sm:$0xf]
      %v288 = vld [vmem:[%s249 + $0xc] sm:$0xf]
      %v289 = vld [vmem:[%s249 + $0x10] sm:$0xf]
      %v290 = vld [vmem:[%s249 + $0x14] sm:$0xf]
      %v291 = vld [vmem:[%s249 + $0x18] sm:$0xf]
      %v292 = vld [vmem:[%s249 + $0x1c] sm:$0xf]
      %v293 = vunpack.c.l.bf16 %v285
      %v294 = vunpack.c.l.bf16 %v286
      %v295 = vunpack.c.l.bf16 %v287
      %v296 = vunpack.c.l.bf16 %v288
      %v297 = vunpack.c.l.bf16 %v289
      %v298 = vunpack.c.l.bf16 %v290
      %v299 = vunpack.c.l.bf16 %v291
      %v300 = vunpack.c.l.bf16 %v292
      %v301 = vld [vmem:[%s1] sm:$0x1]
      %v303 = vperm.slane %v301, 0
      %v305 = vmul.f32 %v293, %v303
      %v306 = vmul.f32 %v294, %v303
      %v307 = vmul.f32 %v295, %v303
      %v308 = vmul.f32 %v296, %v303
      %v309 = vmul.f32 %v297, %v303
      %v310 = vmul.f32 %v298, %v303
      %v311 = vmul.f32 %v299, %v303
      %v312 = vmul.f32 %v300, %v303
      %v313 = vld [vmem:[%s2] sm:$0x1]
      %v315 = vperm.slane %v313, 0
      %v317 = vadd.f32 %v305, %v315
      %v318 = vadd.f32 %v306, %v315
      %v319 = vadd.f32 %v307, %v315
      %v320 = vadd.f32 %v308, %v315
      %v321 = vadd.f32 %v309, %v315
      %v322 = vadd.f32 %v310, %v315
      %v323 = vadd.f32 %v311, %v315
      %v324 = vadd.f32 %v312, %v315
      %v325 = vmax.f32 %v317, 0.0
      %v326 = vmax.f32 %v318, 0.0
      %v327 = vmax.f32 %v319, 0.0
      %v328 = vmax.f32 %v320, 0.0
      %v329 = vmax.f32 %v321, 0.0
      %v330 = vmax.f32 %v322, 0.0
      %v331 = vmax.f32 %v323, 0.0
      %v332 = vmax.f32 %v324, 0.0
      %v333 = vpack.c.bf16 %v325, %v325
      %v334 = vpack.c.bf16 %v326, %v326
      %v335 = vpack.c.bf16 %v327, %v327
      %v336 = vpack.c.bf16 %v328, %v328
      %v337 = vpack.c.bf16 %v329, %v329
      %v338 = vpack.c.bf16 %v330, %v330
      %v339 = vpack.c.bf16 %v331, %v331
      %v340 = vpack.c.bf16 %v332, %v332
      %v342 = vshrl.u32 %v333, 16
      %v344 = vrot.slane %v342, 7
      %v345 = vshll.u32 %v333, 16
      %v347 = vor.u32 %v344, %v345
      %v348 = vrot.slane %v344, 4
      %v350 = vshrl.u32 %v334, 16
      %v352 = vrot.slane %v350, 7
      %v353 = vshll.u32 %v334, 16
      %v355 = vor.u32 %v352, %v353
      %v356 = vrot.slane %v352, 4
      %v358 = vshrl.u32 %v335, 16
      %v360 = vrot.slane %v358, 7
      %v361 = vshll.u32 %v335, 16
      %v363 = vor.u32 %v360, %v361
      %v364 = vrot.slane %v360, 4
      %v366 = vshrl.u32 %v336, 16
      %v368 = vrot.slane %v366, 7
      %v369 = vshll.u32 %v336, 16
      %v371 = vor.u32 %v368, %v369
      %v372 = vrot.slane %v368, 4
      %v374 = vshrl.u32 %v337, 16
      %v376 = vrot.slane %v374, 7
      %v377 = vshll.u32 %v337, 16
      %v379 = vor.u32 %v376, %v377
      %v380 = vrot.slane %v376, 4
      %v382 = vshrl.u32 %v338, 16
      %v384 = vrot.slane %v382, 7
      %v385 = vshll.u32 %v338, 16
      %v387 = vor.u32 %v384, %v385
      %v388 = vrot.slane %v384, 4
      %v390 = vshrl.u32 %v339, 16
      %v392 = vrot.slane %v390, 7
      %v393 = vshll.u32 %v339, 16
      %v395 = vor.u32 %v392, %v393
      %v396 = vrot.slane %v392, 4
      %v398 = vshrl.u32 %v340, 16
      %v400 = vrot.slane %v398, 7
      %v401 = vshll.u32 %v340, 16
      %v403 = vor.u32 %v400, %v401
      %v404 = vrot.slane %v400, 4
      %s421 = scalar_lea.vmem [#allocation2], 8
      %vm422 = vcmask 257024
      %vm423 = vsmask.f32 7938
      %vm424 = vmand %vm422, %vm423
      %v425 = vld [vmem:[%s421] sm:$0xf]
      %v426 = vsel %vm424, %v347, %v425
      %427 = vst [vmem:[%s421] sm:$0xf] %v426
      %vm428 = vcmask 253952
      %vm429 = vsmask.f32 256
      %vm430 = vmand %vm428, %vm429
      %v431 = vld [vmem:[%s421 + $0x4] sm:$0x1]
      %v432 = vsel %vm430, %v348, %v431
      %433 = vst [vmem:[%s421 + $0x4] sm:$0x1] %v432
      %v434 = vld [vmem:[%s421 + $0x8] sm:$0xf]
      %v435 = vsel %vm424, %v355, %v434
      %436 = vst [vmem:[%s421 + $0x8] sm:$0xf] %v435
      %v437 = vld [vmem:[%s421 + $0xc] sm:$0x1]
      %v438 = vsel %vm430, %v356, %v437
      %439 = vst [vmem:[%s421 + $0xc] sm:$0x1] %v438
      %v440 = vld [vmem:[%s421 + $0x10] sm:$0xf]
      %v441 = vsel %vm424, %v363, %v440
      %442 = vst [vmem:[%s421 + $0x10] sm:$0xf] %v441
      %v443 = vld [vmem:[%s421 + $0x14] sm:$0x1]
      %v444 = vsel %vm430, %v364, %v443
      %445 = vst [vmem:[%s421 + $0x14] sm:$0x1] %v444
      %v446 = vld [vmem:[%s421 + $0x18] sm:$0xf]
      %v447 = vsel %vm424, %v371, %v446
      %448 = vst [vmem:[%s421 + $0x18] sm:$0xf] %v447
      %v449 = vld [vmem:[%s421 + $0x1c] sm:$0x1]
      %v450 = vsel %vm430, %v372, %v449
      %451 = vst [vmem:[%s421 + $0x1c] sm:$0x1] %v450
      %v452 = vld [vmem:[%s421 + $0x20] sm:$0xf]
      %v453 = vsel %vm424, %v379, %v452
      %454 = vst [vmem:[%s421 + $0x20] sm:$0xf] %v453
      %v455 = vld [vmem:[%s421 + $0x24] sm:$0x1]
      %v456 = vsel %vm430, %v380, %v455
      %457 = vst [vmem:[%s421 + $0x24] sm:$0x1] %v456
      %v458 = vld [vmem:[%s421 + $0x28] sm:$0xf]
      %v459 = vsel %vm424, %v387, %v458
      %460 = vst [vmem:[%s421 + $0x28] sm:$0xf] %v459
      %v461 = vld [vmem:[%s421 + $0x2c] sm:$0x1]
      %v462 = vsel %vm430, %v388, %v461
      %463 = vst [vmem:[%s421 + $0x2c] sm:$0x1] %v462
      %v464 = vld [vmem:[%s421 + $0x30] sm:$0xf]
      %v465 = vsel %vm424, %v395, %v464
      %466 = vst [vmem:[%s421 + $0x30] sm:$0xf] %v465
      %v467 = vld [vmem:[%s421 + $0x34] sm:$0x1]
      %v468 = vsel %vm430, %v396, %v467
      %469 = vst [vmem:[%s421 + $0x34] sm:$0x1] %v468
      %v470 = vld [vmem:[%s421 + $0x38] sm:$0xf]
      %v471 = vsel %vm424, %v403, %v470
      %472 = vst [vmem:[%s421 + $0x38] sm:$0xf] %v471
      %v473 = vld [vmem:[%s421 + $0x3c] sm:$0x1]
      %v474 = vsel %vm430, %v404, %v473
      %475 = vst [vmem:[%s421 + $0x3c] sm:$0x1] %v474
      %v476 = vld [vmem:[#allocation2] sm:$0xf]
      %v477 = vld [vmem:[#allocation2 + $0x8] sm:$0xf]
      %v478 = vld [vmem:[#allocation2 + $0x10] sm:$0xf]
      %v479 = vld [vmem:[#allocation2 + $0x18] sm:$0xf]
      %v480 = vld [vmem:[#allocation2 + $0x20] sm:$0xf]
      %v481 = vld [vmem:[#allocation2 + $0x28] sm:$0xf]
      %v482 = vld [vmem:[#allocation2 + $0x30] sm:$0xf]
      %v483 = vld [vmem:[#allocation2 + $0x38] sm:$0xf]
      %v484 = vld [vmem:[%s3] sm:$0xf]
      %v485 = vld [vmem:[%s3 + $0x4] sm:$0xf]
      %v486 = vld [vmem:[%s3 + $0x8] sm:$0xf]
      %v487 = vld [vmem:[%s3 + $0xc] sm:$0xf]
      %v488 = vld [vmem:[#allocation2 + $0x4] sm:$0x1]
      %v489 = vld [vmem:[#allocation2 + $0xc] sm:$0x1]
      %v490 = vld [vmem:[#allocation2 + $0x14] sm:$0x1]
      %v491 = vld [vmem:[#allocation2 + $0x1c] sm:$0x1]
      %v492 = vld [vmem:[#allocation2 + $0x24] sm:$0x1]
      %v493 = vld [vmem:[#allocation2 + $0x2c] sm:$0x1]
      %v494 = vld [vmem:[#allocation2 + $0x34] sm:$0x1]
      %v495 = vld [vmem:[#allocation2 + $0x3c] sm:$0x1]
      %vm496 = vsmask.f32 3328
      %vm497 = vsmask.f32 7440
      %vm498 = vmor %vm496, %vm497
      %v500 = vshrl.u32 %v476, 16
      %v502 = vrot.slane %v500, 4
      %v503 = vshll.u32 %v476, 16
      %v505 = vrot.slane %v503, 5
      %v506 = vor.u32 %v502, %v505
      %v507 = vrot.slane %v506, 4
      %v509 = vshll.u32 %v488, 16
      %v511 = vrot.slane %v509, 5
      %v512 = vsel %vm498, %v507, %v511
      %v514 = vshrl.u32 %v477, 16
      %v516 = vrot.slane %v514, 4
      %v517 = vshll.u32 %v477, 16
      %v519 = vrot.slane %v517, 5
      %v520 = vor.u32 %v516, %v519
      %v521 = vrot.slane %v520, 4
      %v523 = vshll.u32 %v489, 16
      %v525 = vrot.slane %v523, 5
      %v526 = vsel %vm498, %v521, %v525
      %v528 = vshrl.u32 %v478, 16
      %v530 = vrot.slane %v528, 4
      %v531 = vshll.u32 %v478, 16
      %v533 = vrot.slane %v531, 5
      %v534 = vor.u32 %v530, %v533
      %v535 = vrot.slane %v534, 4
      %v537 = vshll.u32 %v490, 16
      %v539 = vrot.slane %v537, 5
      %v540 = vsel %vm498, %v535, %v539
      %v542 = vshrl.u32 %v479, 16
      %v544 = vrot.slane %v542, 4
      %v545 = vshll.u32 %v479, 16
      %v547 = vrot.slane %v545, 5
      %v548 = vor.u32 %v544, %v547
      %v549 = vrot.slane %v548, 4
      %v551 = vshll.u32 %v491, 16
      %v553 = vrot.slane %v551, 5
      %v554 = vsel %vm498, %v549, %v553
      %v556 = vshrl.u32 %v480, 16
      %v558 = vrot.slane %v556, 4
      %v559 = vshll.u32 %v480, 16
      %v561 = vrot.slane %v559, 5
      %v562 = vor.u32 %v558, %v561
      %v563 = vrot.slane %v562, 4
      %v565 = vshll.u32 %v492, 16
      %v567 = vrot.slane %v565, 5
      %v568 = vsel %vm498, %v563, %v567
      %v570 = vshrl.u32 %v481, 16
      %v572 = vrot.slane %v570, 4
      %v573 = vshll.u32 %v481, 16
      %v575 = vrot.slane %v573, 5
      %v576 = vor.u32 %v572, %v575
      %v577 = vrot.slane %v576, 4
      %v579 = vshll.u32 %v493, 16
      %v581 = vrot.slane %v579, 5
      %v582 = vsel %vm498, %v577, %v581
      %v584 = vshrl.u32 %v482, 16
      %v586 = vrot.slane %v584, 4
      %v587 = vshll.u32 %v482, 16
      %v589 = vrot.slane %v587, 5
      %v590 = vor.u32 %v586, %v589
      %v591 = vrot.slane %v590, 4
      %v593 = vshll.u32 %v494, 16
      %v595 = vrot.slane %v593, 5
      %v596 = vsel %vm498, %v591, %v595
      %v598 = vshrl.u32 %v483, 16
      %v600 = vrot.slane %v598, 4
      %v601 = vshll.u32 %v483, 16
      %v603 = vrot.slane %v601, 5
      %v604 = vor.u32 %v600, %v603
      %v605 = vrot.slane %v604, 4
      %v607 = vshll.u32 %v495, 16
      %v609 = vrot.slane %v607, 5
      %v610 = vsel %vm498, %v605, %v609
      %s611 = scalar_lea.vmem %s3, 16
      %v612 = vld [vmem:[%s611] sm:$0xf]
      %v613 = vld [vmem:[%s611 + $0x4] sm:$0xf]
      %v614 = vld [vmem:[%s611 + $0x8] sm:$0xf]
      %v615 = vld [vmem:[%s611 + $0xc] sm:$0xf]
      %v616 = vunpack.c.l.b16 %v512
      %v617 = vunpack.c.l.b16 %v526
      %v618 = vunpack.c.l.b16 %v540
      %v619 = vunpack.c.l.b16 %v554
      %v620 = vunpack.c.l.b16 %v568
      %v621 = vunpack.c.l.b16 %v582
      %v622 = vunpack.c.l.b16 %v596
      %v623 = vunpack.c.l.b16 %v610
      %v624 = vpack.c.b16 %v617, %v616
      %v625 = vpack.c.b16 %v619, %v618
      %v626 = vpack.c.b16 %v621, %v620
      %v627 = vpack.c.b16 %v623, %v622
      %v632 = vunpack.c.l.b16 %v612
      %v633 = vunpack.c.l.b16 %v613
      %v634 = vunpack.c.l.b16 %v614
      %v635 = vunpack.c.l.b16 %v615
      %v636 = vpack.c.b16 %v633, %v632
      %v637 = vpack.c.b16 %v635, %v634
      %vm640 = vcmask 261120
      %v642 = vsel %vm640, %v624, 0
      %v645 = vsel %vm640, %v625, 0
      %v648 = vsel %vm640, %v626, 0
      %v651 = vsel %vm640, %v627, 0
      %653 = vmatpush.bf16.msra.mxu0 0
      %654 = vmatpush.bf16.msra.mxu0 0
      %655 = vmatpush.bf16.msra.mxu0 0
      %656 = vmatpush.bf16.msra.mxu0 0
      %657 = vmatpush.bf16.msra.mxu0 0
      %658 = vmatpush.bf16.msra.mxu0 0
      %659 = vmatpush.bf16.msra.mxu0 %v637
      %660 = vmatpush.bf16.msra.mxu0 %v636
      %661 = vmatmul.bf16.gmra.mxu0 %v642
      %v662 = vpop.f32.mrf.mxu0
      %v663 = vadd.f32 0.0, %v662
      %v664 = vpop.f32.mrf.mxu0
      %v665 = vadd.f32 0.0, %v664
      %666 = vmatmul.bf16.gmra.mxu0 %v645
      %v667 = vpop.f32.mrf.mxu0
      %v668 = vadd.f32 0.0, %v667
      %v669 = vpop.f32.mrf.mxu0
      %v670 = vadd.f32 0.0, %v669
      %671 = vmatmul.bf16.gmra.mxu0 %v648
      %v672 = vpop.f32.mrf.mxu0
      %v673 = vadd.f32 0.0, %v672
      %v674 = vpop.f32.mrf.mxu0
      %v675 = vadd.f32 0.0, %v674
      %676 = vmatmul.bf16.gmra.mxu0 %v651
      %v677 = vpop.f32.mrf.mxu0
      %v678 = vadd.f32 0.0, %v677
      %v679 = vpop.f32.mrf.mxu0
      %v680 = vadd.f32 0.0, %v679
      %681 = vdwg.mxu0
      %v690 = vunpack.c.l.b16 %v476
      %v691 = vunpack.c.l.b16 %v477
      %v692 = vunpack.c.l.b16 %v478
      %v693 = vunpack.c.l.b16 %v479
      %v694 = vunpack.c.l.b16 %v480
      %v695 = vunpack.c.l.b16 %v481
      %v696 = vunpack.c.l.b16 %v482
      %v697 = vunpack.c.l.b16 %v483
      %v698 = vpack.c.b16 %v691, %v690
      %v699 = vpack.c.b16 %v693, %v692
      %v700 = vpack.c.b16 %v695, %v694
      %v701 = vpack.c.b16 %v697, %v696
      %v706 = vunpack.c.l.b16 %v484
      %v707 = vunpack.c.l.b16 %v485
      %v708 = vunpack.c.l.b16 %v486
      %v709 = vunpack.c.l.b16 %v487
      %v710 = vpack.c.b16 %v707, %v706
      %v711 = vpack.c.b16 %v709, %v708
      %v715 = vsel %vm640, %v698, 0
      %v718 = vsel %vm640, %v699, 0
      %v721 = vsel %vm640, %v700, 0
      %v724 = vsel %vm640, %v701, 0
      %726 = vmatpush.bf16.msra.mxu0 0
      %727 = vmatpush.bf16.msra.mxu0 0
      %728 = vmatpush.bf16.msra.mxu0 0
      %729 = vmatpush.bf16.msra.mxu0 0
      %730 = vmatpush.bf16.msra.mxu0 0
      %731 = vmatpush.bf16.msra.mxu0 0
      %732 = vmatpush.bf16.msra.mxu0 %v711
      %733 = vmatpush.bf16.msra.mxu0 %v710
      %734 = vmatmul.bf16.gmra.mxu0 %v715
      %v735 = vpop.f32.mrf.mxu0
      %v736 = vadd.f32 %v663, %v735
      %v737 = vpop.f32.mrf.mxu0
      %v738 = vadd.f32 %v665, %v737
      %739 = vmatmul.bf16.gmra.mxu0 %v718
      %v740 = vpop.f32.mrf.mxu0
      %v741 = vadd.f32 %v668, %v740
      %v742 = vpop.f32.mrf.mxu0
      %v743 = vadd.f32 %v670, %v742
      %744 = vmatmul.bf16.gmra.mxu0 %v721
      %v745 = vpop.f32.mrf.mxu0
      %v746 = vadd.f32 %v673, %v745
      %v747 = vpop.f32.mrf.mxu0
      %v748 = vadd.f32 %v675, %v747
      %749 = vmatmul.bf16.gmra.mxu0 %v724
      %v750 = vpop.f32.mrf.mxu0
      %v751 = vadd.f32 %v678, %v750
      %v752 = vpop.f32.mrf.mxu0
      %v753 = vadd.f32 %v680, %v752
      %754 = vdwg.mxu0
      %v755 = vld [vmem:[#allocation2] sm:$0xe]
      %v756 = vld [vmem:[#allocation2 + $0x8] sm:$0xe]
      %v757 = vld [vmem:[#allocation2 + $0x10] sm:$0xe]
      %v758 = vld [vmem:[#allocation2 + $0x18] sm:$0xe]
      %v759 = vld [vmem:[#allocation2 + $0x20] sm:$0xe]
      %v760 = vld [vmem:[#allocation2 + $0x28] sm:$0xe]
      %v761 = vld [vmem:[#allocation2 + $0x30] sm:$0xe]
      %v762 = vld [vmem:[#allocation2 + $0x38] sm:$0xe]
      %vm779 = vcmask 1042432
      %vm780 = vcmask 1046532
      %vm781 = vmor %vm779, %vm780
      %v782 = vrot.slane %v755, 5
      %v783 = vrot.slane %v782, 4
      %v784 = vrot.slane %v488, 5
      %v785 = vsel %vm781, %v783, %v784
      %v786 = vrot.slane %v756, 5
      %v787 = vrot.slane %v786, 4
      %v788 = vrot.slane %v489, 5
      %v789 = vsel %vm781, %v787, %v788
      %v790 = vrot.slane %v757, 5
      %v791 = vrot.slane %v790, 4
      %v792 = vrot.slane %v490, 5
      %v793 = vsel %vm781, %v791, %v792
      %v794 = vrot.slane %v758, 5
      %v795 = vrot.slane %v794, 4
      %v796 = vrot.slane %v491, 5
      %v797 = vsel %vm781, %v795, %v796
      %v798 = vrot.slane %v759, 5
      %v799 = vrot.slane %v798, 4
      %v800 = vrot.slane %v492, 5
      %v801 = vsel %vm781, %v799, %v800
      %v802 = vrot.slane %v760, 5
      %v803 = vrot.slane %v802, 4
      %v804 = vrot.slane %v493, 5
      %v805 = vsel %vm781, %v803, %v804
      %v806 = vrot.slane %v761, 5
      %v807 = vrot.slane %v806, 4
      %v808 = vrot.slane %v494, 5
      %v809 = vsel %vm781, %v807, %v808
      %v810 = vrot.slane %v762, 5
      %v811 = vrot.slane %v810, 4
      %v812 = vrot.slane %v495, 5
      %v813 = vsel %vm781, %v811, %v812
      %s814 = scalar_lea.vmem %s3, 32
      %v815 = vld [vmem:[%s814] sm:$0xf]
      %v816 = vld [vmem:[%s814 + $0x4] sm:$0xf]
      %v817 = vld [vmem:[%s814 + $0x8] sm:$0xf]
      %v818 = vld [vmem:[%s814 + $0xc] sm:$0xf]
      %v819 = vunpack.c.l.b16 %v785
      %v820 = vunpack.c.l.b16 %v789
      %v821 = vunpack.c.l.b16 %v793
      %v822 = vunpack.c.l.b16 %v797
      %v823 = vunpack.c.l.b16 %v801
      %v824 = vunpack.c.l.b16 %v805
      %v825 = vunpack.c.l.b16 %v809
      %v826 = vunpack.c.l.b16 %v813
      %v827 = vpack.c.b16 %v820, %v819
      %v828 = vpack.c.b16 %v822, %v821
      %v829 = vpack.c.b16 %v824, %v823
      %v830 = vpack.c.b16 %v826, %v825
      %v835 = vunpack.c.l.b16 %v815
      %v836 = vunpack.c.l.b16 %v816
      %v837 = vunpack.c.l.b16 %v817
      %v838 = vunpack.c.l.b16 %v818
      %v839 = vpack.c.b16 %v836, %v835
      %v840 = vpack.c.b16 %v838, %v837
      %v844 = vsel %vm640, %v827, 0
      %v847 = vsel %vm640, %v828, 0
      %v850 = vsel %vm640, %v829, 0
      %v853 = vsel %vm640, %v830, 0
      %855 = vmatpush.bf16.msra.mxu0 0
      %856 = vmatpush.bf16.msra.mxu0 0
      %857 = vmatpush.bf16.msra.mxu0 0
      %858 = vmatpush.bf16.msra.mxu0 0
      %859 = vmatpush.bf16.msra.mxu0 0
      %860 = vmatpush.bf16.msra.mxu0 0
      %861 = vmatpush.bf16.msra.mxu0 %v840
      %862 = vmatpush.bf16.msra.mxu0 %v839
      %863 = vmatmul.bf16.gmra.mxu0 %v844
      %v864 = vpop.f32.mrf.mxu0
      %v865 = vadd.f32 0.0, %v864
      %v866 = vpop.f32.mrf.mxu0
      %v867 = vadd.f32 0.0, %v866
      %868 = vmatmul.bf16.gmra.mxu0 %v847
      %v869 = vpop.f32.mrf.mxu0
      %v870 = vadd.f32 0.0, %v869
      %v871 = vpop.f32.mrf.mxu0
      %v872 = vadd.f32 0.0, %v871
      %873 = vmatmul.bf16.gmra.mxu0 %v850
      %v874 = vpop.f32.mrf.mxu0
      %v875 = vadd.f32 0.0, %v874
      %v876 = vpop.f32.mrf.mxu0
      %v877 = vadd.f32 0.0, %v876
      %878 = vmatmul.bf16.gmra.mxu0 %v853
      %v879 = vpop.f32.mrf.mxu0
      %v880 = vadd.f32 0.0, %v879
      %v881 = vpop.f32.mrf.mxu0
      %v882 = vadd.f32 0.0, %v881
      %883 = vdwg.mxu0
      %v884 = vadd.f32 %v736, %v865
      %v885 = vadd.f32 %v738, %v867
      %v886 = vadd.f32 %v741, %v870
      %v887 = vadd.f32 %v743, %v872
      %v888 = vadd.f32 %v746, %v875
      %v889 = vadd.f32 %v748, %v877
      %v890 = vadd.f32 %v751, %v880
      %v891 = vadd.f32 %v753, %v882
      %v892 = vld [vmem:[%s421] sm:$0xf]
      %v893 = vld [vmem:[%s421 + $0x8] sm:$0xf]
      %v894 = vld [vmem:[%s421 + $0x10] sm:$0xf]
      %v895 = vld [vmem:[%s421 + $0x18] sm:$0xf]
      %v896 = vld [vmem:[%s421 + $0x20] sm:$0xf]
      %v897 = vld [vmem:[%s421 + $0x28] sm:$0xf]
      %v898 = vld [vmem:[%s421 + $0x30] sm:$0xf]
      %v899 = vld [vmem:[%s421 + $0x38] sm:$0xf]
      %s900 = scalar_lea.vmem %s3, 48
      %v901 = vld [vmem:[%s900] sm:$0xf]
      %v902 = vld [vmem:[%s900 + $0x4] sm:$0xf]
      %v903 = vld [vmem:[%s900 + $0x8] sm:$0xf]
      %v904 = vld [vmem:[%s900 + $0xc] sm:$0xf]
      %v913 = vunpack.c.l.b16 %v892
      %v914 = vunpack.c.l.b16 %v893
      %v915 = vunpack.c.l.b16 %v894
      %v916 = vunpack.c.l.b16 %v895
      %v917 = vunpack.c.l.b16 %v896
      %v918 = vunpack.c.l.b16 %v897
      %v919 = vunpack.c.l.b16 %v898
      %v920 = vunpack.c.l.b16 %v899
      %v921 = vpack.c.b16 %v914, %v913
      %v922 = vpack.c.b16 %v916, %v915
      %v923 = vpack.c.b16 %v918, %v917
      %v924 = vpack.c.b16 %v920, %v919
      %v929 = vunpack.c.l.b16 %v901
      %v930 = vunpack.c.l.b16 %v902
      %v931 = vunpack.c.l.b16 %v903
      %v932 = vunpack.c.l.b16 %v904
      %v933 = vpack.c.b16 %v930, %v929
      %v934 = vpack.c.b16 %v932, %v931
      %v938 = vsel %vm640, %v921, 0
      %v941 = vsel %vm640, %v922, 0
      %v944 = vsel %vm640, %v923, 0
      %v947 = vsel %vm640, %v924, 0
      %949 = vmatpush.bf16.msra.mxu0 0
      %950 = vmatpush.bf16.msra.mxu0 0
      %951 = vmatpush.bf16.msra.mxu0 0
      %952 = vmatpush.bf16.msra.mxu0 0
      %953 = vmatpush.bf16.msra.mxu0 0
      %954 = vmatpush.bf16.msra.mxu0 0
      %955 = vmatpush.bf16.msra.mxu0 %v934
      %956 = vmatpush.bf16.msra.mxu0 %v933
      %957 = vmatmul.bf16.gmra.mxu0 %v938
      %v958 = vpop.f32.mrf.mxu0
      %v959 = vadd.f32 0.0, %v958
      %v960 = vpop.f32.mrf.mxu0
      %v961 = vadd.f32 0.0, %v960
      %962 = vmatmul.bf16.gmra.mxu0 %v941
      %v963 = vpop.f32.mrf.mxu0
      %v964 = vadd.f32 0.0, %v963
      %v965 = vpop.f32.mrf.mxu0
      %v966 = vadd.f32 0.0, %v965
      %967 = vmatmul.bf16.gmra.mxu0 %v944
      %v968 = vpop.f32.mrf.mxu0
      %v969 = vadd.f32 0.0, %v968
      %v970 = vpop.f32.mrf.mxu0
      %v971 = vadd.f32 0.0, %v970
      %972 = vmatmul.bf16.gmra.mxu0 %v947
      %v973 = vpop.f32.mrf.mxu0
      %v974 = vadd.f32 0.0, %v973
      %v975 = vpop.f32.mrf.mxu0
      %v976 = vadd.f32 0.0, %v975
      %977 = vdwg.mxu0
      %v978 = vadd.f32 %v884, %v959
      %v979 = vadd.f32 %v885, %v961
      %v980 = vadd.f32 %v886, %v964
      %v981 = vadd.f32 %v887, %v966
      %v982 = vadd.f32 %v888, %v969
      %v983 = vadd.f32 %v889, %v971
      %v984 = vadd.f32 %v890, %v974
      %v985 = vadd.f32 %v891, %v976
      %v986 = vld [vmem:[%s421] sm:$0xf]
      %v987 = vld [vmem:[%s421 + $0x4] sm:$0x1]
      %v988 = vld [vmem:[%s421 + $0x8] sm:$0xf]
      %v989 = vld [vmem:[%s421 + $0xc] sm:$0x1]
      %v990 = vld [vmem:[%s421 + $0x10] sm:$0xf]
      %v991 = vld [vmem:[%s421 + $0x14] sm:$0x1]
      %v992 = vld [vmem:[%s421 + $0x18] sm:$0xf]
      %v993 = vld [vmem:[%s421 + $0x1c] sm:$0x1]
      %v994 = vld [vmem:[%s421 + $0x20] sm:$0xf]
      %v995 = vld [vmem:[%s421 + $0x24] sm:$0x1]
      %v996 = vld [vmem:[%s421 + $0x28] sm:$0xf]
      %v997 = vld [vmem:[%s421 + $0x2c] sm:$0x1]
      %v998 = vld [vmem:[%s421 + $0x30] sm:$0xf]
      %v999 = vld [vmem:[%s421 + $0x34] sm:$0x1]
      %v1000 = vld [vmem:[%s421 + $0x38] sm:$0xf]
      %v1001 = vld [vmem:[%s421 + $0x3c] sm:$0x1]
      %v1003 = vshrl.u32 %v986, 16
      %v1005 = vrot.slane %v1003, 4
      %v1006 = vshll.u32 %v986, 16
      %v1008 = vrot.slane %v1006, 5
      %v1009 = vor.u32 %v1005, %v1008
      %v1010 = vrot.slane %v1009, 4
      %v1012 = vshll.u32 %v987, 16
      %v1014 = vrot.slane %v1012, 5
      %v1015 = vsel %vm498, %v1010, %v1014
      %v1017 = vshrl.u32 %v988, 16
      %v1019 = vrot.slane %v1017, 4
      %v1020 = vshll.u32 %v988, 16
      %v1022 = vrot.slane %v1020, 5
      %v1023 = vor.u32 %v1019, %v1022
      %v1024 = vrot.slane %v1023, 4
      %v1026 = vshll.u32 %v989, 16
      %v1028 = vrot.slane %v1026, 5
      %v1029 = vsel %vm498, %v1024, %v1028
      %v1031 = vshrl.u32 %v990, 16
      %v1033 = vrot.slane %v1031, 4
      %v1034 = vshll.u32 %v990, 16
      %v1036 = vrot.slane %v1034, 5
      %v1037 = vor.u32 %v1033, %v1036
      %v1038 = vrot.slane %v1037, 4
      %v1040 = vshll.u32 %v991, 16
      %v1042 = vrot.slane %v1040, 5
      %v1043 = vsel %vm498, %v1038, %v1042
      %v1045 = vshrl.u32 %v992, 16
      %v1047 = vrot.slane %v1045, 4
      %v1048 = vshll.u32 %v992, 16
      %v1050 = vrot.slane %v1048, 5
      %v1051 = vor.u32 %v1047, %v1050
      %v1052 = vrot.slane %v1051, 4
      %v1054 = vshll.u32 %v993, 16
      %v1056 = vrot.slane %v1054, 5
      %v1057 = vsel %vm498, %v1052, %v1056
      %v1059 = vshrl.u32 %v994, 16
      %v1061 = vrot.slane %v1059, 4
      %v1062 = vshll.u32 %v994, 16
      %v1064 = vrot.slane %v1062, 5
      %v1065 = vor.u32 %v1061, %v1064
      %v1066 = vrot.slane %v1065, 4
      %v1068 = vshll.u32 %v995, 16
      %v1070 = vrot.slane %v1068, 5
      %v1071 = vsel %vm498, %v1066, %v1070
      %v1073 = vshrl.u32 %v996, 16
      %v1075 = vrot.slane %v1073, 4
      %v1076 = vshll.u32 %v996, 16
      %v1078 = vrot.slane %v1076, 5
      %v1079 = vor.u32 %v1075, %v1078
      %v1080 = vrot.slane %v1079, 4
      %v1082 = vshll.u32 %v997, 16
      %v1084 = vrot.slane %v1082, 5
      %v1085 = vsel %vm498, %v1080, %v1084
      %v1087 = vshrl.u32 %v998, 16
      %v1089 = vrot.slane %v1087, 4
      %v1090 = vshll.u32 %v998, 16
      %v1092 = vrot.slane %v1090, 5
      %v1093 = vor.u32 %v1089, %v1092
      %v1094 = vrot.slane %v1093, 4
      %v1096 = vshll.u32 %v999, 16
      %v1098 = vrot.slane %v1096, 5
      %v1099 = vsel %vm498, %v1094, %v1098
      %v1101 = vshrl.u32 %v1000, 16
      %v1103 = vrot.slane %v1101, 4
      %v1104 = vshll.u32 %v1000, 16
      %v1106 = vrot.slane %v1104, 5
      %v1107 = vor.u32 %v1103, %v1106
      %v1108 = vrot.slane %v1107, 4
      %v1110 = vshll.u32 %v1001, 16
      %v1112 = vrot.slane %v1110, 5
      %v1113 = vsel %vm498, %v1108, %v1112
      %s1114 = scalar_lea.vmem %s3, 64
      %v1115 = vld [vmem:[%s1114] sm:$0xf]
      %v1116 = vld [vmem:[%s1114 + $0x4] sm:$0xf]
      %v1117 = vld [vmem:[%s1114 + $0x8] sm:$0xf]
      %v1118 = vld [vmem:[%s1114 + $0xc] sm:$0xf]
      %v1119 = vunpack.c.l.b16 %v1015
      %v1120 = vunpack.c.l.b16 %v1029
      %v1121 = vunpack.c.l.b16 %v1043
      %v1122 = vunpack.c.l.b16 %v1057
      %v1123 = vunpack.c.l.b16 %v1071
      %v1124 = vunpack.c.l.b16 %v1085
      %v1125 = vunpack.c.l.b16 %v1099
      %v1126 = vunpack.c.l.b16 %v1113
      %v1127 = vpack.c.b16 %v1120, %v1119
      %v1128 = vpack.c.b16 %v1122, %v1121
      %v1129 = vpack.c.b16 %v1124, %v1123
      %v1130 = vpack.c.b16 %v1126, %v1125
      %v1135 = vunpack.c.l.b16 %v1115
      %v1136 = vunpack.c.l.b16 %v1116
      %v1137 = vunpack.c.l.b16 %v1117
      %v1138 = vunpack.c.l.b16 %v1118
      %v1139 = vpack.c.b16 %v1136, %v1135
      %v1140 = vpack.c.b16 %v1138, %v1137
      %v1144 = vsel %vm640, %v1127, 0
      %v1147 = vsel %vm640, %v1128, 0
      %v1150 = vsel %vm640, %v1129, 0
      %v1153 = vsel %vm640, %v1130, 0
      %1155 = vmatpush.bf16.msra.mxu0 0
      %1156 = vmatpush.bf16.msra.mxu0 0
      %1157 = vmatpush.bf16.msra.mxu0 0
      %1158 = vmatpush.bf16.msra.mxu0 0
      %1159 = vmatpush.bf16.msra.mxu0 0
      %1160 = vmatpush.bf16.msra.mxu0 0
      %1161 = vmatpush.bf16.msra.mxu0 %v1140
      %1162 = vmatpush.bf16.msra.mxu0 %v1139
      %1163 = vmatmul.bf16.gmra.mxu0 %v1144
      %v1164 = vpop.f32.mrf.mxu0
      %v1165 = vadd.f32 0.0, %v1164
      %v1166 = vpop.f32.mrf.mxu0
      %v1167 = vadd.f32 0.0, %v1166
      %1168 = vmatmul.bf16.gmra.mxu0 %v1147
      %v1169 = vpop.f32.mrf.mxu0
      %v1170 = vadd.f32 0.0, %v1169
      %v1171 = vpop.f32.mrf.mxu0
      %v1172 = vadd.f32 0.0, %v1171
      %1173 = vmatmul.bf16.gmra.mxu0 %v1150
      %v1174 = vpop.f32.mrf.mxu0
      %v1175 = vadd.f32 0.0, %v1174
      %v1176 = vpop.f32.mrf.mxu0
      %v1177 = vadd.f32 0.0, %v1176
      %1178 = vmatmul.bf16.gmra.mxu0 %v1153
      %v1179 = vpop.f32.mrf.mxu0
      %v1180 = vadd.f32 0.0, %v1179
      %v1181 = vpop.f32.mrf.mxu0
      %v1182 = vadd.f32 0.0, %v1181
      %1183 = vdwg.mxu0
      %v1184 = vadd.f32 %v978, %v1165
      %v1185 = vadd.f32 %v979, %v1167
      %v1186 = vadd.f32 %v980, %v1170
      %v1187 = vadd.f32 %v981, %v1172
      %v1188 = vadd.f32 %v982, %v1175
      %v1189 = vadd.f32 %v983, %v1177
      %v1190 = vadd.f32 %v984, %v1180
      %v1191 = vadd.f32 %v985, %v1182
      %v1192 = vld [vmem:[%s421] sm:$0xe]
      %v1193 = vld [vmem:[%s421 + $0x8] sm:$0xe]
      %v1194 = vld [vmem:[%s421 + $0x10] sm:$0xe]
      %v1195 = vld [vmem:[%s421 + $0x18] sm:$0xe]
      %v1196 = vld [vmem:[%s421 + $0x20] sm:$0xe]
      %v1197 = vld [vmem:[%s421 + $0x28] sm:$0xe]
      %v1198 = vld [vmem:[%s421 + $0x30] sm:$0xe]
      %v1199 = vld [vmem:[%s421 + $0x38] sm:$0xe]
      %v1216 = vrot.slane %v1192, 5
      %v1217 = vrot.slane %v1216, 4
      %v1218 = vrot.slane %v987, 5
      %v1219 = vsel %vm781, %v1217, %v1218
      %v1220 = vrot.slane %v1193, 5
      %v1221 = vrot.slane %v1220, 4
      %v1222 = vrot.slane %v989, 5
      %v1223 = vsel %vm781, %v1221, %v1222
      %v1224 = vrot.slane %v1194, 5
      %v1225 = vrot.slane %v1224, 4
      %v1226 = vrot.slane %v991, 5
      %v1227 = vsel %vm781, %v1225, %v1226
      %v1228 = vrot.slane %v1195, 5
      %v1229 = vrot.slane %v1228, 4
      %v1230 = vrot.slane %v993, 5
      %v1231 = vsel %vm781, %v1229, %v1230
      %v1232 = vrot.slane %v1196, 5
      %v1233 = vrot.slane %v1232, 4
      %v1234 = vrot.slane %v995, 5
      %v1235 = vsel %vm781, %v1233, %v1234
      %v1236 = vrot.slane %v1197, 5
      %v1237 = vrot.slane %v1236, 4
      %v1238 = vrot.slane %v997, 5
      %v1239 = vsel %vm781, %v1237, %v1238
      %v1240 = vrot.slane %v1198, 5
      %v1241 = vrot.slane %v1240, 4
      %v1242 = vrot.slane %v999, 5
      %v1243 = vsel %vm781, %v1241, %v1242
      %v1244 = vrot.slane %v1199, 5
      %v1245 = vrot.slane %v1244, 4
      %v1246 = vrot.slane %v1001, 5
      %v1247 = vsel %vm781, %v1245, %v1246
      %s1248 = scalar_lea.vmem %s3, 80
      %v1249 = vld [vmem:[%s1248] sm:$0xf]
      %v1250 = vld [vmem:[%s1248 + $0x4] sm:$0xf]
      %v1251 = vld [vmem:[%s1248 + $0x8] sm:$0xf]
      %v1252 = vld [vmem:[%s1248 + $0xc] sm:$0xf]
      %v1253 = vunpack.c.l.b16 %v1219
      %v1254 = vunpack.c.l.b16 %v1223
      %v1255 = vunpack.c.l.b16 %v1227
      %v1256 = vunpack.c.l.b16 %v1231
      %v1257 = vunpack.c.l.b16 %v1235
      %v1258 = vunpack.c.l.b16 %v1239
      %v1259 = vunpack.c.l.b16 %v1243
      %v1260 = vunpack.c.l.b16 %v1247
      %v1261 = vpack.c.b16 %v1254, %v1253
      %v1262 = vpack.c.b16 %v1256, %v1255
      %v1263 = vpack.c.b16 %v1258, %v1257
      %v1264 = vpack.c.b16 %v1260, %v1259
      %v1269 = vunpack.c.l.b16 %v1249
      %v1270 = vunpack.c.l.b16 %v1250
      %v1271 = vunpack.c.l.b16 %v1251
      %v1272 = vunpack.c.l.b16 %v1252
      %v1273 = vpack.c.b16 %v1270, %v1269
      %v1274 = vpack.c.b16 %v1272, %v1271
      %v1278 = vsel %vm640, %v1261, 0
      %v1281 = vsel %vm640, %v1262, 0
      %v1284 = vsel %vm640, %v1263, 0
      %v1287 = vsel %vm640, %v1264, 0
      %1289 = vmatpush.bf16.msra.mxu0 0
      %1290 = vmatpush.bf16.msra.mxu0 0
      %1291 = vmatpush.bf16.msra.mxu0 0
      %1292 = vmatpush.bf16.msra.mxu0 0
      %1293 = vmatpush.bf16.msra.mxu0 0
      %1294 = vmatpush.bf16.msra.mxu0 0
      %1295 = vmatpush.bf16.msra.mxu0 %v1274
      %1296 = vmatpush.bf16.msra.mxu0 %v1273
      %1297 = vmatmul.bf16.gmra.mxu0 %v1278
      %v1298 = vpop.f32.mrf.mxu0
      %v1299 = vadd.f32 0.0, %v1298
      %v1300 = vpop.f32.mrf.mxu0
      %v1301 = vadd.f32 0.0, %v1300
      %1302 = vmatmul.bf16.gmra.mxu0 %v1281
      %v1303 = vpop.f32.mrf.mxu0
      %v1304 = vadd.f32 0.0, %v1303
      %v1305 = vpop.f32.mrf.mxu0
      %v1306 = vadd.f32 0.0, %v1305
      %1307 = vmatmul.bf16.gmra.mxu0 %v1284
      %v1308 = vpop.f32.mrf.mxu0
      %v1309 = vadd.f32 0.0, %v1308
      %v1310 = vpop.f32.mrf.mxu0
      %v1311 = vadd.f32 0.0, %v1310
      %1312 = vmatmul.bf16.gmra.mxu0 %v1287
      %v1313 = vpop.f32.mrf.mxu0
      %v1314 = vadd.f32 0.0, %v1313
      %v1315 = vpop.f32.mrf.mxu0
      %v1316 = vadd.f32 0.0, %v1315
      %1317 = vdwg.mxu0
      %v1318 = vadd.f32 %v1184, %v1299
      %v1319 = vadd.f32 %v1185, %v1301
      %v1320 = vadd.f32 %v1186, %v1304
      %v1321 = vadd.f32 %v1187, %v1306
      %v1322 = vadd.f32 %v1188, %v1309
      %v1323 = vadd.f32 %v1189, %v1311
      %v1324 = vadd.f32 %v1190, %v1314
      %v1325 = vadd.f32 %v1191, %v1316
      %s1326 = scalar_lea.vmem [#allocation2], 16
      %v1327 = vld [vmem:[%s1326] sm:$0xf]
      %v1328 = vld [vmem:[%s1326 + $0x8] sm:$0xf]
      %v1329 = vld [vmem:[%s1326 + $0x10] sm:$0xf]
      %v1330 = vld [vmem:[%s1326 + $0x18] sm:$0xf]
      %v1331 = vld [vmem:[%s1326 + $0x20] sm:$0xf]
      %v1332 = vld [vmem:[%s1326 + $0x28] sm:$0xf]
      %v1333 = vld [vmem:[%s1326 + $0x30] sm:$0xf]
      %v1334 = vld [vmem:[%s1326 + $0x38] sm:$0xf]
      %s1335 = scalar_lea.vmem %s3, 96
      %v1336 = vld [vmem:[%s1335] sm:$0xf]
      %v1337 = vld [vmem:[%s1335 + $0x4] sm:$0xf]
      %v1338 = vld [vmem:[%s1335 + $0x8] sm:$0xf]
      %v1339 = vld [vmem:[%s1335 + $0xc] sm:$0xf]
      %v1348 = vunpack.c.l.b16 %v1327
      %v1349 = vunpack.c.l.b16 %v1328
      %v1350 = vunpack.c.l.b16 %v1329
      %v1351 = vunpack.c.l.b16 %v1330
      %v1352 = vunpack.c.l.b16 %v1331
      %v1353 = vunpack.c.l.b16 %v1332
      %v1354 = vunpack.c.l.b16 %v1333
      %v1355 = vunpack.c.l.b16 %v1334
      %v1356 = vpack.c.b16 %v1349, %v1348
      %v1357 = vpack.c.b16 %v1351, %v1350
      %v1358 = vpack.c.b16 %v1353, %v1352
      %v1359 = vpack.c.b16 %v1355, %v1354
      %v1364 = vunpack.c.l.b16 %v1336
      %v1365 = vunpack.c.l.b16 %v1337
      %v1366 = vunpack.c.l.b16 %v1338
      %v1367 = vunpack.c.l.b16 %v1339
      %v1368 = vpack.c.b16 %v1365, %v1364
      %v1369 = vpack.c.b16 %v1367, %v1366
      %v1373 = vsel %vm640, %v1356, 0
      %v1376 = vsel %vm640, %v1357, 0
      %v1379 = vsel %vm640, %v1358, 0
      %v1382 = vsel %vm640, %v1359, 0
      %1384 = vmatpush.bf16.msra.mxu0 0
      %1385 = vmatpush.bf16.msra.mxu0 0
      %1386 = vmatpush.bf16.msra.mxu0 0
      %1387 = vmatpush.bf16.msra.mxu0 0
      %1388 = vmatpush.bf16.msra.mxu0 0
      %1389 = vmatpush.bf16.msra.mxu0 0
      %1390 = vmatpush.bf16.msra.mxu0 %v1369
      %1391 = vmatpush.bf16.msra.mxu0 %v1368
      %1392 = vmatmul.bf16.gmra.mxu0 %v1373
      %v1393 = vpop.f32.mrf.mxu0
      %v1394 = vadd.f32 0.0, %v1393
      %v1395 = vpop.f32.mrf.mxu0
      %v1396 = vadd.f32 0.0, %v1395
      %1397 = vmatmul.bf16.gmra.mxu0 %v1376
      %v1398 = vpop.f32.mrf.mxu0
      %v1399 = vadd.f32 0.0, %v1398
      %v1400 = vpop.f32.mrf.mxu0
      %v1401 = vadd.f32 0.0, %v1400
      %1402 = vmatmul.bf16.gmra.mxu0 %v1379
      %v1403 = vpop.f32.mrf.mxu0
      %v1404 = vadd.f32 0.0, %v1403
      %v1405 = vpop.f32.mrf.mxu0
      %v1406 = vadd.f32 0.0, %v1405
      %1407 = vmatmul.bf16.gmra.mxu0 %v1382
      %v1408 = vpop.f32.mrf.mxu0
      %v1409 = vadd.f32 0.0, %v1408
      %v1410 = vpop.f32.mrf.mxu0
      %v1411 = vadd.f32 0.0, %v1410
      %1412 = vdwg.mxu0
      %v1413 = vadd.f32 %v1318, %v1394
      %v1414 = vadd.f32 %v1319, %v1396
      %v1415 = vadd.f32 %v1320, %v1399
      %v1416 = vadd.f32 %v1321, %v1401
      %v1417 = vadd.f32 %v1322, %v1404
      %v1418 = vadd.f32 %v1323, %v1406
      %v1419 = vadd.f32 %v1324, %v1409
      %v1420 = vadd.f32 %v1325, %v1411
      %v1421 = vld [vmem:[%s1326] sm:$0xf]
      %v1422 = vld [vmem:[%s1326 + $0x4] sm:$0x1]
      %v1423 = vld [vmem:[%s1326 + $0x8] sm:$0xf]
      %v1424 = vld [vmem:[%s1326 + $0xc] sm:$0x1]
      %v1425 = vld [vmem:[%s1326 + $0x10] sm:$0xf]
      %v1426 = vld [vmem:[%s1326 + $0x14] sm:$0x1]
      %v1427 = vld [vmem:[%s1326 + $0x18] sm:$0xf]
      %v1428 = vld [vmem:[%s1326 + $0x1c] sm:$0x1]
      %v1429 = vld [vmem:[%s1326 + $0x20] sm:$0xf]
      %v1430 = vld [vmem:[%s1326 + $0x24] sm:$0x1]
      %v1431 = vld [vmem:[%s1326 + $0x28] sm:$0xf]
      %v1432 = vld [vmem:[%s1326 + $0x2c] sm:$0x1]
      %v1433 = vld [vmem:[%s1326 + $0x30] sm:$0xf]
      %v1434 = vld [vmem:[%s1326 + $0x34] sm:$0x1]
      %v1435 = vld [vmem:[%s1326 + $0x38] sm:$0xf]
      %v1436 = vld [vmem:[%s1326 + $0x3c] sm:$0x1]
      %v1438 = vshrl.u32 %v1421, 16
      %v1440 = vrot.slane %v1438, 4
      %v1441 = vshll.u32 %v1421, 16
      %v1443 = vrot.slane %v1441, 5
      %v1444 = vor.u32 %v1440, %v1443
      %v1445 = vrot.slane %v1444, 4
      %v1447 = vshll.u32 %v1422, 16
      %v1449 = vrot.slane %v1447, 5
      %v1450 = vsel %vm498, %v1445, %v1449
      %v1452 = vshrl.u32 %v1423, 16
      %v1454 = vrot.slane %v1452, 4
      %v1455 = vshll.u32 %v1423, 16
      %v1457 = vrot.slane %v1455, 5
      %v1458 = vor.u32 %v1454, %v1457
      %v1459 = vrot.slane %v1458, 4
      %v1461 = vshll.u32 %v1424, 16
      %v1463 = vrot.slane %v1461, 5
      %v1464 = vsel %vm498, %v1459, %v1463
      %v1466 = vshrl.u32 %v1425, 16
      %v1468 = vrot.slane %v1466, 4
      %v1469 = vshll.u32 %v1425, 16
      %v1471 = vrot.slane %v1469, 5
      %v1472 = vor.u32 %v1468, %v1471
      %v1473 = vrot.slane %v1472, 4
      %v1475 = vshll.u32 %v1426, 16
      %v1477 = vrot.slane %v1475, 5
      %v1478 = vsel %vm498, %v1473, %v1477
      %v1480 = vshrl.u32 %v1427, 16
      %v1482 = vrot.slane %v1480, 4
      %v1483 = vshll.u32 %v1427, 16
      %v1485 = vrot.slane %v1483, 5
      %v1486 = vor.u32 %v1482, %v1485
      %v1487 = vrot.slane %v1486, 4
      %v1489 = vshll.u32 %v1428, 16
      %v1491 = vrot.slane %v1489, 5
      %v1492 = vsel %vm498, %v1487, %v1491
      %v1494 = vshrl.u32 %v1429, 16
      %v1496 = vrot.slane %v1494, 4
      %v1497 = vshll.u32 %v1429, 16
      %v1499 = vrot.slane %v1497, 5
      %v1500 = vor.u32 %v1496, %v1499
      %v1501 = vrot.slane %v1500, 4
      %v1503 = vshll.u32 %v1430, 16
      %v1505 = vrot.slane %v1503, 5
      %v1506 = vsel %vm498, %v1501, %v1505
      %v1508 = vshrl.u32 %v1431, 16
      %v1510 = vrot.slane %v1508, 4
      %v1511 = vshll.u32 %v1431, 16
      %v1513 = vrot.slane %v1511, 5
      %v1514 = vor.u32 %v1510, %v1513
      %v1515 = vrot.slane %v1514, 4
      %v1517 = vshll.u32 %v1432, 16
      %v1519 = vrot.slane %v1517, 5
      %v1520 = vsel %vm498, %v1515, %v1519
      %v1522 = vshrl.u32 %v1433, 16
      %v1524 = vrot.slane %v1522, 4
      %v1525 = vshll.u32 %v1433, 16
      %v1527 = vrot.slane %v1525, 5
      %v1528 = vor.u32 %v1524, %v1527
      %v1529 = vrot.slane %v1528, 4
      %v1531 = vshll.u32 %v1434, 16
      %v1533 = vrot.slane %v1531, 5
      %v1534 = vsel %vm498, %v1529, %v1533
      %v1536 = vshrl.u32 %v1435, 16
      %v1538 = vrot.slane %v1536, 4
      %v1539 = vshll.u32 %v1435, 16
      %v1541 = vrot.slane %v1539, 5
      %v1542 = vor.u32 %v1538, %v1541
      %v1543 = vrot.slane %v1542, 4
      %v1545 = vshll.u32 %v1436, 16
      %v1547 = vrot.slane %v1545, 5
      %v1548 = vsel %vm498, %v1543, %v1547
      %s1549 = scalar_lea.vmem %s3, 112
      %v1550 = vld [vmem:[%s1549] sm:$0xf]
      %v1551 = vld [vmem:[%s1549 + $0x4] sm:$0xf]
      %v1552 = vld [vmem:[%s1549 + $0x8] sm:$0xf]
      %v1553 = vld [vmem:[%s1549 + $0xc] sm:$0xf]
      %v1554 = vunpack.c.l.b16 %v1450
      %v1555 = vunpack.c.l.b16 %v1464
      %v1556 = vunpack.c.l.b16 %v1478
      %v1557 = vunpack.c.l.b16 %v1492
      %v1558 = vunpack.c.l.b16 %v1506
      %v1559 = vunpack.c.l.b16 %v1520
      %v1560 = vunpack.c.l.b16 %v1534
      %v1561 = vunpack.c.l.b16 %v1548
      %v1562 = vpack.c.b16 %v1555, %v1554
      %v1563 = vpack.c.b16 %v1557, %v1556
      %v1564 = vpack.c.b16 %v1559, %v1558
      %v1565 = vpack.c.b16 %v1561, %v1560
      %v1570 = vunpack.c.l.b16 %v1550
      %v1571 = vunpack.c.l.b16 %v1551
      %v1572 = vunpack.c.l.b16 %v1552
      %v1573 = vunpack.c.l.b16 %v1553
      %v1574 = vpack.c.b16 %v1571, %v1570
      %v1575 = vpack.c.b16 %v1573, %v1572
      %v1579 = vsel %vm640, %v1562, 0
      %v1582 = vsel %vm640, %v1563, 0
      %v1585 = vsel %vm640, %v1564, 0
      %v1588 = vsel %vm640, %v1565, 0
      %1590 = vmatpush.bf16.msra.mxu0 0
      %1591 = vmatpush.bf16.msra.mxu0 0
      %1592 = vmatpush.bf16.msra.mxu0 0
      %1593 = vmatpush.bf16.msra.mxu0 0
      %1594 = vmatpush.bf16.msra.mxu0 0
      %1595 = vmatpush.bf16.msra.mxu0 0
      %1596 = vmatpush.bf16.msra.mxu0 %v1575
      %1597 = vmatpush.bf16.msra.mxu0 %v1574
      %1598 = vmatmul.bf16.gmra.mxu0 %v1579
      %v1599 = vpop.f32.mrf.mxu0
      %v1600 = vadd.f32 0.0, %v1599
      %v1601 = vpop.f32.mrf.mxu0
      %v1602 = vadd.f32 0.0, %v1601
      %1603 = vmatmul.bf16.gmra.mxu0 %v1582
      %v1604 = vpop.f32.mrf.mxu0
      %v1605 = vadd.f32 0.0, %v1604
      %v1606 = vpop.f32.mrf.mxu0
      %v1607 = vadd.f32 0.0, %v1606
      %1608 = vmatmul.bf16.gmra.mxu0 %v1585
      %v1609 = vpop.f32.mrf.mxu0
      %v1610 = vadd.f32 0.0, %v1609
      %v1611 = vpop.f32.mrf.mxu0
      %v1612 = vadd.f32 0.0, %v1611
      %1613 = vmatmul.bf16.gmra.mxu0 %v1588
      %v1614 = vpop.f32.mrf.mxu0
      %v1615 = vadd.f32 0.0, %v1614
      %v1616 = vpop.f32.mrf.mxu0
      %v1617 = vadd.f32 0.0, %v1616
      %1618 = vdwg.mxu0
      %v1619 = vadd.f32 %v1413, %v1600
      %v1620 = vadd.f32 %v1414, %v1602
      %v1621 = vadd.f32 %v1415, %v1605
      %v1622 = vadd.f32 %v1416, %v1607
      %v1623 = vadd.f32 %v1417, %v1610
      %v1624 = vadd.f32 %v1418, %v1612
      %v1625 = vadd.f32 %v1419, %v1615
      %v1626 = vadd.f32 %v1420, %v1617
      %v1627 = vld [vmem:[%s1326] sm:$0xe]
      %v1628 = vld [vmem:[%s1326 + $0x8] sm:$0xe]
      %v1629 = vld [vmem:[%s1326 + $0x10] sm:$0xe]
      %v1630 = vld [vmem:[%s1326 + $0x18] sm:$0xe]
      %v1631 = vld [vmem:[%s1326 + $0x20] sm:$0xe]
      %v1632 = vld [vmem:[%s1326 + $0x28] sm:$0xe]
      %v1633 = vld [vmem:[%s1326 + $0x30] sm:$0xe]
      %v1634 = vld [vmem:[%s1326 + $0x38] sm:$0xe]
      %v1651 = vrot.slane %v1627, 5
      %v1652 = vrot.slane %v1651, 4
      %v1653 = vrot.slane %v1422, 5
      %v1654 = vsel %vm781, %v1652, %v1653
      %v1655 = vrot.slane %v1628, 5
      %v1656 = vrot.slane %v1655, 4
      %v1657 = vrot.slane %v1424, 5
      %v1658 = vsel %vm781, %v1656, %v1657
      %v1659 = vrot.slane %v1629, 5
      %v1660 = vrot.slane %v1659, 4
      %v1661 = vrot.slane %v1426, 5
      %v1662 = vsel %vm781, %v1660, %v1661
      %v1663 = vrot.slane %v1630, 5
      %v1664 = vrot.slane %v1663, 4
      %v1665 = vrot.slane %v1428, 5
      %v1666 = vsel %vm781, %v1664, %v1665
      %v1667 = vrot.slane %v1631, 5
      %v1668 = vrot.slane %v1667, 4
      %v1669 = vrot.slane %v1430, 5
      %v1670 = vsel %vm781, %v1668, %v1669
      %v1671 = vrot.slane %v1632, 5
      %v1672 = vrot.slane %v1671, 4
      %v1673 = vrot.slane %v1432, 5
      %v1674 = vsel %vm781, %v1672, %v1673
      %v1675 = vrot.slane %v1633, 5
      %v1676 = vrot.slane %v1675, 4
      %v1677 = vrot.slane %v1434, 5
      %v1678 = vsel %vm781, %v1676, %v1677
      %v1679 = vrot.slane %v1634, 5
      %v1680 = vrot.slane %v1679, 4
      %v1681 = vrot.slane %v1436, 5
      %v1682 = vsel %vm781, %v1680, %v1681
      %s1683 = scalar_lea.vmem %s3, 128
      %v1684 = vld [vmem:[%s1683] sm:$0xf]
      %v1685 = vld [vmem:[%s1683 + $0x4] sm:$0xf]
      %v1686 = vld [vmem:[%s1683 + $0x8] sm:$0xf]
      %v1687 = vld [vmem:[%s1683 + $0xc] sm:$0xf]
      %v1688 = vunpack.c.l.b16 %v1654
      %v1689 = vunpack.c.l.b16 %v1658
      %v1690 = vunpack.c.l.b16 %v1662
      %v1691 = vunpack.c.l.b16 %v1666
      %v1692 = vunpack.c.l.b16 %v1670
      %v1693 = vunpack.c.l.b16 %v1674
      %v1694 = vunpack.c.l.b16 %v1678
      %v1695 = vunpack.c.l.b16 %v1682
      %v1696 = vpack.c.b16 %v1689, %v1688
      %v1697 = vpack.c.b16 %v1691, %v1690
      %v1698 = vpack.c.b16 %v1693, %v1692
      %v1699 = vpack.c.b16 %v1695, %v1694
      %v1704 = vunpack.c.l.b16 %v1684
      %v1705 = vunpack.c.l.b16 %v1685
      %v1706 = vunpack.c.l.b16 %v1686
      %v1707 = vunpack.c.l.b16 %v1687
      %v1708 = vpack.c.b16 %v1705, %v1704
      %v1709 = vpack.c.b16 %v1707, %v1706
      %v1713 = vsel %vm640, %v1696, 0
      %v1716 = vsel %vm640, %v1697, 0
      %v1719 = vsel %vm640, %v1698, 0
      %v1722 = vsel %vm640, %v1699, 0
      %1724 = vmatpush.bf16.msra.mxu0 0
      %1725 = vmatpush.bf16.msra.mxu0 0
      %1726 = vmatpush.bf16.msra.mxu0 0
      %1727 = vmatpush.bf16.msra.mxu0 0
      %1728 = vmatpush.bf16.msra.mxu0 0
      %1729 = vmatpush.bf16.msra.mxu0 0
      %1730 = vmatpush.bf16.msra.mxu0 %v1709
      %1731 = vmatpush.bf16.msra.mxu0 %v1708
      %1732 = vmatmul.bf16.gmra.mxu0 %v1713
      %v1733 = vpop.f32.mrf.mxu0
      %v1734 = vadd.f32 0.0, %v1733
      %v1735 = vpop.f32.mrf.mxu0
      %v1736 = vadd.f32 0.0, %v1735
      %1737 = vmatmul.bf16.gmra.mxu0 %v1716
      %v1738 = vpop.f32.mrf.mxu0
      %v1739 = vadd.f32 0.0, %v1738
      %v1740 = vpop.f32.mrf.mxu0
      %v1741 = vadd.f32 0.0, %v1740
      %1742 = vmatmul.bf16.gmra.mxu0 %v1719
      %v1743 = vpop.f32.mrf.mxu0
      %v1744 = vadd.f32 0.0, %v1743
      %v1745 = vpop.f32.mrf.mxu0
      %v1746 = vadd.f32 0.0, %v1745
      %1747 = vmatmul.bf16.gmra.mxu0 %v1722
      %v1748 = vpop.f32.mrf.mxu0
      %v1749 = vadd.f32 0.0, %v1748
      %v1750 = vpop.f32.mrf.mxu0
      %v1751 = vadd.f32 0.0, %v1750
      %1752 = vdwg.mxu0
      %v1753 = vadd.f32 %v1619, %v1734
      %v1754 = vadd.f32 %v1620, %v1736
      %v1755 = vadd.f32 %v1621, %v1739
      %v1756 = vadd.f32 %v1622, %v1741
      %v1757 = vadd.f32 %v1623, %v1744
      %v1758 = vadd.f32 %v1624, %v1746
      %v1759 = vadd.f32 %v1625, %v1749
      %v1760 = vadd.f32 %v1626, %v1751
      %v1761 = vpack.c.bf16 %v1753, %v1753
      %v1762 = vpack.c.bf16 %v1754, %v1754
      %v1763 = vpack.c.bf16 %v1755, %v1755
      %v1764 = vpack.c.bf16 %v1756, %v1756
      %v1765 = vpack.c.bf16 %v1757, %v1757
      %v1766 = vpack.c.bf16 %v1758, %v1758
      %v1767 = vpack.c.bf16 %v1759, %v1759
      %v1768 = vpack.c.bf16 %v1760, %v1760
      %vm1769 = vcmask 257024
      %1770 = vst.msk [vmem:[%s254] sm:$0xf] %vm1769, %v1761
      %1771 = vst.msk [vmem:[%s254 + $0x4] sm:$0xf] %vm1769, %v1762
      %1772 = vst.msk [vmem:[%s254 + $0x8] sm:$0xf] %vm1769, %v1763
      %1773 = vst.msk [vmem:[%s254 + $0xc] sm:$0xf] %vm1769, %v1764
      %1774 = vst.msk [vmem:[%s254 + $0x10] sm:$0xf] %vm1769, %v1765
      %1775 = vst.msk [vmem:[%s254 + $0x14] sm:$0xf] %vm1769, %v1766
      %1776 = vst.msk [vmem:[%s254 + $0x18] sm:$0xf] %vm1769, %v1767
      %1777 = vst.msk [vmem:[%s254 + $0x1c] sm:$0xf] %vm1769, %v1768
      %v1778 = vsel %vm640, %v1753, 0.0
      %v1779 = vsel %vm640, %v1754, 0.0
      %v1780 = vadd.f32 %v1778, %v1779
      %v1781 = vsel %vm640, %v1755, 0.0
      %v1782 = vadd.f32 %v1780, %v1781
      %v1783 = vsel %vm640, %v1756, 0.0
      %v1784 = vadd.f32 %v1782, %v1783
      %v1785 = vsel %vm640, %v1757, 0.0
      %v1786 = vadd.f32 %v1784, %v1785
      %v1787 = vsel %vm640, %v1758, 0.0
      %v1788 = vadd.f32 %v1786, %v1787
      %v1789 = vsel %vm640, %v1759, 0.0
      %v1790 = vadd.f32 %v1788, %v1789
      %v1791 = vsel %vm640, %v1760, 0.0
      %v1792 = vadd.f32 %v1790, %v1791
      %v1793 = vrot.slane %v1792, 4
      %v1794 = vadd.f32 %v1792, %v1793
      %v1795 = vrot.slane %v1794, 2
      %v1796 = vadd.f32 %v1794, %v1795
      %v1797 = vrot.slane %v1796, 1
      %v1798 = vadd.f32 %v1796, %v1797
      %v1799 = vrcp.pop 64.0
      %v1800 = vmul.f32 64.0, %v1799
      %v1801 = vsub.f32 1.0, %v1800
      %v1802 = vmul.f32 %v1799, %v1801
      %v1803 = vadd.f32 %v1799, %v1802
      %vm1804 = vweird.f32 %v1799
      %v1805 = vsel %vm1804, %v1799, %v1803
      %v1806 = vmul.f32 %v1798, %v1805
      %vm1807 = vcmask 253952
      %1808 = vst.msk [vmem:[%s257] sm:$0x1] %vm1807, %v1806
      %v1809 = vmul.f32 %v1753, %v1753
      %v1810 = vmul.f32 %v1754, %v1754
      %v1811 = vmul.f32 %v1755, %v1755
      %v1812 = vmul.f32 %v1756, %v1756
      %v1813 = vmul.f32 %v1757, %v1757
      %v1814 = vmul.f32 %v1758, %v1758
      %v1815 = vmul.f32 %v1759, %v1759
      %v1816 = vmul.f32 %v1760, %v1760
      %v1817 = vsel %vm640, %v1809, 0.0
      %v1818 = vsel %vm640, %v1810, 0.0
      %v1819 = vadd.f32 %v1817, %v1818
      %v1820 = vsel %vm640, %v1811, 0.0
      %v1821 = vadd.f32 %v1819, %v1820
      %v1822 = vsel %vm640, %v1812, 0.0
      %v1823 = vadd.f32 %v1821, %v1822
      %v1824 = vsel %vm640, %v1813, 0.0
      %v1825 = vadd.f32 %v1823, %v1824
      %v1826 = vsel %vm640, %v1814, 0.0
      %v1827 = vadd.f32 %v1825, %v1826
      %v1828 = vsel %vm640, %v1815, 0.0
      %v1829 = vadd.f32 %v1827, %v1828
      %v1830 = vsel %vm640, %v1816, 0.0
      %v1831 = vadd.f32 %v1829, %v1830
      %v1832 = vrot.slane %v1831, 4
      %v1833 = vadd.f32 %v1831, %v1832
      %v1834 = vrot.slane %v1833, 2
      %v1835 = vadd.f32 %v1833, %v1834
      %v1836 = vrot.slane %v1835, 1
      %v1837 = vadd.f32 %v1835, %v1836
      %vm1838 = vcmask 1040384
      %v1839 = vsel %vm1838, %v1798, %v1837
      // Predicated region
      $region41: #{basic_block_forward.5} parent=35 // pred_check
        %p1840 = pneg %p259
      $region42: #{basic_block_forward.5} parent=35 // pred_check_branch
        %1842 = sbr.rel (%p1840) target = $region44
      $region43: #{basic_block_forward.5} parent=35 // pred_region
        %vm1843 = vcmask 254976
        %1844 = vst.msk [vmem:[%s6] sm:$0x3] %vm1843, %v1839
      $region44: #{basic_block_forward.5} parent=35 // pred_fallthru
        _
      %p1845 = scmp.ne.s32.totalorder %s18, 0
      // Predicated region
      $region45: #{basic_block_forward.5} parent=35 // pred_check
        %p1846 = pneg %p1845
      $region46: #{basic_block_forward.5} parent=35 // pred_check_branch
        %1848 = sbr.rel (%p1846) target = $region48
      $region47: #{basic_block_forward.5} parent=35 // pred_region
        %v1849 = vld [vmem:[%s6] sm:$0x3]
        %v1850 = vadd.f32 %v1849, %v1839
        %vm1851 = vcmask 254976
        %1852 = vst.msk [vmem:[%s6] sm:$0x3] %vm1851, %v1850
      $region48: #{basic_block_forward.5} parent=35 // pred_fallthru
        _
      %p1853 = scmp.lt.s32.totalorder %s18, 1
      %s1854 = scalar_select %p1853, %s18, 1
      %s1855 = smul.addr %s1854, 8
      %s1856 = smul.addr %s1855, 4
      %s1857 = scalar_lea.vmem %s4, %s1856
      %p1858 = scmp.lt.s32.totalorder %s18, 1
      %s1859 = scalar_select %p1858, %s18, 1
      %s1860 = scalar_lea.vmem %s5, %s1859
      // Predicated region
      $region49: #{basic_block_forward.5} parent=35 // pred_check
        %p1861 = pneg %p125
      $region50: #{basic_block_forward.5} parent=35 // pred_check_branch
        %1863 = sbr.rel (%p1861) target = $region52
      $region51: #{basic_block_forward.5} parent=35 // pred_region
        _
      $region52: #{basic_block_forward.5} parent=35 // pred_fallthru
        _
      // Predicated region
      $region53: #{basic_block_forward.5} parent=35 // pred_check
        %p1864 = pneg %p151
      $region54: #{basic_block_forward.5} parent=35 // pred_check_branch
        %1866 = sbr.rel (%p1864) target = $region56
      $region55: #{basic_block_forward.5} parent=35 // pred_region
        _
      $region56: #{basic_block_forward.5} parent=35 // pred_fallthru
        _
      // Predicated region
      $region57: #{basic_block_forward.5} parent=35 // pred_check
        %p1867 = pneg %p172
      $region58: #{basic_block_forward.5} parent=35 // pred_check_branch
        %1869 = sbr.rel (%p1867) target = $region60
      $region59: #{basic_block_forward.5} parent=35 // pred_region
        _
      $region60: #{basic_block_forward.5} parent=35 // pred_fallthru
        _
      // Predicated region
      $region61: #{basic_block_forward.5} parent=35 // pred_check
        %p1870 = pneg %p172
      $region62: #{basic_block_forward.5} parent=35 // pred_check_branch
        %1872 = sbr.rel (%p1870) target = $region64
      $region63: #{basic_block_forward.5} parent=35 // pred_region
        _
      $region64: #{basic_block_forward.5} parent=35 // pred_fallthru
        _
    $region36: #{basic_block_forward.5} parent=5 // pred_fallthru
      _
    %p1873 = scmp.le.s32.totalorder 2, %s13
    // Predicated region
    $region65: #{basic_block_forward.5} parent=5 // pred_check
      %p1874 = pneg %p1873
    $region66: #{basic_block_forward.5} parent=5 // pred_check_branch
      %1876 = sbr.rel (%p1874) target = $region68
    $region67: #{basic_block_forward.5} parent=5 // pred_region
      %s1877 = ssub.s32 %s13, 2
      // Predicated region
      $region69: #{basic_block_forward.5} parent=67 // pred_check
        %p1878 = pneg %p131
      $region70: #{basic_block_forward.5} parent=67 // pred_check_branch
        %1880 = sbr.rel (%p1878) target = $region72
      $region71: #{basic_block_forward.5} parent=67 // pred_region
        %p1881 = scmp.lt.s32.totalorder %s19, 1
        %s1882 = scalar_select %p1881, %s19, 1
        %s1883 = smul.addr %s1882, 8
        %s1884 = smul.addr %s1883, 4
        %s1885 = scalar_lea.vmem %s4, %s1884
      $region72: #{basic_block_forward.5} parent=67 // pred_fallthru
        _
      // Predicated region
      $region73: #{basic_block_forward.5} parent=67 // pred_check
        %p1886 = pneg %p157
      $region74: #{basic_block_forward.5} parent=67 // pred_check_branch
        %1888 = sbr.rel (%p1886) target = $region76
      $region75: #{basic_block_forward.5} parent=67 // pred_region
        %p1889 = scmp.lt.s32.totalorder %s19, 1
        %s1890 = scalar_select %p1889, %s19, 1
        %s1891 = scalar_lea.vmem %s5, %s1890
      $region76: #{basic_block_forward.5} parent=67 // pred_fallthru
        _
    $region68: #{basic_block_forward.5} parent=5 // pred_fallthru
      _
  $region6: #{basic_block_forward.5} parent=0 // loop_footer
    %s17 = sadd.s32 1, %s13
  $region7: #{basic_block_forward.5} parent=0 // loop_footer_branch
    %12 = sbr.rel target = $region3
  $region8: #{basic_block_forward.5} parent=0 // loop_exit
    _

</llo_original>
